<compile_context>
chip_gen: v5e
topology: v5e:2x2
jax: 0.10.0
libtpu: 0.0.40
codegen_flags: <defaults>
</compile_context>

<pallas_src>
import functools

import jax
import jax.numpy as jnp
from jax.experimental import pallas as pl
from jax.experimental.pallas import tpu as pltpu

NEG_SLOPE = 0.01  # PyTorch nn.LeakyReLU default


def _leaky_relu(x):
    # max(x, a*x) == LeakyReLU for 0 < a < 1; 2 VALU ops instead of 3.
    return jnp.maximum(x, NEG_SLOPE * x)


def _round_up(x, m):
    return ((x + m - 1) // m) * m


def tcn_kernel(xc_ref, cw_ref, cb_ref, *refs, n_hidden, BB, T_tile):
    """One (batch-block, time-tile) pair per grid step; layout (features, N).

    xc_ref : (1, 1, K_pad, BB*T_tile) f32  pre-built im2col columns
    cw_ref : (hid_pad, K_pad)         f32  flattened conv weight
    cb_ref : (hid_pad, 1)             f32  conv bias
    refs   : [W_0 (hid_pad,hid_pad) bf16, b_0 (hid_pad,1) f32, ...,
              w_out (1, hid_pad) bf16, b_out (1, 1) f32 (SMEM), out_ref]
    out_ref: (BB, T_tile) f32  (sublane-dense output tile)
    """
    out_ref = refs[-1]
    b_out_ref = refs[-2]          # SMEM scalar
    w_out_ref = refs[-3]
    layer_refs = refs[:-3]

    # ---- fused Conv2d: one f32 MXU matmul over K = T_no*in_no columns ----
    x_col = xc_ref[0, 0]                                     # (K_pad, N) f32
    acc = jnp.dot(cw_ref[...], x_col, preferred_element_type=jnp.float32)
    h = _leaky_relu(acc + cb_ref[...]).astype(jnp.bfloat16)  # (hid_pad, N) bf16

    # ---- hidden Linear(hid, hid) layers, bf16 operands, f32 accumulation ----
    for i in range(n_hidden):
        w = layer_refs[2 * i][...]                           # (hid_pad, hid_pad) bf16
        b = layer_refs[2 * i + 1][...]                       # (hid_pad, 1)       f32
        acc = jnp.dot(w, h, preferred_element_type=jnp.float32)
        h = _leaky_relu(acc + b).astype(jnp.bfloat16)

    # ---- final Linear(hid, 1): per-batch-row lane-aligned slices of h, one
    #      (1, hid_pad) @ (hid_pad, T_tile) matmul per row of the output tile ----
    w_out = w_out_ref[...]
    bias = b_out_ref[0, 0]
    for bi in range(BB):
        hb = h[:, bi * T_tile:(bi + 1) * T_tile]             # static, 128-aligned
        yb = jnp.dot(w_out, hb, preferred_element_type=jnp.float32)   # (1, T_tile)
        out_ref[pl.ds(bi, 1), :] = (yb + bias).astype(out_ref.dtype)


def tcn_multilayer_forward(S_e, S_i, params, *, T_no, hid_no,
                           batch_block=8, max_time_tile=1024):
    """Pallas implementation of TCN_Multilayer.forward (returns (batch, T_data))."""
    conv_w, conv_b, mlp_ws, mlp_bs = params
    batch, T_data, _ = S_e.shape
    assert T_no % 2 == 1, "T_no must be odd so the conv preserves the time length"

    pad_t = T_no // 2
    BB = batch_block
    n_bblk = -(-batch // BB)
    batch_pad = n_bblk * BB

    # Glue: concat inputs (torch.cat([S_e, S_i], 2)).
    x = jnp.concatenate([S_e, S_i], axis=2).astype(jnp.float32)     # (B, T, in_no)
    in_no = x.shape[2]
    K = T_no * in_no
    K_pad = _round_up(K, 8)
    hid_pad = _round_up(hid_no, 128)

    # Time tiling: always a multiple of 128 (lane-dense output stores).
    T_tile = min(_round_up(T_data, 128), max_time_tile)
    n_tiles = -(-T_data // T_tile)
    T_out = n_tiles * T_tile

    # ---- wrapper-side im2col: x_col[bb, tl, dt*in_no+c, b_in*T_tile+t_in] ----
    x_p = jnp.pad(x, ((0, batch_pad - batch),
                      (pad_t, T_out - T_data + pad_t), (0, 0)))
    # shifted[b, t, dt, c] = x_p[b, t + dt, c]   (static loop over small T_no only)
    shifted = jnp.stack([x_p[:, dt:dt + T_out, :] for dt in range(T_no)], axis=2)
    xc = shifted.reshape(n_bblk, BB, n_tiles, T_tile, K)
    xc = jnp.transpose(xc, (0, 2, 4, 1, 3))          # (n_bblk, n_tiles, K, BB, T_tile)
    x_col = xc.reshape(n_bblk, n_tiles, K, BB * T_tile)
    x_col = jnp.pad(x_col, ((0, 0), (0, 0), (0, K_pad - K), (0, 0)))  # f32

    # ---- parameters: pad hid to 128, flatten conv weight, bf16 hidden layers ----
    cw = conv_w[:, 0].reshape(hid_no, K)                             # (hid, T_no*in_no)
    cw = jnp.pad(cw, ((0, hid_pad - hid_no), (0, K_pad - K))).astype(jnp.float32)
    cb = jnp.pad(conv_b, (0, hid_pad - hid_no)).reshape(hid_pad, 1).astype(jnp.float32)

    n_hidden = len(mlp_ws) - 1
    flat = []
    for i in range(n_hidden):                                        # Linear(hid, hid)
        w = jnp.pad(mlp_ws[i], ((0, hid_pad - hid_no), (0, hid_pad - hid_no)))
        flat.append(w.astype(jnp.bfloat16))                          # (hid_pad, hid_pad)
        flat.append(jnp.pad(mlp_bs[i], (0, hid_pad - hid_no))
                    .reshape(hid_pad, 1).astype(jnp.float32))
    w_out = jnp.pad(mlp_ws[-1], ((0, 0), (0, hid_pad - hid_no))).astype(jnp.bfloat16)
    b_out = mlp_bs[-1].reshape(1, 1).astype(jnp.float32)             # scalar -> SMEM

    kernel = functools.partial(tcn_kernel, n_hidden=n_hidden, BB=BB, T_tile=T_tile)

    flops = int(2 * batch_pad * T_out
                * (K_pad * hid_pad + n_hidden * hid_pad * hid_pad + hid_pad))
    bytes_accessed = int(
        x_col.size * 4 + cw.size * 4 + cb.size * 4
        + sum(a.size * a.dtype.itemsize for a in flat)
        + w_out.size * 2 + 4 + batch_pad * T_out * 4)

    def make_call(single_buffer_weights):
        def const_spec(shape):
            kwargs = {}
            if single_buffer_weights:
                # Weights never change block index -> no need for double buffering.
                kwargs["pipeline_mode"] = pl.Buffered(1)
            return pl.BlockSpec(shape, lambda b, t: (0,) * len(shape), **kwargs)

        in_specs = [
            pl.BlockSpec((1, 1, K_pad, BB * T_tile), lambda b, t: (b, t, 0, 0)),
            const_spec(cw.shape),
            const_spec(cb.shape),
        ]
        in_specs += [const_spec(a.shape) for a in flat]
        in_specs.append(const_spec(w_out.shape))
        in_specs.append(pl.BlockSpec(memory_space=pltpu.MemorySpace.SMEM))

        return pl.pallas_call(
            kernel,
            grid=(n_bblk, n_tiles),
            in_specs=in_specs,
            out_specs=pl.BlockSpec((BB, T_tile), lambda b, t: (b, t)),
            out_shape=jax.ShapeDtypeStruct((batch_pad, T_out), jnp.float32),
            compiler_params=pltpu.CompilerParams(
                dimension_semantics=("parallel", "parallel"),
                vmem_limit_bytes=32 * 1024 * 1024),
            cost_estimate=pl.CostEstimate(flops=flops, transcendentals=0,
                                          bytes_accessed=bytes_accessed),
        )

    args = (x_col, cw, cb, *flat, w_out, b_out)
    try:
        out = make_call(True)(*args)
    except Exception:
        # Fallback for JAX versions / backends that reject single-buffered
        # (pipeline_mode=pl.Buffered(1)) constant weight blocks.
        out = make_call(False)(*args)

    return out[:batch, :T_data]          # == final.reshape(batch, T_data)


def tcn_multilayer_reference(S_e, S_i, params, *, T_no, hid_no):
    """Pure-JAX f32 reference mirroring the PyTorch forward exactly."""
    conv_w, conv_b, mlp_ws, mlp_bs = params
    batch, T_data, _ = S_e.shape
    x = jnp.concatenate([S_e, S_i], axis=2).astype(jnp.float32)
    pad = T_no // 2
    x_pad = jnp.pad(x, ((0, 0), (pad, pad), (0, 0)))
    cw = jnp.transpose(conv_w[:, 0], (1, 2, 0))                  # (T_no, in_no, hid)
    conv = jnp.zeros((batch, T_data, hid_no), jnp.float32)
    for dt in range(T_no):
        conv = conv + jnp.einsum('bti,ih->bth', x_pad[:, dt:dt + T_data, :], cw[dt])
    h = _leaky_relu(conv + conv_b.reshape(1, 1, hid_no))
    h = h.reshape(-1, hid_no)
    for i in range(len(mlp_ws) - 1):
        h = _leaky_relu(h @ mlp_ws[i].T + mlp_bs[i])
    final = h @ mlp_ws[-1].T + mlp_bs[-1]                        # (batch*T, 1)
    return final[:, 0].reshape(batch, T_data)


def init_params(key, *, T_no, in_no, layer_no, hid_no):
    """Deterministic synthetic parameters matching the module's shapes."""
    ks = jax.random.split(key, 2 + 2 * layer_no)
    conv_w = 0.1 * jax.random.normal(ks[0], (hid_no, 1, T_no, in_no), jnp.float32)
    conv_b = 0.1 * jax.random.normal(ks[1], (hid_no,), jnp.float32)
    mlp_ws, mlp_bs = [], []
    for i in range(layer_no):
        out_dim = 1 if i == layer_no - 1 else hid_no
        mlp_ws.append(0.1 * jax.random.normal(ks[2 + 2 * i], (out_dim, hid_no), jnp.float32))
        mlp_bs.append(0.1 * jax.random.normal(ks[3 + 2 * i], (out_dim,), jnp.float32))
    return conv_w, conv_b, mlp_ws, mlp_bs


if __name__ == "__main__":
    # Small, module-consistent shapes.
    batch, T_data = 2, 16
    n_e, n_i = 8, 8
    in_no = n_e + n_i          # conv kernel width must equal total input features
    T_no = 7                   # odd -> conv preserves the time length
    layer_no = 2
    hid_no = 32

    key = jax.random.PRNGKey(0)
    k_param, k_e, k_i = jax.random.split(key, 3)
    params = init_params(k_param, T_no=T_no, in_no=in_no,
                         layer_no=layer_no, hid_no=hid_no)
    S_e = jax.random.normal(k_e, (batch, T_data, n_e), jnp.float32)
    S_i = jax.random.normal(k_i, (batch, T_data, n_i), jnp.float32)

    out = tcn_multilayer_forward(S_e, S_i, params, T_no=T_no, hid_no=hid_no)
    out = jax.block_until_ready(out)

    ref = tcn_multilayer_reference(S_e, S_i, params, T_no=T_no, hid_no=hid_no)
    assert out.shape == (batch, T_data)
    # Hidden layers run with bf16 MXU operands (f32 accumulation), conv path is f32.
    assert jnp.allclose(out, ref, rtol=2e-2, atol=2e-2), "mismatch vs reference"

    print("KERNEL_OK")
</pallas_src>

<mosaic_0001>
module attributes {stable_mosaic.version = 11 : i64} {
  func.func @tcn_kernel(%arg0: i32, %arg1: i32, %arg2: memref<1x1x112x1024xf32, #tpu.memory_space<vmem>>, %arg3: memref<128x112xf32, #tpu.memory_space<vmem>>, %arg4: memref<128x1xf32, #tpu.memory_space<vmem>>, %arg5: memref<128x128xbf16, #tpu.memory_space<vmem>>, %arg6: memref<128x1xf32, #tpu.memory_space<vmem>>, %arg7: memref<1x128xbf16, #tpu.memory_space<vmem>>, %arg8: memref<1x1xf32, #tpu.memory_space<smem>>, %arg9: memref<8x128xf32, #tpu.memory_space<vmem>>) attributes {dimension_semantics = [#tpu.dimension_semantics<parallel>, #tpu.dimension_semantics<parallel>], iteration_bounds = array<i64: 1, 1>, scalar_prefetch = 0 : i64, scratch_operands = 0 : i64, tpu.core_type = #tpu.core_type<tc>, window_params = [{transform_indices = @transform_0, window_bounds = array<i64: 1, 1, 112, 1024>}, {pipeline_mode = #tpu.pipeline_mode<synchronous>, transform_indices = @transform_1, window_bounds = array<i64: 128, 112>}, {pipeline_mode = #tpu.pipeline_mode<synchronous>, transform_indices = @transform_2, window_bounds = array<i64: 128, 1>}, {pipeline_mode = #tpu.pipeline_mode<synchronous>, transform_indices = @transform_3, window_bounds = array<i64: 128, 128>}, {pipeline_mode = #tpu.pipeline_mode<synchronous>, transform_indices = @transform_4, window_bounds = array<i64: 128, 1>}, {pipeline_mode = #tpu.pipeline_mode<synchronous>, transform_indices = @transform_5, window_bounds = array<i64: 1, 128>}, {transform_indices = @transform_6, window_bounds = array<i64: 1, 1>}, {transform_indices = @transform_7, window_bounds = array<i64: 8, 128>}]} {
    %c0 = arith.constant 0 : index
    %c0_0 = arith.constant 0 : index
    %c0_1 = arith.constant 0 : index
    %c0_2 = arith.constant 0 : index
    %0 = vector.load %arg2[%c0, %c0_0, %c0_1, %c0_2] : memref<1x1x112x1024xf32, #tpu.memory_space<vmem>>, vector<1x1x112x1024xf32>
    %1 = vector.shape_cast %0 : vector<1x1x112x1024xf32> to vector<112x1024xf32>
    %c0_3 = arith.constant 0 : index
    %c0_4 = arith.constant 0 : index
    %2 = vector.load %arg3[%c0_3, %c0_4] : memref<128x112xf32, #tpu.memory_space<vmem>>, vector<128x112xf32>
    %cst = arith.constant dense<0.000000e+00> : vector<128x1024xf32>
    %3 = tpu.matmul %2, %1, %cst {dimension_numbers = #tpu.dot_dimension_numbers<[1], [0], [0], [1], [0, 0, 1, 1], [], []>} : vector<128x112xf32>, vector<112x1024xf32>, vector<128x1024xf32> -> vector<128x1024xf32>
    %c0_5 = arith.constant 0 : index
    %c0_6 = arith.constant 0 : index
    %4 = vector.load %arg4[%c0_5, %c0_6] : memref<128x1xf32, #tpu.memory_space<vmem>>, vector<128x1xf32>
    %5 = vector.broadcast %4 : vector<128x1xf32> to vector<128x1024xf32>
    %6 = arith.addf %3, %5 : vector<128x1024xf32>
    %cst_7 = arith.constant 0.00999999977 : f32
    %7 = vector.broadcast %cst_7 : f32 to vector<128x1024xf32>
    %8 = arith.mulf %7, %6 : vector<128x1024xf32>
    %9 = arith.maximumf %6, %8 : vector<128x1024xf32>
    %10 = arith.truncf %9 : vector<128x1024xf32> to vector<128x1024xbf16>
    %c0_8 = arith.constant 0 : index
    %c0_9 = arith.constant 0 : index
    %11 = vector.load %arg5[%c0_8, %c0_9] : memref<128x128xbf16, #tpu.memory_space<vmem>>, vector<128x128xbf16>
    %c0_10 = arith.constant 0 : index
    %c0_11 = arith.constant 0 : index
    %12 = vector.load %arg6[%c0_10, %c0_11] : memref<128x1xf32, #tpu.memory_space<vmem>>, vector<128x1xf32>
    %cst_12 = arith.constant dense<0.000000e+00> : vector<128x1024xf32>
    %13 = tpu.matmul %11, %10, %cst_12 {dimension_numbers = #tpu.dot_dimension_numbers<[1], [0], [0], [1], [0, 0, 1, 1], [], []>} : vector<128x128xbf16>, vector<128x1024xbf16>, vector<128x1024xf32> -> vector<128x1024xf32>
    %14 = vector.broadcast %12 : vector<128x1xf32> to vector<128x1024xf32>
    %15 = arith.addf %13, %14 : vector<128x1024xf32>
    %cst_13 = arith.constant 0.00999999977 : f32
    %16 = vector.broadcast %cst_13 : f32 to vector<128x1024xf32>
    %17 = arith.mulf %16, %15 : vector<128x1024xf32>
    %18 = arith.maximumf %15, %17 : vector<128x1024xf32>
    %19 = arith.truncf %18 : vector<128x1024xf32> to vector<128x1024xbf16>
    %c0_14 = arith.constant 0 : index
    %c0_15 = arith.constant 0 : index
    %20 = vector.load %arg7[%c0_14, %c0_15] : memref<1x128xbf16, #tpu.memory_space<vmem>>, vector<1x128xbf16>
    %c0_16 = arith.constant 0 : index
    %c0_17 = arith.constant 0 : index
    %21 = memref.load %arg8[%c0_16, %c0_17] : memref<1x1xf32, #tpu.memory_space<smem>>
    %22 = vector.extract_strided_slice %19 {offsets = [0, 0], sizes = [128, 128], strides = [1, 1]} : vector<128x1024xbf16> to vector<128x128xbf16>
    %cst_18 = arith.constant dense<0.000000e+00> : vector<1x128xf32>
    %23 = tpu.matmul %20, %22, %cst_18 {dimension_numbers = #tpu.dot_dimension_numbers<[1], [0], [0], [1], [0, 0, 1, 1], [], []>} : vector<1x128xbf16>, vector<128x128xbf16>, vector<1x128xf32> -> vector<1x128xf32>
    %24 = vector.broadcast %21 : f32 to vector<1x128xf32>
    %25 = arith.addf %23, %24 : vector<1x128xf32>
    %c0_19 = arith.constant 0 : index
    %c0_20 = arith.constant 0 : index
    %26 = vector.load %arg9[%c0_19, %c0_20] : memref<8x128xf32, #tpu.memory_space<vmem>>, vector<1x128xf32>
    tpu.vector_store %arg9[%c0_19, %c0_20], %25 {strides = array<i32>} : memref<8x128xf32, #tpu.memory_space<vmem>>, vector<1x128xf32>,
    %27 = vector.extract_strided_slice %19 {offsets = [0, 128], sizes = [128, 128], strides = [1, 1]} : vector<128x1024xbf16> to vector<128x128xbf16>
    %cst_21 = arith.constant dense<0.000000e+00> : vector<1x128xf32>
    %28 = tpu.matmul %20, %27, %cst_21 {dimension_numbers = #tpu.dot_dimension_numbers<[1], [0], [0], [1], [0, 0, 1, 1], [], []>} : vector<1x128xbf16>, vector<128x128xbf16>, vector<1x128xf32> -> vector<1x128xf32>
    %29 = vector.broadcast %21 : f32 to vector<1x128xf32>
    %30 = arith.addf %28, %29 : vector<1x128xf32>
    %c1 = arith.constant 1 : index
    %c0_22 = arith.constant 0 : index
    %31 = vector.load %arg9[%c1, %c0_22] : memref<8x128xf32, #tpu.memory_space<vmem>>, vector<1x128xf32>
    tpu.vector_store %arg9[%c1, %c0_22], %30 {strides = array<i32>} : memref<8x128xf32, #tpu.memory_space<vmem>>, vector<1x128xf32>,
    %32 = vector.extract_strided_slice %19 {offsets = [0, 256], sizes = [128, 128], strides = [1, 1]} : vector<128x1024xbf16> to vector<128x128xbf16>
    %cst_23 = arith.constant dense<0.000000e+00> : vector<1x128xf32>
    %33 = tpu.matmul %20, %32, %cst_23 {dimension_numbers = #tpu.dot_dimension_numbers<[1], [0], [0], [1], [0, 0, 1, 1], [], []>} : vector<1x128xbf16>, vector<128x128xbf16>, vector<1x128xf32> -> vector<1x128xf32>
    %34 = vector.broadcast %21 : f32 to vector<1x128xf32>
    %35 = arith.addf %33, %34 : vector<1x128xf32>
    %c2 = arith.constant 2 : index
    %c0_24 = arith.constant 0 : index
    %36 = vector.load %arg9[%c2, %c0_24] : memref<8x128xf32, #tpu.memory_space<vmem>>, vector<1x128xf32>
    tpu.vector_store %arg9[%c2, %c0_24], %35 {strides = array<i32>} : memref<8x128xf32, #tpu.memory_space<vmem>>, vector<1x128xf32>,
    %37 = vector.extract_strided_slice %19 {offsets = [0, 384], sizes = [128, 128], strides = [1, 1]} : vector<128x1024xbf16> to vector<128x128xbf16>
    %cst_25 = arith.constant dense<0.000000e+00> : vector<1x128xf32>
    %38 = tpu.matmul %20, %37, %cst_25 {dimension_numbers = #tpu.dot_dimension_numbers<[1], [0], [0], [1], [0, 0, 1, 1], [], []>} : vector<1x128xbf16>, vector<128x128xbf16>, vector<1x128xf32> -> vector<1x128xf32>
    %39 = vector.broadcast %21 : f32 to vector<1x128xf32>
    %40 = arith.addf %38, %39 : vector<1x128xf32>
    %c3 = arith.constant 3 : index
    %c0_26 = arith.constant 0 : index
    %41 = vector.load %arg9[%c3, %c0_26] : memref<8x128xf32, #tpu.memory_space<vmem>>, vector<1x128xf32>
    tpu.vector_store %arg9[%c3, %c0_26], %40 {strides = array<i32>} : memref<8x128xf32, #tpu.memory_space<vmem>>, vector<1x128xf32>,
    %42 = vector.extract_strided_slice %19 {offsets = [0, 512], sizes = [128, 128], strides = [1, 1]} : vector<128x1024xbf16> to vector<128x128xbf16>
    %cst_27 = arith.constant dense<0.000000e+00> : vector<1x128xf32>
    %43 = tpu.matmul %20, %42, %cst_27 {dimension_numbers = #tpu.dot_dimension_numbers<[1], [0], [0], [1], [0, 0, 1, 1], [], []>} : vector<1x128xbf16>, vector<128x128xbf16>, vector<1x128xf32> -> vector<1x128xf32>
    %44 = vector.broadcast %21 : f32 to vector<1x128xf32>
    %45 = arith.addf %43, %44 : vector<1x128xf32>
    %c4 = arith.constant 4 : index
    %c0_28 = arith.constant 0 : index
    %46 = vector.load %arg9[%c4, %c0_28] : memref<8x128xf32, #tpu.memory_space<vmem>>, vector<1x128xf32>
    tpu.vector_store %arg9[%c4, %c0_28], %45 {strides = array<i32>} : memref<8x128xf32, #tpu.memory_space<vmem>>, vector<1x128xf32>,
    %47 = vector.extract_strided_slice %19 {offsets = [0, 640], sizes = [128, 128], strides = [1, 1]} : vector<128x1024xbf16> to vector<128x128xbf16>
    %cst_29 = arith.constant dense<0.000000e+00> : vector<1x128xf32>
    %48 = tpu.matmul %20, %47, %cst_29 {dimension_numbers = #tpu.dot_dimension_numbers<[1], [0], [0], [1], [0, 0, 1, 1], [], []>} : vector<1x128xbf16>, vector<128x128xbf16>, vector<1x128xf32> -> vector<1x128xf32>
    %49 = vector.broadcast %21 : f32 to vector<1x128xf32>
    %50 = arith.addf %48, %49 : vector<1x128xf32>
    %c5 = arith.constant 5 : index
    %c0_30 = arith.constant 0 : index
    %51 = vector.load %arg9[%c5, %c0_30] : memref<8x128xf32, #tpu.memory_space<vmem>>, vector<1x128xf32>
    tpu.vector_store %arg9[%c5, %c0_30], %50 {strides = array<i32>} : memref<8x128xf32, #tpu.memory_space<vmem>>, vector<1x128xf32>,
    %52 = vector.extract_strided_slice %19 {offsets = [0, 768], sizes = [128, 128], strides = [1, 1]} : vector<128x1024xbf16> to vector<128x128xbf16>
    %cst_31 = arith.constant dense<0.000000e+00> : vector<1x128xf32>
    %53 = tpu.matmul %20, %52, %cst_31 {dimension_numbers = #tpu.dot_dimension_numbers<[1], [0], [0], [1], [0, 0, 1, 1], [], []>} : vector<1x128xbf16>, vector<128x128xbf16>, vector<1x128xf32> -> vector<1x128xf32>
    %54 = vector.broadcast %21 : f32 to vector<1x128xf32>
    %55 = arith.addf %53, %54 : vector<1x128xf32>
    %c6 = arith.constant 6 : index
    %c0_32 = arith.constant 0 : index
    %56 = vector.load %arg9[%c6, %c0_32] : memref<8x128xf32, #tpu.memory_space<vmem>>, vector<1x128xf32>
    tpu.vector_store %arg9[%c6, %c0_32], %55 {strides = array<i32>} : memref<8x128xf32, #tpu.memory_space<vmem>>, vector<1x128xf32>,
    %57 = vector.extract_strided_slice %19 {offsets = [0, 896], sizes = [128, 128], strides = [1, 1]} : vector<128x1024xbf16> to vector<128x128xbf16>
    %cst_33 = arith.constant dense<0.000000e+00> : vector<1x128xf32>
    %58 = tpu.matmul %20, %57, %cst_33 {dimension_numbers = #tpu.dot_dimension_numbers<[1], [0], [0], [1], [0, 0, 1, 1], [], []>} : vector<1x128xbf16>, vector<128x128xbf16>, vector<1x128xf32> -> vector<1x128xf32>
    %59 = vector.broadcast %21 : f32 to vector<1x128xf32>
    %60 = arith.addf %58, %59 : vector<1x128xf32>
    %c7 = arith.constant 7 : index
    %c0_34 = arith.constant 0 : index
    %61 = vector.load %arg9[%c7, %c0_34] : memref<8x128xf32, #tpu.memory_space<vmem>>, vector<1x128xf32>
    tpu.vector_store %arg9[%c7, %c0_34], %60 {strides = array<i32>} : memref<8x128xf32, #tpu.memory_space<vmem>>, vector<1x128xf32>,
    return
  }
  func.func @transform_0(%arg0: i32, %arg1: i32) -> (i32, i32, i32, i32) {
    %c0_i32 = arith.constant 0 : i32
    %c0_i32_0 = arith.constant 0 : i32
    %c0_i32_1 = arith.constant 0 : i32
    return %arg0, %arg1, %c0_i32, %c0_i32_0 : i32, i32, i32, i32
  }
  func.func @transform_1(%arg0: i32, %arg1: i32) -> (i32, i32) {
    %c0_i32 = arith.constant 0 : i32
    %c0_i32_0 = arith.constant 0 : i32
    %c0_i32_1 = arith.constant 0 : i32
    return %c0_i32, %c0_i32_0 : i32, i32
  }
  func.func @transform_2(%arg0: i32, %arg1: i32) -> (i32, i32) {
    %c0_i32 = arith.constant 0 : i32
    %c0_i32_0 = arith.constant 0 : i32
    %c0_i32_1 = arith.constant 0 : i32
    return %c0_i32, %c0_i32_0 : i32, i32
  }
  func.func @transform_3(%arg0: i32, %arg1: i32) -> (i32, i32) {
    %c0_i32 = arith.constant 0 : i32
    %c0_i32_0 = arith.constant 0 : i32
    %c0_i32_1 = arith.constant 0 : i32
    return %c0_i32, %c0_i32_0 : i32, i32
  }
  func.func @transform_4(%arg0: i32, %arg1: i32) -> (i32, i32) {
    %c0_i32 = arith.constant 0 : i32
    %c0_i32_0 = arith.constant 0 : i32
    %c0_i32_1 = arith.constant 0 : i32
    return %c0_i32, %c0_i32_0 : i32, i32
  }
  func.func @transform_5(%arg0: i32, %arg1: i32) -> (i32, i32) {
    %c0_i32 = arith.constant 0 : i32
    %c0_i32_0 = arith.constant 0 : i32
    %c0_i32_1 = arith.constant 0 : i32
    return %c0_i32, %c0_i32_0 : i32, i32
  }
  func.func @transform_6(%arg0: i32, %arg1: i32) -> (i32, i32) {
    %c0_i32 = arith.constant 0 : i32
    %c0_i32_0 = arith.constant 0 : i32
    %c0_i32_1 = arith.constant 0 : i32
    return %c0_i32, %c0_i32_0 : i32, i32
  }
  func.func @transform_7(%arg0: i32, %arg1: i32) -> (i32, i32) {
    %c0_i32 = arith.constant 0 : i32
    return %arg0, %arg1 : i32, i32
  }
}

module attributes {stable_mosaic.version = 11 : i64} {
  func.func @tcn_kernel(%arg0: i32, %arg1: i32, %arg2: memref<1x1x112x1024xf32, #tpu.memory_space<vmem>>, %arg3: memref<128x112xf32, #tpu.memory_space<vmem>>, %arg4: memref<128x1xf32, #tpu.memory_space<vmem>>, %arg5: memref<128x128xbf16, #tpu.memory_space<vmem>>, %arg6: memref<128x1xf32, #tpu.memory_space<vmem>>, %arg7: memref<1x128xbf16, #tpu.memory_space<vmem>>, %arg8: memref<1x1xf32, #tpu.memory_space<smem>>, %arg9: memref<8x128xf32, #tpu.memory_space<vmem>>) attributes {dimension_semantics = [#tpu.dimension_semantics<parallel>, #tpu.dimension_semantics<parallel>], iteration_bounds = array<i64: 1, 1>, scalar_prefetch = 0 : i64, scratch_operands = 0 : i64, tpu.core_type = #tpu.core_type<tc>, window_params = [{transform_indices = @transform_0, window_bounds = array<i64: 1, 1, 112, 1024>}, {pipeline_mode = #tpu.pipeline_mode<synchronous>, transform_indices = @transform_1, window_bounds = array<i64: 128, 112>}, {pipeline_mode = #tpu.pipeline_mode<synchronous>, transform_indices = @transform_2, window_bounds = array<i64: 128, 1>}, {pipeline_mode = #tpu.pipeline_mode<synchronous>, transform_indices = @transform_3, window_bounds = array<i64: 128, 128>}, {pipeline_mode = #tpu.pipeline_mode<synchronous>, transform_indices = @transform_4, window_bounds = array<i64: 128, 1>}, {pipeline_mode = #tpu.pipeline_mode<synchronous>, transform_indices = @transform_5, window_bounds = array<i64: 1, 128>}, {transform_indices = @transform_6, window_bounds = array<i64: 1, 1>}, {transform_indices = @transform_7, window_bounds = array<i64: 8, 128>}]} {
    %c0 = arith.constant 0 : index
    %c0_0 = arith.constant 0 : index
    %c0_1 = arith.constant 0 : index
    %c0_2 = arith.constant 0 : index
    %0 = vector.load %arg2[%c0, %c0_0, %c0_1, %c0_2] : memref<1x1x112x1024xf32, #tpu.memory_space<vmem>>, vector<1x1x112x1024xf32>
    %1 = vector.shape_cast %0 : vector<1x1x112x1024xf32> to vector<112x1024xf32>
    %c0_3 = arith.constant 0 : index
    %c0_4 = arith.constant 0 : index
    %2 = vector.load %arg3[%c0_3, %c0_4] : memref<128x112xf32, #tpu.memory_space<vmem>>, vector<128x112xf32>
    %cst = arith.constant dense<0.000000e+00> : vector<128x1024xf32>
    %3 = tpu.matmul %2, %1, %cst {dimension_numbers = #tpu.dot_dimension_numbers<[1], [0], [0], [1], [0, 0, 1, 1], [], []>} : vector<128x112xf32>, vector<112x1024xf32>, vector<128x1024xf32> -> vector<128x1024xf32>
    %c0_5 = arith.constant 0 : index
    %c0_6 = arith.constant 0 : index
    %4 = vector.load %arg4[%c0_5, %c0_6] : memref<128x1xf32, #tpu.memory_space<vmem>>, vector<128x1xf32>
    %5 = vector.broadcast %4 : vector<128x1xf32> to vector<128x1024xf32>
    %6 = arith.addf %3, %5 : vector<128x1024xf32>
    %cst_7 = arith.constant 0.00999999977 : f32
    %7 = vector.broadcast %cst_7 : f32 to vector<128x1024xf32>
    %8 = arith.mulf %7, %6 : vector<128x1024xf32>
    %9 = arith.maximumf %6, %8 : vector<128x1024xf32>
    %10 = arith.truncf %9 : vector<128x1024xf32> to vector<128x1024xbf16>
    %c0_8 = arith.constant 0 : index
    %c0_9 = arith.constant 0 : index
    %11 = vector.load %arg5[%c0_8, %c0_9] : memref<128x128xbf16, #tpu.memory_space<vmem>>, vector<128x128xbf16>
    %c0_10 = arith.constant 0 : index
    %c0_11 = arith.constant 0 : index
    %12 = vector.load %arg6[%c0_10, %c0_11] : memref<128x1xf32, #tpu.memory_space<vmem>>, vector<128x1xf32>
    %cst_12 = arith.constant dense<0.000000e+00> : vector<128x1024xf32>
    %13 = tpu.matmul %11, %10, %cst_12 {dimension_numbers = #tpu.dot_dimension_numbers<[1], [0], [0], [1], [0, 0, 1, 1], [], []>} : vector<128x128xbf16>, vector<128x1024xbf16>, vector<128x1024xf32> -> vector<128x1024xf32>
    %14 = vector.broadcast %12 : vector<128x1xf32> to vector<128x1024xf32>
    %15 = arith.addf %13, %14 : vector<128x1024xf32>
    %cst_13 = arith.constant 0.00999999977 : f32
    %16 = vector.broadcast %cst_13 : f32 to vector<128x1024xf32>
    %17 = arith.mulf %16, %15 : vector<128x1024xf32>
    %18 = arith.maximumf %15, %17 : vector<128x1024xf32>
    %19 = arith.truncf %18 : vector<128x1024xf32> to vector<128x1024xbf16>
    %c0_14 = arith.constant 0 : index
    %c0_15 = arith.constant 0 : index
    %20 = vector.load %arg7[%c0_14, %c0_15] : memref<1x128xbf16, #tpu.memory_space<vmem>>, vector<1x128xbf16>
    %c0_16 = arith.constant 0 : index
    %c0_17 = arith.constant 0 : index
    %21 = memref.load %arg8[%c0_16, %c0_17] : memref<1x1xf32, #tpu.memory_space<smem>>
    %22 = vector.extract_strided_slice %19 {offsets = [0, 0], sizes = [128, 128], strides = [1, 1]} : vector<128x1024xbf16> to vector<128x128xbf16>
    %cst_18 = arith.constant dense<0.000000e+00> : vector<1x128xf32>
    %23 = tpu.matmul %20, %22, %cst_18 {dimension_numbers = #tpu.dot_dimension_numbers<[1], [0], [0], [1], [0, 0, 1, 1], [], []>} : vector<1x128xbf16>, vector<128x128xbf16>, vector<1x128xf32> -> vector<1x128xf32>
    %24 = vector.broadcast %21 : f32 to vector<1x128xf32>
    %25 = arith.addf %23, %24 : vector<1x128xf32>
    %c0_19 = arith.constant 0 : index
    %c0_20 = arith.constant 0 : index
    %26 = vector.load %arg9[%c0_19, %c0_20] : memref<8x128xf32, #tpu.memory_space<vmem>>, vector<1x128xf32>
    tpu.vector_store %arg9[%c0_19, %c0_20], %25 {strides = array<i32>} : memref<8x128xf32, #tpu.memory_space<vmem>>, vector<1x128xf32>,
    %27 = vector.extract_strided_slice %19 {offsets = [0, 128], sizes = [128, 128], strides = [1, 1]} : vector<128x1024xbf16> to vector<128x128xbf16>
    %cst_21 = arith.constant dense<0.000000e+00> : vector<1x128xf32>
    %28 = tpu.matmul %20, %27, %cst_21 {dimension_numbers = #tpu.dot_dimension_numbers<[1], [0], [0], [1], [0, 0, 1, 1], [], []>} : vector<1x128xbf16>, vector<128x128xbf16>, vector<1x128xf32> -> vector<1x128xf32>
    %29 = vector.broadcast %21 : f32 to vector<1x128xf32>
    %30 = arith.addf %28, %29 : vector<1x128xf32>
    %c1 = arith.constant 1 : index
    %c0_22 = arith.constant 0 : index
    %31 = vector.load %arg9[%c1, %c0_22] : memref<8x128xf32, #tpu.memory_space<vmem>>, vector<1x128xf32>
    tpu.vector_store %arg9[%c1, %c0_22], %30 {strides = array<i32>} : memref<8x128xf32, #tpu.memory_space<vmem>>, vector<1x128xf32>,
    %32 = vector.extract_strided_slice %19 {offsets = [0, 256], sizes = [128, 128], strides = [1, 1]} : vector<128x1024xbf16> to vector<128x128xbf16>
    %cst_23 = arith.constant dense<0.000000e+00> : vector<1x128xf32>
    %33 = tpu.matmul %20, %32, %cst_23 {dimension_numbers = #tpu.dot_dimension_numbers<[1], [0], [0], [1], [0, 0, 1, 1], [], []>} : vector<1x128xbf16>, vector<128x128xbf16>, vector<1x128xf32> -> vector<1x128xf32>
    %34 = vector.broadcast %21 : f32 to vector<1x128xf32>
    %35 = arith.addf %33, %34 : vector<1x128xf32>
    %c2 = arith.constant 2 : index
    %c0_24 = arith.constant 0 : index
    %36 = vector.load %arg9[%c2, %c0_24] : memref<8x128xf32, #tpu.memory_space<vmem>>, vector<1x128xf32>
    tpu.vector_store %arg9[%c2, %c0_24], %35 {strides = array<i32>} : memref<8x128xf32, #tpu.memory_space<vmem>>, vector<1x128xf32>,
    %37 = vector.extract_strided_slice %19 {offsets = [0, 384], sizes = [128, 128], strides = [1, 1]} : vector<128x1024xbf16> to vector<128x128xbf16>
    %cst_25 = arith.constant dense<0.000000e+00> : vector<1x128xf32>
    %38 = tpu.matmul %20, %37, %cst_25 {dimension_numbers = #tpu.dot_dimension_numbers<[1], [0], [0], [1], [0, 0, 1, 1], [], []>} : vector<1x128xbf16>, vector<128x128xbf16>, vector<1x128xf32> -> vector<1x128xf32>
    %39 = vector.broadcast %21 : f32 to vector<1x128xf32>
    %40 = arith.addf %38, %39 : vector<1x128xf32>
    %c3 = arith.constant 3 : index
    %c0_26 = arith.constant 0 : index
    %41 = vector.load %arg9[%c3, %c0_26] : memref<8x128xf32, #tpu.memory_space<vmem>>, vector<1x128xf32>
    tpu.vector_store %arg9[%c3, %c0_26], %40 {strides = array<i32>} : memref<8x128xf32, #tpu.memory_space<vmem>>, vector<1x128xf32>,
    %42 = vector.extract_strided_slice %19 {offsets = [0, 512], sizes = [128, 128], strides = [1, 1]} : vector<128x1024xbf16> to vector<128x128xbf16>
    %cst_27 = arith.constant dense<0.000000e+00> : vector<1x128xf32>
    %43 = tpu.matmul %20, %42, %cst_27 {dimension_numbers = #tpu.dot_dimension_numbers<[1], [0], [0], [1], [0, 0, 1, 1], [], []>} : vector<1x128xbf16>, vector<128x128xbf16>, vector<1x128xf32> -> vector<1x128xf32>
    %44 = vector.broadcast %21 : f32 to vector<1x128xf32>
    %45 = arith.addf %43, %44 : vector<1x128xf32>
    %c4 = arith.constant 4 : index
    %c0_28 = arith.constant 0 : index
    %46 = vector.load %arg9[%c4, %c0_28] : memref<8x128xf32, #tpu.memory_space<vmem>>, vector<1x128xf32>
    tpu.vector_store %arg9[%c4, %c0_28], %45 {strides = array<i32>} : memref<8x128xf32, #tpu.memory_space<vmem>>, vector<1x128xf32>,
    %47 = vector.extract_strided_slice %19 {offsets = [0, 640], sizes = [128, 128], strides = [1, 1]} : vector<128x1024xbf16> to vector<128x128xbf16>
    %cst_29 = arith.constant dense<0.000000e+00> : vector<1x128xf32>
    %48 = tpu.matmul %20, %47, %cst_29 {dimension_numbers = #tpu.dot_dimension_numbers<[1], [0], [0], [1], [0, 0, 1, 1], [], []>} : vector<1x128xbf16>, vector<128x128xbf16>, vector<1x128xf32> -> vector<1x128xf32>
    %49 = vector.broadcast %21 : f32 to vector<1x128xf32>
    %50 = arith.addf %48, %49 : vector<1x128xf32>
    %c5 = arith.constant 5 : index
    %c0_30 = arith.constant 0 : index
    %51 = vector.load %arg9[%c5, %c0_30] : memref<8x128xf32, #tpu.memory_space<vmem>>, vector<1x128xf32>
    tpu.vector_store %arg9[%c5, %c0_30], %50 {strides = array<i32>} : memref<8x128xf32, #tpu.memory_space<vmem>>, vector<1x128xf32>,
    %52 = vector.extract_strided_slice %19 {offsets = [0, 768], sizes = [128, 128], strides = [1, 1]} : vector<128x1024xbf16> to vector<128x128xbf16>
    %cst_31 = arith.constant dense<0.000000e+00> : vector<1x128xf32>
    %53 = tpu.matmul %20, %52, %cst_31 {dimension_numbers = #tpu.dot_dimension_numbers<[1], [0], [0], [1], [0, 0, 1, 1], [], []>} : vector<1x128xbf16>, vector<128x128xbf16>, vector<1x128xf32> -> vector<1x128xf32>
    %54 = vector.broadcast %21 : f32 to vector<1x128xf32>
    %55 = arith.addf %53, %54 : vector<1x128xf32>
    %c6 = arith.constant 6 : index
    %c0_32 = arith.constant 0 : index
    %56 = vector.load %arg9[%c6, %c0_32] : memref<8x128xf32, #tpu.memory_space<vmem>>, vector<1x128xf32>
    tpu.vector_store %arg9[%c6, %c0_32], %55 {strides = array<i32>} : memref<8x128xf32, #tpu.memory_space<vmem>>, vector<1x128xf32>,
    %57 = vector.extract_strided_slice %19 {offsets = [0, 896], sizes = [128, 128], strides = [1, 1]} : vector<128x1024xbf16> to vector<128x128xbf16>
    %cst_33 = arith.constant dense<0.000000e+00> : vector<1x128xf32>
    %58 = tpu.matmul %20, %57, %cst_33 {dimension_numbers = #tpu.dot_dimension_numbers<[1], [0], [0], [1], [0, 0, 1, 1], [], []>} : vector<1x128xbf16>, vector<128x128xbf16>, vector<1x128xf32> -> vector<1x128xf32>
    %59 = vector.broadcast %21 : f32 to vector<1x128xf32>
    %60 = arith.addf %58, %59 : vector<1x128xf32>
    %c7 = arith.constant 7 : index
    %c0_34 = arith.constant 0 : index
    %61 = vector.load %arg9[%c7, %c0_34] : memref<8x128xf32, #tpu.memory_space<vmem>>, vector<1x128xf32>
    tpu.vector_store %arg9[%c7, %c0_34], %60 {strides = array<i32>} : memref<8x128xf32, #tpu.memory_space<vmem>>, vector<1x128xf32>,
    return
  }
  func.func @transform_0(%arg0: i32, %arg1: i32) -> (i32, i32, i32, i32) {
    %c0_i32 = arith.constant 0 : i32
    %c0_i32_0 = arith.constant 0 : i32
    %c0_i32_1 = arith.constant 0 : i32
    return %arg0, %arg1, %c0_i32, %c0_i32_0 : i32, i32, i32, i32
  }
  func.func @transform_1(%arg0: i32, %arg1: i32) -> (i32, i32) {
    %c0_i32 = arith.constant 0 : i32
    %c0_i32_0 = arith.constant 0 : i32
    %c0_i32_1 = arith.constant 0 : i32
    return %c0_i32, %c0_i32_0 : i32, i32
  }
  func.func @transform_2(%arg0: i32, %arg1: i32) -> (i32, i32) {
    %c0_i32 = arith.constant 0 : i32
    %c0_i32_0 = arith.constant 0 : i32
    %c0_i32_1 = arith.constant 0 : i32
    return %c0_i32, %c0_i32_0 : i32, i32
  }
  func.func @transform_3(%arg0: i32, %arg1: i32) -> (i32, i32) {
    %c0_i32 = arith.constant 0 : i32
    %c0_i32_0 = arith.constant 0 : i32
    %c0_i32_1 = arith.constant 0 : i32
    return %c0_i32, %c0_i32_0 : i32, i32
  }
  func.func @transform_4(%arg0: i32, %arg1: i32) -> (i32, i32) {
    %c0_i32 = arith.constant 0 : i32
    %c0_i32_0 = arith.constant 0 : i32
    %c0_i32_1 = arith.constant 0 : i32
    return %c0_i32, %c0_i32_0 : i32, i32
  }
  func.func @transform_5(%arg0: i32, %arg1: i32) -> (i32, i32) {
    %c0_i32 = arith.constant 0 : i32
    %c0_i32_0 = arith.constant 0 : i32
    %c0_i32_1 = arith.constant 0 : i32
    return %c0_i32, %c0_i32_0 : i32, i32
  }
  func.func @transform_6(%arg0: i32, %arg1: i32) -> (i32, i32) {
    %c0_i32 = arith.constant 0 : i32
    %c0_i32_0 = arith.constant 0 : i32
    %c0_i32_1 = arith.constant 0 : i32
    return %c0_i32, %c0_i32_0 : i32, i32
  }
  func.func @transform_7(%arg0: i32, %arg1: i32) -> (i32, i32) {
    %c0_i32 = arith.constant 0 : i32
    return %arg0, %arg1 : i32, i32
  }
}

</mosaic_0001>

<llo_original>
// kernel: tpu_custom_call.1
$region0: #{tpu_custom_call.1}
  #allocation0 [shape = 'u32[]', space=smem, size = 0x4, offset = 0x4, fixed_abs, tag = 'smem constant byte address 0x4 - core index']
  #allocation1 [shape = 'u32[72,128]{1,0:T(1,128)}', space=vmem, size = 0x9000, scoped, tag = 'internal scratch']
  #allocation2 [shape = 'f32[1,1]{1,0:T(1,128)S(6)}', space=smem, size = 0x200, scoped, tag = 'scoped memory for tpu_custom_call.1']
  %s0 = inlined_call_operand.hbm [shape: f32[1,1,112,1024], index: 0, kind: input, shape index: {}]
  %s1 = inlined_call_operand.vmem [shape: f32[128,112], index: 1, kind: input, shape index: {}]
  %s2 = inlined_call_operand.vmem [shape: f32[128,1], index: 2, kind: input, shape index: {}]
  %s3 = inlined_call_operand.vmem [shape: bf16[128,128], index: 3, kind: input, shape index: {}]
  %s4 = inlined_call_operand.vmem [shape: f32[128,1], index: 4, kind: input, shape index: {}]
  %s5 = inlined_call_operand.vmem [shape: bf16[1,128], index: 5, kind: input, shape index: {}]
  %s6 = inlined_call_operand.<no memory space> [shape: f32[1,1], index: 6, kind: input, shape index: {}]
  %s7 = inlined_call_operand.hbm [shape: f32[8,128], index: 7, kind: output, shape index: {}]
  %s8 = sld [smem:[#allocation0]]
  $region42: #{tpu_custom_call.1} parent=0
    _
  %s10 = ssub.s32 1, %s8
  %s11 = scalar_select 0, %s10, %s8
  %12 = sst [smem:[#allocation2]] %s6
  $region1: #{tpu_custom_call.1} parent=0
    #allocation3 [shape = 'u8[458752]{0}', space=vmem, size = 0x70000, scoped, tag = 'input window, operand 0, single buffered']
    #allocation4 [shape = 's32[1]{0}', space=sflag, size = 0x4, scoped, tag = 'scoped memory for tpu_custom_call.1']
    #allocation5 [shape = 's32[1]{0}', space=sflag, size = 0x4, scoped, tag = 'scoped memory for tpu_custom_call.1']
    #allocation6 [shape = 'u8[4096]{0}', space=vmem, size = 0x1000, scoped, tag = 'output window, operand 0, single buffered']
    %13 = vsyncpa [#allocation4], 0
    %14 = vsyncpa [#allocation5], 0
    // Predicated region
    $region2: #{tpu_custom_call.1} parent=1 // pred_check
      _
    $region3: #{tpu_custom_call.1} parent=1 // pred_check_branch
      %16 = sbr.rel (0) target = $region5
    $region4: #{tpu_custom_call.1} parent=1 // pred_region
      %18 = vsyncadd [#allocation4], 0
      %s19 = sshll.u32 %s0, 4
      %s20 = int_to_ptr.hbm [resolvable:$true] %s19
      %s21 = sshll.u32 [#allocation3], 4
      %s22 = int_to_ptr.vmem [resolvable:$true] %s21
      %27 = dma.hbm_to_vmem [thread:$0]  %s20, 14336, %s22, [#allocation4], 1024, 1024, 64
    $region5: #{tpu_custom_call.1} parent=1 // pred_fallthru
      _
    // Predicated region
    $region6: #{tpu_custom_call.1} parent=1 // pred_check
      _
    $region7: #{tpu_custom_call.1} parent=1 // pred_check_branch
      %29 = sbr.rel (0) target = $region9
    $region8: #{tpu_custom_call.1} parent=1 // pred_region
      _
    $region9: #{tpu_custom_call.1} parent=1 // pred_fallthru
      _
    // Predicated region
    $region10: #{tpu_custom_call.1} parent=1 // pred_check
      _
    $region11: #{tpu_custom_call.1} parent=1 // pred_check_branch
      %31 = sbr.rel (0) target = $region13
    $region12: #{tpu_custom_call.1} parent=1 // pred_region
      _
    $region13: #{tpu_custom_call.1} parent=1 // pred_fallthru
      _
    // Predicated region
    $region14: #{tpu_custom_call.1} parent=1 // pred_check
      _
    $region15: #{tpu_custom_call.1} parent=1 // pred_check_branch
      %33 = sbr.rel (0) target = $region17
    $region16: #{tpu_custom_call.1} parent=1 // pred_region
      _
    $region17: #{tpu_custom_call.1} parent=1 // pred_fallthru
      _
    // Predicated region
    $region18: #{tpu_custom_call.1} parent=1 // pred_check
      _
    $region19: #{tpu_custom_call.1} parent=1 // pred_check_branch
      %35 = sbr.rel (0) target = $region21
    $region20: #{tpu_custom_call.1} parent=1 // pred_region
      _
    $region21: #{tpu_custom_call.1} parent=1 // pred_fallthru
      _
    // Predicated region
    $region22: #{tpu_custom_call.1} parent=1 // pred_check
      _
    $region23: #{tpu_custom_call.1} parent=1 // pred_check_branch
      %37 = sbr.rel (0) target = $region25
    $region24: #{tpu_custom_call.1} parent=1 // pred_region
      _
    $region25: #{tpu_custom_call.1} parent=1 // pred_fallthru
      _
    // Predicated region
    $region26: #{tpu_custom_call.1} parent=1 // pred_check
      _
    $region27: #{tpu_custom_call.1} parent=1 // pred_check_branch
      %39 = sbr.rel (0) target = $region29
    $region28: #{tpu_custom_call.1} parent=1 // pred_region
      _
    $region29: #{tpu_custom_call.1} parent=1 // pred_fallthru
      _
    // Predicated region
    $region30: #{tpu_custom_call.1} parent=1 // pred_check
      _
    $region31: #{tpu_custom_call.1} parent=1 // pred_check_branch
      %41 = sbr.rel (0) target = $region33
    $region32: #{tpu_custom_call.1} parent=1 // pred_region
      %43 = dma.done [#allocation4], 14336
    $region33: #{tpu_custom_call.1} parent=1 // pred_fallthru
      _
    %v44 = vld [vmem:[#allocation3] sm:$0xff]
    %v45 = vld [vmem:[#allocation3 + $0x8] sm:$0xff]
    %v46 = vld [vmem:[#allocation3 + $0x10] sm:$0xff]
    %v47 = vld [vmem:[#allocation3 + $0x18] sm:$0xff]
    %v48 = vld [vmem:[#allocation3 + $0x20] sm:$0xff]
    %v49 = vld [vmem:[#allocation3 + $0x28] sm:$0xff]
    %v50 = vld [vmem:[#allocation3 + $0x30] sm:$0xff]
    %v51 = vld [vmem:[#allocation3 + $0x38] sm:$0xff]
    %v52 = vld [vmem:[#allocation3 + $0x40] sm:$0xff]
    %v53 = vld [vmem:[#allocation3 + $0x48] sm:$0xff]
    %v54 = vld [vmem:[#allocation3 + $0x50] sm:$0xff]
    %v55 = vld [vmem:[#allocation3 + $0x58] sm:$0xff]
    %v56 = vld [vmem:[#allocation3 + $0x60] sm:$0xff]
    %v57 = vld [vmem:[#allocation3 + $0x68] sm:$0xff]
    %v58 = vld [vmem:[#allocation3 + $0x70] sm:$0xff]
    %v59 = vld [vmem:[#allocation3 + $0x78] sm:$0xff]
    %v60 = vld [vmem:[#allocation3 + $0x80] sm:$0xff]
    %v61 = vld [vmem:[#allocation3 + $0x88] sm:$0xff]
    %v62 = vld [vmem:[#allocation3 + $0x90] sm:$0xff]
    %v63 = vld [vmem:[#allocation3 + $0x98] sm:$0xff]
    %v64 = vld [vmem:[#allocation3 + $0xa0] sm:$0xff]
    %v65 = vld [vmem:[#allocation3 + $0xa8] sm:$0xff]
    %v66 = vld [vmem:[#allocation3 + $0xb0] sm:$0xff]
    %v67 = vld [vmem:[#allocation3 + $0xb8] sm:$0xff]
    %v68 = vld [vmem:[#allocation3 + $0xc0] sm:$0xff]
    %v69 = vld [vmem:[#allocation3 + $0xc8] sm:$0xff]
    %v70 = vld [vmem:[#allocation3 + $0xd0] sm:$0xff]
    %v71 = vld [vmem:[#allocation3 + $0xd8] sm:$0xff]
    %v72 = vld [vmem:[#allocation3 + $0xe0] sm:$0xff]
    %v73 = vld [vmem:[#allocation3 + $0xe8] sm:$0xff]
    %v74 = vld [vmem:[#allocation3 + $0xf0] sm:$0xff]
    %v75 = vld [vmem:[#allocation3 + $0xf8] sm:$0xff]
    %v76 = vld [vmem:[#allocation3 + $0x100] sm:$0xff]
    %v77 = vld [vmem:[#allocation3 + $0x108] sm:$0xff]
    %v78 = vld [vmem:[#allocation3 + $0x110] sm:$0xff]
    %v79 = vld [vmem:[#allocation3 + $0x118] sm:$0xff]
    %v80 = vld [vmem:[#allocation3 + $0x120] sm:$0xff]
    %v81 = vld [vmem:[#allocation3 + $0x128] sm:$0xff]
    %v82 = vld [vmem:[#allocation3 + $0x130] sm:$0xff]
    %v83 = vld [vmem:[#allocation3 + $0x138] sm:$0xff]
    %v84 = vld [vmem:[#allocation3 + $0x140] sm:$0xff]
    %v85 = vld [vmem:[#allocation3 + $0x148] sm:$0xff]
    %v86 = vld [vmem:[#allocation3 + $0x150] sm:$0xff]
    %v87 = vld [vmem:[#allocation3 + $0x158] sm:$0xff]
    %v88 = vld [vmem:[#allocation3 + $0x160] sm:$0xff]
    %v89 = vld [vmem:[#allocation3 + $0x168] sm:$0xff]
    %v90 = vld [vmem:[#allocation3 + $0x170] sm:$0xff]
    %v91 = vld [vmem:[#allocation3 + $0x178] sm:$0xff]
    %v92 = vld [vmem:[#allocation3 + $0x180] sm:$0xff]
    %v93 = vld [vmem:[#allocation3 + $0x188] sm:$0xff]
    %v94 = vld [vmem:[#allocation3 + $0x190] sm:$0xff]
    %v95 = vld [vmem:[#allocation3 + $0x198] sm:$0xff]
    %v96 = vld [vmem:[#allocation3 + $0x1a0] sm:$0xff]
    %v97 = vld [vmem:[#allocation3 + $0x1a8] sm:$0xff]
    %v98 = vld [vmem:[#allocation3 + $0x1b0] sm:$0xff]
    %v99 = vld [vmem:[#allocation3 + $0x1b8] sm:$0xff]
    %v100 = vld [vmem:[#allocation3 + $0x1c0] sm:$0xff]
    %v101 = vld [vmem:[#allocation3 + $0x1c8] sm:$0xff]
    %v102 = vld [vmem:[#allocation3 + $0x1d0] sm:$0xff]
    %v103 = vld [vmem:[#allocation3 + $0x1d8] sm:$0xff]
    %v104 = vld [vmem:[#allocation3 + $0x1e0] sm:$0xff]
    %v105 = vld [vmem:[#allocation3 + $0x1e8] sm:$0xff]
    %v106 = vld [vmem:[#allocation3 + $0x1f0] sm:$0xff]
    %v107 = vld [vmem:[#allocation3 + $0x1f8] sm:$0xff]
    %v108 = vld [vmem:[#allocation3 + $0x200] sm:$0xff]
    %v109 = vld [vmem:[#allocation3 + $0x208] sm:$0xff]
    %v110 = vld [vmem:[#allocation3 + $0x210] sm:$0xff]
    %v111 = vld [vmem:[#allocation3 + $0x218] sm:$0xff]
    %v112 = vld [vmem:[#allocation3 + $0x220] sm:$0xff]
    %v113 = vld [vmem:[#allocation3 + $0x228] sm:$0xff]
    %v114 = vld [vmem:[#allocation3 + $0x230] sm:$0xff]
    %v115 = vld [vmem:[#allocation3 + $0x238] sm:$0xff]
    %v116 = vld [vmem:[#allocation3 + $0x240] sm:$0xff]
    %v117 = vld [vmem:[#allocation3 + $0x248] sm:$0xff]
    %v118 = vld [vmem:[#allocation3 + $0x250] sm:$0xff]
    %v119 = vld [vmem:[#allocation3 + $0x258] sm:$0xff]
    %v120 = vld [vmem:[#allocation3 + $0x260] sm:$0xff]
    %v121 = vld [vmem:[#allocation3 + $0x268] sm:$0xff]
    %v122 = vld [vmem:[#allocation3 + $0x270] sm:$0xff]
    %v123 = vld [vmem:[#allocation3 + $0x278] sm:$0xff]
    %v124 = vld [vmem:[#allocation3 + $0x280] sm:$0xff]
    %v125 = vld [vmem:[#allocation3 + $0x288] sm:$0xff]
    %v126 = vld [vmem:[#allocation3 + $0x290] sm:$0xff]
    %v127 = vld [vmem:[#allocation3 + $0x298] sm:$0xff]
    %v128 = vld [vmem:[#allocation3 + $0x2a0] sm:$0xff]
    %v129 = vld [vmem:[#allocation3 + $0x2a8] sm:$0xff]
    %v130 = vld [vmem:[#allocation3 + $0x2b0] sm:$0xff]
    %v131 = vld [vmem:[#allocation3 + $0x2b8] sm:$0xff]
    %v132 = vld [vmem:[#allocation3 + $0x2c0] sm:$0xff]
    %v133 = vld [vmem:[#allocation3 + $0x2c8] sm:$0xff]
    %v134 = vld [vmem:[#allocation3 + $0x2d0] sm:$0xff]
    %v135 = vld [vmem:[#allocation3 + $0x2d8] sm:$0xff]
    %v136 = vld [vmem:[#allocation3 + $0x2e0] sm:$0xff]
    %v137 = vld [vmem:[#allocation3 + $0x2e8] sm:$0xff]
    %v138 = vld [vmem:[#allocation3 + $0x2f0] sm:$0xff]
    %v139 = vld [vmem:[#allocation3 + $0x2f8] sm:$0xff]
    %v140 = vld [vmem:[#allocation3 + $0x300] sm:$0xff]
    %v141 = vld [vmem:[#allocation3 + $0x308] sm:$0xff]
    %v142 = vld [vmem:[#allocation3 + $0x310] sm:$0xff]
    %v143 = vld [vmem:[#allocation3 + $0x318] sm:$0xff]
    %v144 = vld [vmem:[#allocation3 + $0x320] sm:$0xff]
    %v145 = vld [vmem:[#allocation3 + $0x328] sm:$0xff]
    %v146 = vld [vmem:[#allocation3 + $0x330] sm:$0xff]
    %v147 = vld [vmem:[#allocation3 + $0x338] sm:$0xff]
    %v148 = vld [vmem:[#allocation3 + $0x340] sm:$0xff]
    %v149 = vld [vmem:[#allocation3 + $0x348] sm:$0xff]
    %v150 = vld [vmem:[#allocation3 + $0x350] sm:$0xff]
    %v151 = vld [vmem:[#allocation3 + $0x358] sm:$0xff]
    %v152 = vld [vmem:[#allocation3 + $0x360] sm:$0xff]
    %v153 = vld [vmem:[#allocation3 + $0x368] sm:$0xff]
    %v154 = vld [vmem:[#allocation3 + $0x370] sm:$0xff]
    %v155 = vld [vmem:[#allocation3 + $0x378] sm:$0xff]
    %v156 = vld [vmem:[%s1] sm:$0xff]
    %v157 = vld [vmem:[%s1 + $0x8] sm:$0xff]
    %v158 = vld [vmem:[%s1 + $0x10] sm:$0xff]
    %v159 = vld [vmem:[%s1 + $0x18] sm:$0xff]
    %v160 = vld [vmem:[%s1 + $0x20] sm:$0xff]
    %v161 = vld [vmem:[%s1 + $0x28] sm:$0xff]
    %v162 = vld [vmem:[%s1 + $0x30] sm:$0xff]
    %v163 = vld [vmem:[%s1 + $0x38] sm:$0xff]
    %v164 = vld [vmem:[%s1 + $0x40] sm:$0xff]
    %v165 = vld [vmem:[%s1 + $0x48] sm:$0xff]
    %v166 = vld [vmem:[%s1 + $0x50] sm:$0xff]
    %v167 = vld [vmem:[%s1 + $0x58] sm:$0xff]
    %v168 = vld [vmem:[%s1 + $0x60] sm:$0xff]
    %v169 = vld [vmem:[%s1 + $0x68] sm:$0xff]
    %v170 = vld [vmem:[%s1 + $0x70] sm:$0xff]
    %v171 = vld [vmem:[%s1 + $0x78] sm:$0xff]
    %v172 = vld [vmem:[%s2] sm:$0xff]
    %v173 = vld [vmem:[%s2 + $0x8] sm:$0xff]
    %v174 = vld [vmem:[%s2 + $0x10] sm:$0xff]
    %v175 = vld [vmem:[%s2 + $0x18] sm:$0xff]
    %v176 = vld [vmem:[%s2 + $0x20] sm:$0xff]
    %v177 = vld [vmem:[%s2 + $0x28] sm:$0xff]
    %v178 = vld [vmem:[%s2 + $0x30] sm:$0xff]
    %v179 = vld [vmem:[%s2 + $0x38] sm:$0xff]
    %v180 = vld [vmem:[%s2 + $0x40] sm:$0xff]
    %v181 = vld [vmem:[%s2 + $0x48] sm:$0xff]
    %v182 = vld [vmem:[%s2 + $0x50] sm:$0xff]
    %v183 = vld [vmem:[%s2 + $0x58] sm:$0xff]
    %v184 = vld [vmem:[%s2 + $0x60] sm:$0xff]
    %v185 = vld [vmem:[%s2 + $0x68] sm:$0xff]
    %v186 = vld [vmem:[%s2 + $0x70] sm:$0xff]
    %v187 = vld [vmem:[%s2 + $0x78] sm:$0xff]
    %189 = vset.pattern.permute.xlu0 0
    %190 = vperm.xlu0 %189, %v172
    %v191 = vpop.permute.xlu0 %190
    %194 = vset.pattern.permute.xlu0 0
    %195 = vperm.xlu0 %194, %v173
    %v196 = vpop.permute.xlu0 %195
    %199 = vset.pattern.permute.xlu0 0
    %200 = vperm.xlu0 %199, %v174
    %v201 = vpop.permute.xlu0 %200
    %204 = vset.pattern.permute.xlu0 0
    %205 = vperm.xlu0 %204, %v175
    %v206 = vpop.permute.xlu0 %205
    %209 = vset.pattern.permute.xlu0 0
    %210 = vperm.xlu0 %209, %v176
    %v211 = vpop.permute.xlu0 %210
    %214 = vset.pattern.permute.xlu0 0
    %215 = vperm.xlu0 %214, %v177
    %v216 = vpop.permute.xlu0 %215
    %219 = vset.pattern.permute.xlu0 0
    %220 = vperm.xlu0 %219, %v178
    %v221 = vpop.permute.xlu0 %220
    %224 = vset.pattern.permute.xlu0 0
    %225 = vperm.xlu0 %224, %v179
    %v226 = vpop.permute.xlu0 %225
    %229 = vset.pattern.permute.xlu0 0
    %230 = vperm.xlu0 %229, %v180
    %v231 = vpop.permute.xlu0 %230
    %234 = vset.pattern.permute.xlu0 0
    %235 = vperm.xlu0 %234, %v181
    %v236 = vpop.permute.xlu0 %235
    %239 = vset.pattern.permute.xlu0 0
    %240 = vperm.xlu0 %239, %v182
    %v241 = vpop.permute.xlu0 %240
    %244 = vset.pattern.permute.xlu0 0
    %245 = vperm.xlu0 %244, %v183
    %v246 = vpop.permute.xlu0 %245
    %249 = vset.pattern.permute.xlu0 0
    %250 = vperm.xlu0 %249, %v184
    %v251 = vpop.permute.xlu0 %250
    %254 = vset.pattern.permute.xlu0 0
    %255 = vperm.xlu0 %254, %v185
    %v256 = vpop.permute.xlu0 %255
    %259 = vset.pattern.permute.xlu0 0
    %260 = vperm.xlu0 %259, %v186
    %v261 = vpop.permute.xlu0 %260
    %264 = vset.pattern.permute.xlu0 0
    %265 = vperm.xlu0 %264, %v187
    %v266 = vpop.permute.xlu0 %265
    %vm268 = vcmask 916480
    %v270 = vsel %vm268, %v156, 0
    %v273 = vsel %vm268, %v157, 0
    %v276 = vsel %vm268, %v158, 0
    %v279 = vsel %vm268, %v159, 0
    %v282 = vsel %vm268, %v160, 0
    %v285 = vsel %vm268, %v161, 0
    %v288 = vsel %vm268, %v162, 0
    %v291 = vsel %vm268, %v163, 0
    %v294 = vsel %vm268, %v164, 0
    %v297 = vsel %vm268, %v165, 0
    %v300 = vsel %vm268, %v166, 0
    %v303 = vsel %vm268, %v167, 0
    %v306 = vsel %vm268, %v168, 0
    %v309 = vsel %vm268, %v169, 0
    %v312 = vsel %vm268, %v170, 0
    %v315 = vsel %vm268, %v171, 0
    %317 = vmatpush.msra.mxu0 0.0
    %318 = vmatpush.msra.mxu0 0.0
    %319 = vmatpush.msra.mxu0 %v148
    %320 = vmatpush.msra.mxu0 %v140
    %321 = vmatpush.msra.mxu0 %v132
    %322 = vmatpush.msra.mxu0 %v124
    %323 = vmatpush.msra.mxu0 %v116
    %324 = vmatpush.msra.mxu0 %v108
    %325 = vmatpush.msra.mxu0 %v100
    %326 = vmatpush.msra.mxu0 %v92
    %327 = vmatpush.msra.mxu0 %v84
    %328 = vmatpush.msra.mxu0 %v76
    %329 = vmatpush.msra.mxu0 %v68
    %330 = vmatpush.msra.mxu0 %v60
    %331 = vmatpush.msra.mxu0 %v52
    %332 = vmatpush.msra.mxu0 %v44
    %333 = vmatmul.f32.gmra.mxu0 %v270
    %v334 = vpop.f32.mrf.mxu0
    %v335 = vadd.f32 %v191, %v334
    %336 = vmatmul.f32.gmra.mxu0 %v273
    %v337 = vpop.f32.mrf.mxu0
    %v338 = vadd.f32 %v196, %v337
    %339 = vmatmul.f32.gmra.mxu0 %v276
    %v340 = vpop.f32.mrf.mxu0
    %v341 = vadd.f32 %v201, %v340
    %342 = vmatmul.f32.gmra.mxu0 %v279
    %v343 = vpop.f32.mrf.mxu0
    %v344 = vadd.f32 %v206, %v343
    %345 = vmatmul.f32.gmra.mxu0 %v282
    %v346 = vpop.f32.mrf.mxu0
    %v347 = vadd.f32 %v211, %v346
    %348 = vmatmul.f32.gmra.mxu0 %v285
    %v349 = vpop.f32.mrf.mxu0
    %v350 = vadd.f32 %v216, %v349
    %351 = vmatmul.f32.gmra.mxu0 %v288
    %v352 = vpop.f32.mrf.mxu0
    %v353 = vadd.f32 %v221, %v352
    %354 = vmatmul.f32.gmra.mxu0 %v291
    %v355 = vpop.f32.mrf.mxu0
    %v356 = vadd.f32 %v226, %v355
    %357 = vmatmul.f32.gmra.mxu0 %v294
    %v358 = vpop.f32.mrf.mxu0
    %v359 = vadd.f32 %v231, %v358
    %360 = vmatmul.f32.gmra.mxu0 %v297
    %v361 = vpop.f32.mrf.mxu0
    %v362 = vadd.f32 %v236, %v361
    %363 = vmatmul.f32.gmra.mxu0 %v300
    %v364 = vpop.f32.mrf.mxu0
    %v365 = vadd.f32 %v241, %v364
    %366 = vmatmul.f32.gmra.mxu0 %v303
    %v367 = vpop.f32.mrf.mxu0
    %v368 = vadd.f32 %v246, %v367
    %369 = vmatmul.f32.gmra.mxu0 %v306
    %v370 = vpop.f32.mrf.mxu0
    %v371 = vadd.f32 %v251, %v370
    %372 = vmatmul.f32.gmra.mxu0 %v309
    %v373 = vpop.f32.mrf.mxu0
    %v374 = vadd.f32 %v256, %v373
    %375 = vmatmul.f32.gmra.mxu0 %v312
    %v376 = vpop.f32.mrf.mxu0
    %v377 = vadd.f32 %v261, %v376
    %378 = vmatmul.f32.gmra.mxu0 %v315
    %v379 = vpop.f32.mrf.mxu0
    %v380 = vadd.f32 %v266, %v379
    %381 = vdwg.mxu0
    %382 = vmatpush.msra.mxu0 0.0
    %383 = vmatpush.msra.mxu0 0.0
    %384 = vmatpush.msra.mxu0 %v149
    %385 = vmatpush.msra.mxu0 %v141
    %386 = vmatpush.msra.mxu0 %v133
    %387 = vmatpush.msra.mxu0 %v125
    %388 = vmatpush.msra.mxu0 %v117
    %389 = vmatpush.msra.mxu0 %v109
    %390 = vmatpush.msra.mxu0 %v101
    %391 = vmatpush.msra.mxu0 %v93
    %392 = vmatpush.msra.mxu0 %v85
    %393 = vmatpush.msra.mxu0 %v77
    %394 = vmatpush.msra.mxu0 %v69
    %395 = vmatpush.msra.mxu0 %v61
    %396 = vmatpush.msra.mxu0 %v53
    %397 = vmatpush.msra.mxu0 %v45
    %398 = vmatmul.f32.gmra.mxu0 %v270
    %v399 = vpop.f32.mrf.mxu0
    %v400 = vadd.f32 %v191, %v399
    %401 = vmatmul.f32.gmra.mxu0 %v273
    %v402 = vpop.f32.mrf.mxu0
    %v403 = vadd.f32 %v196, %v402
    %404 = vmatmul.f32.gmra.mxu0 %v276
    %v405 = vpop.f32.mrf.mxu0
    %v406 = vadd.f32 %v201, %v405
    %407 = vmatmul.f32.gmra.mxu0 %v279
    %v408 = vpop.f32.mrf.mxu0
    %v409 = vadd.f32 %v206, %v408
    %410 = vmatmul.f32.gmra.mxu0 %v282
    %v411 = vpop.f32.mrf.mxu0
    %v412 = vadd.f32 %v211, %v411
    %413 = vmatmul.f32.gmra.mxu0 %v285
    %v414 = vpop.f32.mrf.mxu0
    %v415 = vadd.f32 %v216, %v414
    %416 = vmatmul.f32.gmra.mxu0 %v288
    %v417 = vpop.f32.mrf.mxu0
    %v418 = vadd.f32 %v221, %v417
    %419 = vmatmul.f32.gmra.mxu0 %v291
    %v420 = vpop.f32.mrf.mxu0
    %v421 = vadd.f32 %v226, %v420
    %422 = vmatmul.f32.gmra.mxu0 %v294
    %v423 = vpop.f32.mrf.mxu0
    %v424 = vadd.f32 %v231, %v423
    %425 = vmatmul.f32.gmra.mxu0 %v297
    %v426 = vpop.f32.mrf.mxu0
    %v427 = vadd.f32 %v236, %v426
    %428 = vmatmul.f32.gmra.mxu0 %v300
    %v429 = vpop.f32.mrf.mxu0
    %v430 = vadd.f32 %v241, %v429
    %431 = vmatmul.f32.gmra.mxu0 %v303
    %v432 = vpop.f32.mrf.mxu0
    %v433 = vadd.f32 %v246, %v432
    %434 = vmatmul.f32.gmra.mxu0 %v306
    %v435 = vpop.f32.mrf.mxu0
    %v436 = vadd.f32 %v251, %v435
    %437 = vmatmul.f32.gmra.mxu0 %v309
    %v438 = vpop.f32.mrf.mxu0
    %v439 = vadd.f32 %v256, %v438
    %440 = vmatmul.f32.gmra.mxu0 %v312
    %v441 = vpop.f32.mrf.mxu0
    %v442 = vadd.f32 %v261, %v441
    %443 = vmatmul.f32.gmra.mxu0 %v315
    %v444 = vpop.f32.mrf.mxu0
    %v445 = vadd.f32 %v266, %v444
    %446 = vdwg.mxu0
    %447 = vmatpush.msra.mxu0 0.0
    %448 = vmatpush.msra.mxu0 0.0
    %449 = vmatpush.msra.mxu0 %v150
    %450 = vmatpush.msra.mxu0 %v142
    %451 = vmatpush.msra.mxu0 %v134
    %452 = vmatpush.msra.mxu0 %v126
    %453 = vmatpush.msra.mxu0 %v118
    %454 = vmatpush.msra.mxu0 %v110
    %455 = vmatpush.msra.mxu0 %v102
    %456 = vmatpush.msra.mxu0 %v94
    %457 = vmatpush.msra.mxu0 %v86
    %458 = vmatpush.msra.mxu0 %v78
    %459 = vmatpush.msra.mxu0 %v70
    %460 = vmatpush.msra.mxu0 %v62
    %461 = vmatpush.msra.mxu0 %v54
    %462 = vmatpush.msra.mxu0 %v46
    %463 = vmatmul.f32.gmra.mxu0 %v270
    %v464 = vpop.f32.mrf.mxu0
    %v465 = vadd.f32 %v191, %v464
    %466 = vmatmul.f32.gmra.mxu0 %v273
    %v467 = vpop.f32.mrf.mxu0
    %v468 = vadd.f32 %v196, %v467
    %469 = vmatmul.f32.gmra.mxu0 %v276
    %v470 = vpop.f32.mrf.mxu0
    %v471 = vadd.f32 %v201, %v470
    %472 = vmatmul.f32.gmra.mxu0 %v279
    %v473 = vpop.f32.mrf.mxu0
    %v474 = vadd.f32 %v206, %v473
    %475 = vmatmul.f32.gmra.mxu0 %v282
    %v476 = vpop.f32.mrf.mxu0
    %v477 = vadd.f32 %v211, %v476
    %478 = vmatmul.f32.gmra.mxu0 %v285
    %v479 = vpop.f32.mrf.mxu0
    %v480 = vadd.f32 %v216, %v479
    %481 = vmatmul.f32.gmra.mxu0 %v288
    %v482 = vpop.f32.mrf.mxu0
    %v483 = vadd.f32 %v221, %v482
    %484 = vmatmul.f32.gmra.mxu0 %v291
    %v485 = vpop.f32.mrf.mxu0
    %v486 = vadd.f32 %v226, %v485
    %487 = vmatmul.f32.gmra.mxu0 %v294
    %v488 = vpop.f32.mrf.mxu0
    %v489 = vadd.f32 %v231, %v488
    %490 = vmatmul.f32.gmra.mxu0 %v297
    %v491 = vpop.f32.mrf.mxu0
    %v492 = vadd.f32 %v236, %v491
    %493 = vmatmul.f32.gmra.mxu0 %v300
    %v494 = vpop.f32.mrf.mxu0
    %v495 = vadd.f32 %v241, %v494
    %496 = vmatmul.f32.gmra.mxu0 %v303
    %v497 = vpop.f32.mrf.mxu0
    %v498 = vadd.f32 %v246, %v497
    %499 = vmatmul.f32.gmra.mxu0 %v306
    %v500 = vpop.f32.mrf.mxu0
    %v501 = vadd.f32 %v251, %v500
    %502 = vmatmul.f32.gmra.mxu0 %v309
    %v503 = vpop.f32.mrf.mxu0
    %v504 = vadd.f32 %v256, %v503
    %505 = vmatmul.f32.gmra.mxu0 %v312
    %v506 = vpop.f32.mrf.mxu0
    %v507 = vadd.f32 %v261, %v506
    %508 = vmatmul.f32.gmra.mxu0 %v315
    %v509 = vpop.f32.mrf.mxu0
    %v510 = vadd.f32 %v266, %v509
    %511 = vdwg.mxu0
    %512 = vmatpush.msra.mxu0 0.0
    %513 = vmatpush.msra.mxu0 0.0
    %514 = vmatpush.msra.mxu0 %v151
    %515 = vmatpush.msra.mxu0 %v143
    %516 = vmatpush.msra.mxu0 %v135
    %517 = vmatpush.msra.mxu0 %v127
    %518 = vmatpush.msra.mxu0 %v119
    %519 = vmatpush.msra.mxu0 %v111
    %520 = vmatpush.msra.mxu0 %v103
    %521 = vmatpush.msra.mxu0 %v95
    %522 = vmatpush.msra.mxu0 %v87
    %523 = vmatpush.msra.mxu0 %v79
    %524 = vmatpush.msra.mxu0 %v71
    %525 = vmatpush.msra.mxu0 %v63
    %526 = vmatpush.msra.mxu0 %v55
    %527 = vmatpush.msra.mxu0 %v47
    %528 = vmatmul.f32.gmra.mxu0 %v270
    %v529 = vpop.f32.mrf.mxu0
    %v530 = vadd.f32 %v191, %v529
    %531 = vmatmul.f32.gmra.mxu0 %v273
    %v532 = vpop.f32.mrf.mxu0
    %v533 = vadd.f32 %v196, %v532
    %534 = vmatmul.f32.gmra.mxu0 %v276
    %v535 = vpop.f32.mrf.mxu0
    %v536 = vadd.f32 %v201, %v535
    %537 = vmatmul.f32.gmra.mxu0 %v279
    %v538 = vpop.f32.mrf.mxu0
    %v539 = vadd.f32 %v206, %v538
    %540 = vmatmul.f32.gmra.mxu0 %v282
    %v541 = vpop.f32.mrf.mxu0
    %v542 = vadd.f32 %v211, %v541
    %543 = vmatmul.f32.gmra.mxu0 %v285
    %v544 = vpop.f32.mrf.mxu0
    %v545 = vadd.f32 %v216, %v544
    %546 = vmatmul.f32.gmra.mxu0 %v288
    %v547 = vpop.f32.mrf.mxu0
    %v548 = vadd.f32 %v221, %v547
    %549 = vmatmul.f32.gmra.mxu0 %v291
    %v550 = vpop.f32.mrf.mxu0
    %v551 = vadd.f32 %v226, %v550
    %552 = vmatmul.f32.gmra.mxu0 %v294
    %v553 = vpop.f32.mrf.mxu0
    %v554 = vadd.f32 %v231, %v553
    %555 = vmatmul.f32.gmra.mxu0 %v297
    %v556 = vpop.f32.mrf.mxu0
    %v557 = vadd.f32 %v236, %v556
    %558 = vmatmul.f32.gmra.mxu0 %v300
    %v559 = vpop.f32.mrf.mxu0
    %v560 = vadd.f32 %v241, %v559
    %561 = vmatmul.f32.gmra.mxu0 %v303
    %v562 = vpop.f32.mrf.mxu0
    %v563 = vadd.f32 %v246, %v562
    %564 = vmatmul.f32.gmra.mxu0 %v306
    %v565 = vpop.f32.mrf.mxu0
    %v566 = vadd.f32 %v251, %v565
    %567 = vmatmul.f32.gmra.mxu0 %v309
    %v568 = vpop.f32.mrf.mxu0
    %v569 = vadd.f32 %v256, %v568
    %570 = vmatmul.f32.gmra.mxu0 %v312
    %v571 = vpop.f32.mrf.mxu0
    %v572 = vadd.f32 %v261, %v571
    %573 = vmatmul.f32.gmra.mxu0 %v315
    %v574 = vpop.f32.mrf.mxu0
    %v575 = vadd.f32 %v266, %v574
    %576 = vdwg.mxu0
    %577 = vmatpush.msra.mxu0 0.0
    %578 = vmatpush.msra.mxu0 0.0
    %579 = vmatpush.msra.mxu0 %v152
    %580 = vmatpush.msra.mxu0 %v144
    %581 = vmatpush.msra.mxu0 %v136
    %582 = vmatpush.msra.mxu0 %v128
    %583 = vmatpush.msra.mxu0 %v120
    %584 = vmatpush.msra.mxu0 %v112
    %585 = vmatpush.msra.mxu0 %v104
    %586 = vmatpush.msra.mxu0 %v96
    %587 = vmatpush.msra.mxu0 %v88
    %588 = vmatpush.msra.mxu0 %v80
    %589 = vmatpush.msra.mxu0 %v72
    %590 = vmatpush.msra.mxu0 %v64
    %591 = vmatpush.msra.mxu0 %v56
    %592 = vmatpush.msra.mxu0 %v48
    %593 = vmatmul.f32.gmra.mxu0 %v270
    %v594 = vpop.f32.mrf.mxu0
    %v595 = vadd.f32 %v191, %v594
    %596 = vmatmul.f32.gmra.mxu0 %v273
    %v597 = vpop.f32.mrf.mxu0
    %v598 = vadd.f32 %v196, %v597
    %599 = vmatmul.f32.gmra.mxu0 %v276
    %v600 = vpop.f32.mrf.mxu0
    %v601 = vadd.f32 %v201, %v600
    %602 = vmatmul.f32.gmra.mxu0 %v279
    %v603 = vpop.f32.mrf.mxu0
    %v604 = vadd.f32 %v206, %v603
    %605 = vmatmul.f32.gmra.mxu0 %v282
    %v606 = vpop.f32.mrf.mxu0
    %v607 = vadd.f32 %v211, %v606
    %608 = vmatmul.f32.gmra.mxu0 %v285
    %v609 = vpop.f32.mrf.mxu0
    %v610 = vadd.f32 %v216, %v609
    %611 = vmatmul.f32.gmra.mxu0 %v288
    %v612 = vpop.f32.mrf.mxu0
    %v613 = vadd.f32 %v221, %v612
    %614 = vmatmul.f32.gmra.mxu0 %v291
    %v615 = vpop.f32.mrf.mxu0
    %v616 = vadd.f32 %v226, %v615
    %617 = vmatmul.f32.gmra.mxu0 %v294
    %v618 = vpop.f32.mrf.mxu0
    %v619 = vadd.f32 %v231, %v618
    %620 = vmatmul.f32.gmra.mxu0 %v297
    %v621 = vpop.f32.mrf.mxu0
    %v622 = vadd.f32 %v236, %v621
    %623 = vmatmul.f32.gmra.mxu0 %v300
    %v624 = vpop.f32.mrf.mxu0
    %v625 = vadd.f32 %v241, %v624
    %626 = vmatmul.f32.gmra.mxu0 %v303
    %v627 = vpop.f32.mrf.mxu0
    %v628 = vadd.f32 %v246, %v627
    %629 = vmatmul.f32.gmra.mxu0 %v306
    %v630 = vpop.f32.mrf.mxu0
    %v631 = vadd.f32 %v251, %v630
    %632 = vmatmul.f32.gmra.mxu0 %v309
    %v633 = vpop.f32.mrf.mxu0
    %v634 = vadd.f32 %v256, %v633
    %635 = vmatmul.f32.gmra.mxu0 %v312
    %v636 = vpop.f32.mrf.mxu0
    %v637 = vadd.f32 %v261, %v636
    %638 = vmatmul.f32.gmra.mxu0 %v315
    %v639 = vpop.f32.mrf.mxu0
    %v640 = vadd.f32 %v266, %v639
    %641 = vdwg.mxu0
    %642 = vmatpush.msra.mxu0 0.0
    %643 = vmatpush.msra.mxu0 0.0
    %644 = vmatpush.msra.mxu0 %v153
    %645 = vmatpush.msra.mxu0 %v145
    %646 = vmatpush.msra.mxu0 %v137
    %647 = vmatpush.msra.mxu0 %v129
    %648 = vmatpush.msra.mxu0 %v121
    %649 = vmatpush.msra.mxu0 %v113
    %650 = vmatpush.msra.mxu0 %v105
    %651 = vmatpush.msra.mxu0 %v97
    %652 = vmatpush.msra.mxu0 %v89
    %653 = vmatpush.msra.mxu0 %v81
    %654 = vmatpush.msra.mxu0 %v73
    %655 = vmatpush.msra.mxu0 %v65
    %656 = vmatpush.msra.mxu0 %v57
    %657 = vmatpush.msra.mxu0 %v49
    %658 = vmatmul.f32.gmra.mxu0 %v270
    %v659 = vpop.f32.mrf.mxu0
    %v660 = vadd.f32 %v191, %v659
    %661 = vmatmul.f32.gmra.mxu0 %v273
    %v662 = vpop.f32.mrf.mxu0
    %v663 = vadd.f32 %v196, %v662
    %664 = vmatmul.f32.gmra.mxu0 %v276
    %v665 = vpop.f32.mrf.mxu0
    %v666 = vadd.f32 %v201, %v665
    %667 = vmatmul.f32.gmra.mxu0 %v279
    %v668 = vpop.f32.mrf.mxu0
    %v669 = vadd.f32 %v206, %v668
    %670 = vmatmul.f32.gmra.mxu0 %v282
    %v671 = vpop.f32.mrf.mxu0
    %v672 = vadd.f32 %v211, %v671
    %673 = vmatmul.f32.gmra.mxu0 %v285
    %v674 = vpop.f32.mrf.mxu0
    %v675 = vadd.f32 %v216, %v674
    %676 = vmatmul.f32.gmra.mxu0 %v288
    %v677 = vpop.f32.mrf.mxu0
    %v678 = vadd.f32 %v221, %v677
    %679 = vmatmul.f32.gmra.mxu0 %v291
    %v680 = vpop.f32.mrf.mxu0
    %v681 = vadd.f32 %v226, %v680
    %682 = vmatmul.f32.gmra.mxu0 %v294
    %v683 = vpop.f32.mrf.mxu0
    %v684 = vadd.f32 %v231, %v683
    %685 = vmatmul.f32.gmra.mxu0 %v297
    %v686 = vpop.f32.mrf.mxu0
    %v687 = vadd.f32 %v236, %v686
    %688 = vmatmul.f32.gmra.mxu0 %v300
    %v689 = vpop.f32.mrf.mxu0
    %v690 = vadd.f32 %v241, %v689
    %691 = vmatmul.f32.gmra.mxu0 %v303
    %v692 = vpop.f32.mrf.mxu0
    %v693 = vadd.f32 %v246, %v692
    %694 = vmatmul.f32.gmra.mxu0 %v306
    %v695 = vpop.f32.mrf.mxu0
    %v696 = vadd.f32 %v251, %v695
    %697 = vmatmul.f32.gmra.mxu0 %v309
    %v698 = vpop.f32.mrf.mxu0
    %v699 = vadd.f32 %v256, %v698
    %700 = vmatmul.f32.gmra.mxu0 %v312
    %v701 = vpop.f32.mrf.mxu0
    %v702 = vadd.f32 %v261, %v701
    %703 = vmatmul.f32.gmra.mxu0 %v315
    %v704 = vpop.f32.mrf.mxu0
    %v705 = vadd.f32 %v266, %v704
    %706 = vdwg.mxu0
    %707 = vmatpush.msra.mxu0 0.0
    %708 = vmatpush.msra.mxu0 0.0
    %709 = vmatpush.msra.mxu0 %v154
    %710 = vmatpush.msra.mxu0 %v146
    %711 = vmatpush.msra.mxu0 %v138
    %712 = vmatpush.msra.mxu0 %v130
    %713 = vmatpush.msra.mxu0 %v122
    %714 = vmatpush.msra.mxu0 %v114
    %715 = vmatpush.msra.mxu0 %v106
    %716 = vmatpush.msra.mxu0 %v98
    %717 = vmatpush.msra.mxu0 %v90
    %718 = vmatpush.msra.mxu0 %v82
    %719 = vmatpush.msra.mxu0 %v74
    %720 = vmatpush.msra.mxu0 %v66
    %721 = vmatpush.msra.mxu0 %v58
    %722 = vmatpush.msra.mxu0 %v50
    %723 = vmatmul.f32.gmra.mxu0 %v270
    %v724 = vpop.f32.mrf.mxu0
    %v725 = vadd.f32 %v191, %v724
    %726 = vmatmul.f32.gmra.mxu0 %v273
    %v727 = vpop.f32.mrf.mxu0
    %v728 = vadd.f32 %v196, %v727
    %729 = vmatmul.f32.gmra.mxu0 %v276
    %v730 = vpop.f32.mrf.mxu0
    %v731 = vadd.f32 %v201, %v730
    %732 = vmatmul.f32.gmra.mxu0 %v279
    %v733 = vpop.f32.mrf.mxu0
    %v734 = vadd.f32 %v206, %v733
    %735 = vmatmul.f32.gmra.mxu0 %v282
    %v736 = vpop.f32.mrf.mxu0
    %v737 = vadd.f32 %v211, %v736
    %738 = vmatmul.f32.gmra.mxu0 %v285
    %v739 = vpop.f32.mrf.mxu0
    %v740 = vadd.f32 %v216, %v739
    %741 = vmatmul.f32.gmra.mxu0 %v288
    %v742 = vpop.f32.mrf.mxu0
    %v743 = vadd.f32 %v221, %v742
    %744 = vmatmul.f32.gmra.mxu0 %v291
    %v745 = vpop.f32.mrf.mxu0
    %v746 = vadd.f32 %v226, %v745
    %747 = vmatmul.f32.gmra.mxu0 %v294
    %v748 = vpop.f32.mrf.mxu0
    %v749 = vadd.f32 %v231, %v748
    %750 = vmatmul.f32.gmra.mxu0 %v297
    %v751 = vpop.f32.mrf.mxu0
    %v752 = vadd.f32 %v236, %v751
    %753 = vmatmul.f32.gmra.mxu0 %v300
    %v754 = vpop.f32.mrf.mxu0
    %v755 = vadd.f32 %v241, %v754
    %756 = vmatmul.f32.gmra.mxu0 %v303
    %v757 = vpop.f32.mrf.mxu0
    %v758 = vadd.f32 %v246, %v757
    %759 = vmatmul.f32.gmra.mxu0 %v306
    %v760 = vpop.f32.mrf.mxu0
    %v761 = vadd.f32 %v251, %v760
    %762 = vmatmul.f32.gmra.mxu0 %v309
    %v763 = vpop.f32.mrf.mxu0
    %v764 = vadd.f32 %v256, %v763
    %765 = vmatmul.f32.gmra.mxu0 %v312
    %v766 = vpop.f32.mrf.mxu0
    %v767 = vadd.f32 %v261, %v766
    %768 = vmatmul.f32.gmra.mxu0 %v315
    %v769 = vpop.f32.mrf.mxu0
    %v770 = vadd.f32 %v266, %v769
    %771 = vdwg.mxu0
    %772 = vmatpush.msra.mxu0 0.0
    %773 = vmatpush.msra.mxu0 0.0
    %774 = vmatpush.msra.mxu0 %v155
    %775 = vmatpush.msra.mxu0 %v147
    %776 = vmatpush.msra.mxu0 %v139
    %777 = vmatpush.msra.mxu0 %v131
    %778 = vmatpush.msra.mxu0 %v123
    %779 = vmatpush.msra.mxu0 %v115
    %780 = vmatpush.msra.mxu0 %v107
    %781 = vmatpush.msra.mxu0 %v99
    %782 = vmatpush.msra.mxu0 %v91
    %783 = vmatpush.msra.mxu0 %v83
    %784 = vmatpush.msra.mxu0 %v75
    %785 = vmatpush.msra.mxu0 %v67
    %786 = vmatpush.msra.mxu0 %v59
    %787 = vmatpush.msra.mxu0 %v51
    %788 = vmatmul.f32.gmra.mxu0 %v270
    %v789 = vpop.f32.mrf.mxu0
    %v790 = vadd.f32 %v191, %v789
    %791 = vmatmul.f32.gmra.mxu0 %v273
    %v792 = vpop.f32.mrf.mxu0
    %v793 = vadd.f32 %v196, %v792
    %794 = vmatmul.f32.gmra.mxu0 %v276
    %v795 = vpop.f32.mrf.mxu0
    %v796 = vadd.f32 %v201, %v795
    %797 = vmatmul.f32.gmra.mxu0 %v279
    %v798 = vpop.f32.mrf.mxu0
    %v799 = vadd.f32 %v206, %v798
    %800 = vmatmul.f32.gmra.mxu0 %v282
    %v801 = vpop.f32.mrf.mxu0
    %v802 = vadd.f32 %v211, %v801
    %803 = vmatmul.f32.gmra.mxu0 %v285
    %v804 = vpop.f32.mrf.mxu0
    %v805 = vadd.f32 %v216, %v804
    %806 = vmatmul.f32.gmra.mxu0 %v288
    %v807 = vpop.f32.mrf.mxu0
    %v808 = vadd.f32 %v221, %v807
    %809 = vmatmul.f32.gmra.mxu0 %v291
    %v810 = vpop.f32.mrf.mxu0
    %v811 = vadd.f32 %v226, %v810
    %812 = vmatmul.f32.gmra.mxu0 %v294
    %v813 = vpop.f32.mrf.mxu0
    %v814 = vadd.f32 %v231, %v813
    %815 = vmatmul.f32.gmra.mxu0 %v297
    %v816 = vpop.f32.mrf.mxu0
    %v817 = vadd.f32 %v236, %v816
    %818 = vmatmul.f32.gmra.mxu0 %v300
    %v819 = vpop.f32.mrf.mxu0
    %v820 = vadd.f32 %v241, %v819
    %821 = vmatmul.f32.gmra.mxu0 %v303
    %v822 = vpop.f32.mrf.mxu0
    %v823 = vadd.f32 %v246, %v822
    %824 = vmatmul.f32.gmra.mxu0 %v306
    %v825 = vpop.f32.mrf.mxu0
    %v826 = vadd.f32 %v251, %v825
    %827 = vmatmul.f32.gmra.mxu0 %v309
    %v828 = vpop.f32.mrf.mxu0
    %v829 = vadd.f32 %v256, %v828
    %830 = vmatmul.f32.gmra.mxu0 %v312
    %v831 = vpop.f32.mrf.mxu0
    %v832 = vadd.f32 %v261, %v831
    %833 = vmatmul.f32.gmra.mxu0 %v315
    %v834 = vpop.f32.mrf.mxu0
    %v835 = vadd.f32 %v266, %v834
    %836 = vdwg.mxu0
    %v837 = vmul.f32 %v335, 0.01
    %v838 = vmul.f32 %v400, 0.01
    %v839 = vmul.f32 %v465, 0.01
    %v840 = vmul.f32 %v530, 0.01
    %v841 = vmul.f32 %v595, 0.01
    %v842 = vmul.f32 %v660, 0.01
    %v843 = vmul.f32 %v725, 0.01
    %v844 = vmul.f32 %v790, 0.01
    %v845 = vmul.f32 %v338, 0.01
    %v846 = vmul.f32 %v403, 0.01
    %v847 = vmul.f32 %v468, 0.01
    %v848 = vmul.f32 %v533, 0.01
    %v849 = vmul.f32 %v598, 0.01
    %v850 = vmul.f32 %v663, 0.01
    %v851 = vmul.f32 %v728, 0.01
    %v852 = vmul.f32 %v793, 0.01
    %v853 = vmul.f32 %v341, 0.01
    %v854 = vmul.f32 %v406, 0.01
    %v855 = vmul.f32 %v471, 0.01
    %v856 = vmul.f32 %v536, 0.01
    %v857 = vmul.f32 %v601, 0.01
    %v858 = vmul.f32 %v666, 0.01
    %v859 = vmul.f32 %v731, 0.01
    %v860 = vmul.f32 %v796, 0.01
    %v861 = vmul.f32 %v344, 0.01
    %v862 = vmul.f32 %v409, 0.01
    %v863 = vmul.f32 %v474, 0.01
    %v864 = vmul.f32 %v539, 0.01
    %v865 = vmul.f32 %v604, 0.01
    %v866 = vmul.f32 %v669, 0.01
    %v867 = vmul.f32 %v734, 0.01
    %v868 = vmul.f32 %v799, 0.01
    %v869 = vmul.f32 %v347, 0.01
    %v870 = vmul.f32 %v412, 0.01
    %v871 = vmul.f32 %v477, 0.01
    %v872 = vmul.f32 %v542, 0.01
    %v873 = vmul.f32 %v607, 0.01
    %v874 = vmul.f32 %v672, 0.01
    %v875 = vmul.f32 %v737, 0.01
    %v876 = vmul.f32 %v802, 0.01
    %v877 = vmul.f32 %v350, 0.01
    %v878 = vmul.f32 %v415, 0.01
    %v879 = vmul.f32 %v480, 0.01
    %v880 = vmul.f32 %v545, 0.01
    %v881 = vmul.f32 %v610, 0.01
    %v882 = vmul.f32 %v675, 0.01
    %v883 = vmul.f32 %v740, 0.01
    %v884 = vmul.f32 %v805, 0.01
    %v885 = vmul.f32 %v353, 0.01
    %v886 = vmul.f32 %v418, 0.01
    %v887 = vmul.f32 %v483, 0.01
    %v888 = vmul.f32 %v548, 0.01
    %v889 = vmul.f32 %v613, 0.01
    %v890 = vmul.f32 %v678, 0.01
    %v891 = vmul.f32 %v743, 0.01
    %v892 = vmul.f32 %v808, 0.01
    %v893 = vmul.f32 %v356, 0.01
    %v894 = vmul.f32 %v421, 0.01
    %v895 = vmul.f32 %v486, 0.01
    %v896 = vmul.f32 %v551, 0.01
    %v897 = vmul.f32 %v616, 0.01
    %v898 = vmul.f32 %v681, 0.01
    %v899 = vmul.f32 %v746, 0.01
    %v900 = vmul.f32 %v811, 0.01
    %v901 = vmul.f32 %v359, 0.01
    %v902 = vmul.f32 %v424, 0.01
    %v903 = vmul.f32 %v489, 0.01
    %v904 = vmul.f32 %v554, 0.01
    %v905 = vmul.f32 %v619, 0.01
    %v906 = vmul.f32 %v684, 0.01
    %v907 = vmul.f32 %v749, 0.01
    %v908 = vmul.f32 %v814, 0.01
    %v909 = vmul.f32 %v362, 0.01
    %v910 = vmul.f32 %v427, 0.01
    %v911 = vmul.f32 %v492, 0.01
    %v912 = vmul.f32 %v557, 0.01
    %v913 = vmul.f32 %v622, 0.01
    %v914 = vmul.f32 %v687, 0.01
    %v915 = vmul.f32 %v752, 0.01
    %v916 = vmul.f32 %v817, 0.01
    %v917 = vmul.f32 %v365, 0.01
    %v918 = vmul.f32 %v430, 0.01
    %v919 = vmul.f32 %v495, 0.01
    %v920 = vmul.f32 %v560, 0.01
    %v921 = vmul.f32 %v625, 0.01
    %v922 = vmul.f32 %v690, 0.01
    %v923 = vmul.f32 %v755, 0.01
    %v924 = vmul.f32 %v820, 0.01
    %v925 = vmul.f32 %v368, 0.01
    %v926 = vmul.f32 %v433, 0.01
    %v927 = vmul.f32 %v498, 0.01
    %v928 = vmul.f32 %v563, 0.01
    %v929 = vmul.f32 %v628, 0.01
    %v930 = vmul.f32 %v693, 0.01
    %v931 = vmul.f32 %v758, 0.01
    %v932 = vmul.f32 %v823, 0.01
    %v933 = vmul.f32 %v371, 0.01
    %v934 = vmul.f32 %v436, 0.01
    %v935 = vmul.f32 %v501, 0.01
    %v936 = vmul.f32 %v566, 0.01
    %v937 = vmul.f32 %v631, 0.01
    %v938 = vmul.f32 %v696, 0.01
    %v939 = vmul.f32 %v761, 0.01
    %v940 = vmul.f32 %v826, 0.01
    %v941 = vmul.f32 %v374, 0.01
    %v942 = vmul.f32 %v439, 0.01
    %v943 = vmul.f32 %v504, 0.01
    %v944 = vmul.f32 %v569, 0.01
    %v945 = vmul.f32 %v634, 0.01
    %v946 = vmul.f32 %v699, 0.01
    %v947 = vmul.f32 %v764, 0.01
    %v948 = vmul.f32 %v829, 0.01
    %v949 = vmul.f32 %v377, 0.01
    %v950 = vmul.f32 %v442, 0.01
    %v951 = vmul.f32 %v507, 0.01
    %v952 = vmul.f32 %v572, 0.01
    %v953 = vmul.f32 %v637, 0.01
    %v954 = vmul.f32 %v702, 0.01
    %v955 = vmul.f32 %v767, 0.01
    %v956 = vmul.f32 %v832, 0.01
    %v957 = vmul.f32 %v380, 0.01
    %v958 = vmul.f32 %v445, 0.01
    %v959 = vmul.f32 %v510, 0.01
    %v960 = vmul.f32 %v575, 0.01
    %v961 = vmul.f32 %v640, 0.01
    %v962 = vmul.f32 %v705, 0.01
    %v963 = vmul.f32 %v770, 0.01
    %v964 = vmul.f32 %v835, 0.01
    %v965 = vmax.f32 %v335, %v837
    %v966 = vmax.f32 %v400, %v838
    %v967 = vmax.f32 %v465, %v839
    %v968 = vmax.f32 %v530, %v840
    %v969 = vmax.f32 %v595, %v841
    %v970 = vmax.f32 %v660, %v842
    %v971 = vmax.f32 %v725, %v843
    %v972 = vmax.f32 %v790, %v844
    %v973 = vmax.f32 %v338, %v845
    %v974 = vmax.f32 %v403, %v846
    %v975 = vmax.f32 %v468, %v847
    %v976 = vmax.f32 %v533, %v848
    %v977 = vmax.f32 %v598, %v849
    %v978 = vmax.f32 %v663, %v850
    %v979 = vmax.f32 %v728, %v851
    %v980 = vmax.f32 %v793, %v852
    %v981 = vmax.f32 %v341, %v853
    %v982 = vmax.f32 %v406, %v854
    %v983 = vmax.f32 %v471, %v855
    %v984 = vmax.f32 %v536, %v856
    %v985 = vmax.f32 %v601, %v857
    %v986 = vmax.f32 %v666, %v858
    %v987 = vmax.f32 %v731, %v859
    %v988 = vmax.f32 %v796, %v860
    %v989 = vmax.f32 %v344, %v861
    %v990 = vmax.f32 %v409, %v862
    %v991 = vmax.f32 %v474, %v863
    %v992 = vmax.f32 %v539, %v864
    %v993 = vmax.f32 %v604, %v865
    %v994 = vmax.f32 %v669, %v866
    %v995 = vmax.f32 %v734, %v867
    %v996 = vmax.f32 %v799, %v868
    %v997 = vmax.f32 %v347, %v869
    %v998 = vmax.f32 %v412, %v870
    %v999 = vmax.f32 %v477, %v871
    %v1000 = vmax.f32 %v542, %v872
    %v1001 = vmax.f32 %v607, %v873
    %v1002 = vmax.f32 %v672, %v874
    %v1003 = vmax.f32 %v737, %v875
    %v1004 = vmax.f32 %v802, %v876
    %v1005 = vmax.f32 %v350, %v877
    %v1006 = vmax.f32 %v415, %v878
    %v1007 = vmax.f32 %v480, %v879
    %v1008 = vmax.f32 %v545, %v880
    %v1009 = vmax.f32 %v610, %v881
    %v1010 = vmax.f32 %v675, %v882
    %v1011 = vmax.f32 %v740, %v883
    %v1012 = vmax.f32 %v805, %v884
    %v1013 = vmax.f32 %v353, %v885
    %v1014 = vmax.f32 %v418, %v886
    %v1015 = vmax.f32 %v483, %v887
    %v1016 = vmax.f32 %v548, %v888
    %v1017 = vmax.f32 %v613, %v889
    %v1018 = vmax.f32 %v678, %v890
    %v1019 = vmax.f32 %v743, %v891
    %v1020 = vmax.f32 %v808, %v892
    %v1021 = vmax.f32 %v356, %v893
    %v1022 = vmax.f32 %v421, %v894
    %v1023 = vmax.f32 %v486, %v895
    %v1024 = vmax.f32 %v551, %v896
    %v1025 = vmax.f32 %v616, %v897
    %v1026 = vmax.f32 %v681, %v898
    %v1027 = vmax.f32 %v746, %v899
    %v1028 = vmax.f32 %v811, %v900
    %v1029 = vmax.f32 %v359, %v901
    %v1030 = vmax.f32 %v424, %v902
    %v1031 = vmax.f32 %v489, %v903
    %v1032 = vmax.f32 %v554, %v904
    %v1033 = vmax.f32 %v619, %v905
    %v1034 = vmax.f32 %v684, %v906
    %v1035 = vmax.f32 %v749, %v907
    %v1036 = vmax.f32 %v814, %v908
    %v1037 = vmax.f32 %v362, %v909
    %v1038 = vmax.f32 %v427, %v910
    %v1039 = vmax.f32 %v492, %v911
    %v1040 = vmax.f32 %v557, %v912
    %v1041 = vmax.f32 %v622, %v913
    %v1042 = vmax.f32 %v687, %v914
    %v1043 = vmax.f32 %v752, %v915
    %v1044 = vmax.f32 %v817, %v916
    %v1045 = vmax.f32 %v365, %v917
    %v1046 = vmax.f32 %v430, %v918
    %v1047 = vmax.f32 %v495, %v919
    %v1048 = vmax.f32 %v560, %v920
    %v1049 = vmax.f32 %v625, %v921
    %v1050 = vmax.f32 %v690, %v922
    %v1051 = vmax.f32 %v755, %v923
    %v1052 = vmax.f32 %v820, %v924
    %v1053 = vmax.f32 %v368, %v925
    %v1054 = vmax.f32 %v433, %v926
    %v1055 = vmax.f32 %v498, %v927
    %v1056 = vmax.f32 %v563, %v928
    %v1057 = vmax.f32 %v628, %v929
    %v1058 = vmax.f32 %v693, %v930
    %v1059 = vmax.f32 %v758, %v931
    %v1060 = vmax.f32 %v823, %v932
    %v1061 = vmax.f32 %v371, %v933
    %v1062 = vmax.f32 %v436, %v934
    %v1063 = vmax.f32 %v501, %v935
    %v1064 = vmax.f32 %v566, %v936
    %v1065 = vmax.f32 %v631, %v937
    %v1066 = vmax.f32 %v696, %v938
    %v1067 = vmax.f32 %v761, %v939
    %v1068 = vmax.f32 %v826, %v940
    %v1069 = vmax.f32 %v374, %v941
    %v1070 = vmax.f32 %v439, %v942
    %v1071 = vmax.f32 %v504, %v943
    %v1072 = vmax.f32 %v569, %v944
    %v1073 = vmax.f32 %v634, %v945
    %v1074 = vmax.f32 %v699, %v946
    %v1075 = vmax.f32 %v764, %v947
    %v1076 = vmax.f32 %v829, %v948
    %v1077 = vmax.f32 %v377, %v949
    %v1078 = vmax.f32 %v442, %v950
    %v1079 = vmax.f32 %v507, %v951
    %v1080 = vmax.f32 %v572, %v952
    %v1081 = vmax.f32 %v637, %v953
    %v1082 = vmax.f32 %v702, %v954
    %v1083 = vmax.f32 %v767, %v955
    %v1084 = vmax.f32 %v832, %v956
    %v1085 = vmax.f32 %v380, %v957
    %v1086 = vmax.f32 %v445, %v958
    %v1087 = vmax.f32 %v510, %v959
    %v1088 = vmax.f32 %v575, %v960
    %v1089 = vmax.f32 %v640, %v961
    %v1090 = vmax.f32 %v705, %v962
    %v1091 = vmax.f32 %v770, %v963
    %v1092 = vmax.f32 %v835, %v964
    %v1093 = vpack.c.bf16 %v973, %v965
    %v1094 = vpack.c.bf16 %v974, %v966
    %v1095 = vpack.c.bf16 %v975, %v967
    %v1096 = vpack.c.bf16 %v976, %v968
    %v1097 = vpack.c.bf16 %v977, %v969
    %v1098 = vpack.c.bf16 %v978, %v970
    %v1099 = vpack.c.bf16 %v979, %v971
    %v1100 = vpack.c.bf16 %v980, %v972
    %v1101 = vpack.c.bf16 %v989, %v981
    %v1102 = vpack.c.bf16 %v990, %v982
    %v1103 = vpack.c.bf16 %v991, %v983
    %v1104 = vpack.c.bf16 %v992, %v984
    %v1105 = vpack.c.bf16 %v993, %v985
    %v1106 = vpack.c.bf16 %v994, %v986
    %v1107 = vpack.c.bf16 %v995, %v987
    %v1108 = vpack.c.bf16 %v996, %v988
    %v1109 = vpack.c.bf16 %v1005, %v997
    %v1110 = vpack.c.bf16 %v1006, %v998
    %v1111 = vpack.c.bf16 %v1007, %v999
    %v1112 = vpack.c.bf16 %v1008, %v1000
    %v1113 = vpack.c.bf16 %v1009, %v1001
    %v1114 = vpack.c.bf16 %v1010, %v1002
    %v1115 = vpack.c.bf16 %v1011, %v1003
    %v1116 = vpack.c.bf16 %v1012, %v1004
    %v1117 = vpack.c.bf16 %v1021, %v1013
    %v1118 = vpack.c.bf16 %v1022, %v1014
    %v1119 = vpack.c.bf16 %v1023, %v1015
    %v1120 = vpack.c.bf16 %v1024, %v1016
    %v1121 = vpack.c.bf16 %v1025, %v1017
    %v1122 = vpack.c.bf16 %v1026, %v1018
    %v1123 = vpack.c.bf16 %v1027, %v1019
    %v1124 = vpack.c.bf16 %v1028, %v1020
    %v1125 = vpack.c.bf16 %v1037, %v1029
    %v1126 = vpack.c.bf16 %v1038, %v1030
    %v1127 = vpack.c.bf16 %v1039, %v1031
    %v1128 = vpack.c.bf16 %v1040, %v1032
    %v1129 = vpack.c.bf16 %v1041, %v1033
    %v1130 = vpack.c.bf16 %v1042, %v1034
    %v1131 = vpack.c.bf16 %v1043, %v1035
    %v1132 = vpack.c.bf16 %v1044, %v1036
    %v1133 = vpack.c.bf16 %v1053, %v1045
    %v1134 = vpack.c.bf16 %v1054, %v1046
    %v1135 = vpack.c.bf16 %v1055, %v1047
    %v1136 = vpack.c.bf16 %v1056, %v1048
    %v1137 = vpack.c.bf16 %v1057, %v1049
    %v1138 = vpack.c.bf16 %v1058, %v1050
    %v1139 = vpack.c.bf16 %v1059, %v1051
    %v1140 = vpack.c.bf16 %v1060, %v1052
    %v1141 = vpack.c.bf16 %v1069, %v1061
    %v1142 = vpack.c.bf16 %v1070, %v1062
    %v1143 = vpack.c.bf16 %v1071, %v1063
    %v1144 = vpack.c.bf16 %v1072, %v1064
    %v1145 = vpack.c.bf16 %v1073, %v1065
    %v1146 = vpack.c.bf16 %v1074, %v1066
    %v1147 = vpack.c.bf16 %v1075, %v1067
    %v1148 = vpack.c.bf16 %v1076, %v1068
    %v1149 = vpack.c.bf16 %v1085, %v1077
    %v1150 = vpack.c.bf16 %v1086, %v1078
    %v1151 = vpack.c.bf16 %v1087, %v1079
    %v1152 = vpack.c.bf16 %v1088, %v1080
    %v1153 = vpack.c.bf16 %v1089, %v1081
    %v1154 = vpack.c.bf16 %v1090, %v1082
    %v1155 = vpack.c.bf16 %v1091, %v1083
    %v1156 = vpack.c.bf16 %v1092, %v1084
    %v1157 = vld [vmem:[%s3] sm:$0xf]
    %v1158 = vld [vmem:[%s3 + $0x4] sm:$0xf]
    %v1159 = vld [vmem:[%s3 + $0x8] sm:$0xf]
    %v1160 = vld [vmem:[%s3 + $0xc] sm:$0xf]
    %v1161 = vld [vmem:[%s3 + $0x10] sm:$0xf]
    %v1162 = vld [vmem:[%s3 + $0x14] sm:$0xf]
    %v1163 = vld [vmem:[%s3 + $0x18] sm:$0xf]
    %v1164 = vld [vmem:[%s3 + $0x1c] sm:$0xf]
    %v1165 = vld [vmem:[%s3 + $0x20] sm:$0xf]
    %v1166 = vld [vmem:[%s3 + $0x24] sm:$0xf]
    %v1167 = vld [vmem:[%s3 + $0x28] sm:$0xf]
    %v1168 = vld [vmem:[%s3 + $0x2c] sm:$0xf]
    %v1169 = vld [vmem:[%s3 + $0x30] sm:$0xf]
    %v1170 = vld [vmem:[%s3 + $0x34] sm:$0xf]
    %v1171 = vld [vmem:[%s3 + $0x38] sm:$0xf]
    %v1172 = vld [vmem:[%s3 + $0x3c] sm:$0xf]
    %v1173 = vld [vmem:[%s4] sm:$0xff]
    %v1174 = vld [vmem:[%s4 + $0x8] sm:$0xff]
    %v1175 = vld [vmem:[%s4 + $0x10] sm:$0xff]
    %v1176 = vld [vmem:[%s4 + $0x18] sm:$0xff]
    %v1177 = vld [vmem:[%s4 + $0x20] sm:$0xff]
    %v1178 = vld [vmem:[%s4 + $0x28] sm:$0xff]
    %v1179 = vld [vmem:[%s4 + $0x30] sm:$0xff]
    %v1180 = vld [vmem:[%s4 + $0x38] sm:$0xff]
    %v1181 = vld [vmem:[%s4 + $0x40] sm:$0xff]
    %v1182 = vld [vmem:[%s4 + $0x48] sm:$0xff]
    %v1183 = vld [vmem:[%s4 + $0x50] sm:$0xff]
    %v1184 = vld [vmem:[%s4 + $0x58] sm:$0xff]
    %v1185 = vld [vmem:[%s4 + $0x60] sm:$0xff]
    %v1186 = vld [vmem:[%s4 + $0x68] sm:$0xff]
    %v1187 = vld [vmem:[%s4 + $0x70] sm:$0xff]
    %v1188 = vld [vmem:[%s4 + $0x78] sm:$0xff]
    %1190 = vset.pattern.permute.xlu0 0
    %1191 = vperm.xlu0 %1190, %v1173
    %v1192 = vpop.permute.xlu0 %1191
    %1195 = vset.pattern.permute.xlu0 0
    %1196 = vperm.xlu0 %1195, %v1174
    %v1197 = vpop.permute.xlu0 %1196
    %1200 = vset.pattern.permute.xlu0 0
    %1201 = vperm.xlu0 %1200, %v1175
    %v1202 = vpop.permute.xlu0 %1201
    %1205 = vset.pattern.permute.xlu0 0
    %1206 = vperm.xlu0 %1205, %v1176
    %v1207 = vpop.permute.xlu0 %1206
    %1210 = vset.pattern.permute.xlu0 0
    %1211 = vperm.xlu0 %1210, %v1177
    %v1212 = vpop.permute.xlu0 %1211
    %1215 = vset.pattern.permute.xlu0 0
    %1216 = vperm.xlu0 %1215, %v1178
    %v1217 = vpop.permute.xlu0 %1216
    %1220 = vset.pattern.permute.xlu0 0
    %1221 = vperm.xlu0 %1220, %v1179
    %v1222 = vpop.permute.xlu0 %1221
    %1225 = vset.pattern.permute.xlu0 0
    %1226 = vperm.xlu0 %1225, %v1180
    %v1227 = vpop.permute.xlu0 %1226
    %1230 = vset.pattern.permute.xlu0 0
    %1231 = vperm.xlu0 %1230, %v1181
    %v1232 = vpop.permute.xlu0 %1231
    %1235 = vset.pattern.permute.xlu0 0
    %1236 = vperm.xlu0 %1235, %v1182
    %v1237 = vpop.permute.xlu0 %1236
    %1240 = vset.pattern.permute.xlu0 0
    %1241 = vperm.xlu0 %1240, %v1183
    %v1242 = vpop.permute.xlu0 %1241
    %1245 = vset.pattern.permute.xlu0 0
    %1246 = vperm.xlu0 %1245, %v1184
    %v1247 = vpop.permute.xlu0 %1246
    %1250 = vset.pattern.permute.xlu0 0
    %1251 = vperm.xlu0 %1250, %v1185
    %v1252 = vpop.permute.xlu0 %1251
    %1255 = vset.pattern.permute.xlu0 0
    %1256 = vperm.xlu0 %1255, %v1186
    %v1257 = vpop.permute.xlu0 %1256
    %1260 = vset.pattern.permute.xlu0 0
    %1261 = vperm.xlu0 %1260, %v1187
    %v1262 = vpop.permute.xlu0 %1261
    %1265 = vset.pattern.permute.xlu0 0
    %1266 = vperm.xlu0 %1265, %v1188
    %v1267 = vpop.permute.xlu0 %1266
    %v1285 = vunpack.c.l.b16 %v1157
    %v1286 = vunpack.c.l.b16 %v1158
    %v1287 = vunpack.c.l.b16 %v1159
    %v1288 = vunpack.c.l.b16 %v1160
    %v1289 = vunpack.c.l.b16 %v1161
    %v1290 = vunpack.c.l.b16 %v1162
    %v1291 = vunpack.c.l.b16 %v1163
    %v1292 = vunpack.c.l.b16 %v1164
    %v1293 = vunpack.c.l.b16 %v1165
    %v1294 = vunpack.c.l.b16 %v1166
    %v1295 = vunpack.c.l.b16 %v1167
    %v1296 = vunpack.c.l.b16 %v1168
    %v1297 = vunpack.c.l.b16 %v1169
    %v1298 = vunpack.c.l.b16 %v1170
    %v1299 = vunpack.c.l.b16 %v1171
    %v1300 = vunpack.c.l.b16 %v1172
    %v1301 = vpack.c.b16 %v1286, %v1285
    %v1302 = vpack.c.b16 %v1288, %v1287
    %v1303 = vpack.c.b16 %v1290, %v1289
    %v1304 = vpack.c.b16 %v1292, %v1291
    %v1305 = vpack.c.b16 %v1294, %v1293
    %v1306 = vpack.c.b16 %v1296, %v1295
    %v1307 = vpack.c.b16 %v1298, %v1297
    %v1308 = vpack.c.b16 %v1300, %v1299
    %1317 = vmatpush.bf16.msra.mxu0 %v1149
    %1318 = vmatpush.bf16.msra.mxu0 %v1141
    %1319 = vmatpush.bf16.msra.mxu0 %v1133
    %1320 = vmatpush.bf16.msra.mxu0 %v1125
    %1321 = vmatpush.bf16.msra.mxu0 %v1117
    %1322 = vmatpush.bf16.msra.mxu0 %v1109
    %1323 = vmatpush.bf16.msra.mxu0 %v1101
    %1324 = vmatpush.bf16.msra.mxu0 %v1093
    %1325 = vmatmul.bf16.gmra.mxu0 %v1301
    %v1326 = vpop.f32.mrf.mxu0
    %v1327 = vadd.f32 %v1192, %v1326
    %v1328 = vpop.f32.mrf.mxu0
    %v1329 = vadd.f32 %v1197, %v1328
    %1330 = vmatmul.bf16.gmra.mxu0 %v1302
    %v1331 = vpop.f32.mrf.mxu0
    %v1332 = vadd.f32 %v1202, %v1331
    %v1333 = vpop.f32.mrf.mxu0
    %v1334 = vadd.f32 %v1207, %v1333
    %1335 = vmatmul.bf16.gmra.mxu0 %v1303
    %v1336 = vpop.f32.mrf.mxu0
    %v1337 = vadd.f32 %v1212, %v1336
    %v1338 = vpop.f32.mrf.mxu0
    %v1339 = vadd.f32 %v1217, %v1338
    %1340 = vmatmul.bf16.gmra.mxu0 %v1304
    %v1341 = vpop.f32.mrf.mxu0
    %v1342 = vadd.f32 %v1222, %v1341
    %v1343 = vpop.f32.mrf.mxu0
    %v1344 = vadd.f32 %v1227, %v1343
    %1345 = vmatmul.bf16.gmra.mxu0 %v1305
    %v1346 = vpop.f32.mrf.mxu0
    %v1347 = vadd.f32 %v1232, %v1346
    %v1348 = vpop.f32.mrf.mxu0
    %v1349 = vadd.f32 %v1237, %v1348
    %1350 = vmatmul.bf16.gmra.mxu0 %v1306
    %v1351 = vpop.f32.mrf.mxu0
    %v1352 = vadd.f32 %v1242, %v1351
    %v1353 = vpop.f32.mrf.mxu0
    %v1354 = vadd.f32 %v1247, %v1353
    %1355 = vmatmul.bf16.gmra.mxu0 %v1307
    %v1356 = vpop.f32.mrf.mxu0
    %v1357 = vadd.f32 %v1252, %v1356
    %v1358 = vpop.f32.mrf.mxu0
    %v1359 = vadd.f32 %v1257, %v1358
    %1360 = vmatmul.bf16.gmra.mxu0 %v1308
    %v1361 = vpop.f32.mrf.mxu0
    %v1362 = vadd.f32 %v1262, %v1361
    %v1363 = vpop.f32.mrf.mxu0
    %v1364 = vadd.f32 %v1267, %v1363
    %1365 = vdwg.mxu0
    %1366 = vmatpush.bf16.msra.mxu0 %v1150
    %1367 = vmatpush.bf16.msra.mxu0 %v1142
    %1368 = vmatpush.bf16.msra.mxu0 %v1134
    %1369 = vmatpush.bf16.msra.mxu0 %v1126
    %1370 = vmatpush.bf16.msra.mxu0 %v1118
    %1371 = vmatpush.bf16.msra.mxu0 %v1110
    %1372 = vmatpush.bf16.msra.mxu0 %v1102
    %1373 = vmatpush.bf16.msra.mxu0 %v1094
    %1374 = vmatmul.bf16.gmra.mxu0 %v1301
    %v1375 = vpop.f32.mrf.mxu0
    %v1376 = vadd.f32 %v1192, %v1375
    %v1377 = vpop.f32.mrf.mxu0
    %v1378 = vadd.f32 %v1197, %v1377
    %1379 = vmatmul.bf16.gmra.mxu0 %v1302
    %v1380 = vpop.f32.mrf.mxu0
    %v1381 = vadd.f32 %v1202, %v1380
    %v1382 = vpop.f32.mrf.mxu0
    %v1383 = vadd.f32 %v1207, %v1382
    %1384 = vmatmul.bf16.gmra.mxu0 %v1303
    %v1385 = vpop.f32.mrf.mxu0
    %v1386 = vadd.f32 %v1212, %v1385
    %v1387 = vpop.f32.mrf.mxu0
    %v1388 = vadd.f32 %v1217, %v1387
    %1389 = vmatmul.bf16.gmra.mxu0 %v1304
    %v1390 = vpop.f32.mrf.mxu0
    %v1391 = vadd.f32 %v1222, %v1390
    %v1392 = vpop.f32.mrf.mxu0
    %v1393 = vadd.f32 %v1227, %v1392
    %1394 = vmatmul.bf16.gmra.mxu0 %v1305
    %v1395 = vpop.f32.mrf.mxu0
    %v1396 = vadd.f32 %v1232, %v1395
    %v1397 = vpop.f32.mrf.mxu0
    %v1398 = vadd.f32 %v1237, %v1397
    %1399 = vmatmul.bf16.gmra.mxu0 %v1306
    %v1400 = vpop.f32.mrf.mxu0
    %v1401 = vadd.f32 %v1242, %v1400
    %v1402 = vpop.f32.mrf.mxu0
    %v1403 = vadd.f32 %v1247, %v1402
    %1404 = vmatmul.bf16.gmra.mxu0 %v1307
    %v1405 = vpop.f32.mrf.mxu0
    %v1406 = vadd.f32 %v1252, %v1405
    %v1407 = vpop.f32.mrf.mxu0
    %v1408 = vadd.f32 %v1257, %v1407
    %1409 = vmatmul.bf16.gmra.mxu0 %v1308
    %v1410 = vpop.f32.mrf.mxu0
    %v1411 = vadd.f32 %v1262, %v1410
    %v1412 = vpop.f32.mrf.mxu0
    %v1413 = vadd.f32 %v1267, %v1412
    %1414 = vdwg.mxu0
    %1415 = vmatpush.bf16.msra.mxu0 %v1151
    %1416 = vmatpush.bf16.msra.mxu0 %v1143
    %1417 = vmatpush.bf16.msra.mxu0 %v1135
    %1418 = vmatpush.bf16.msra.mxu0 %v1127
    %1419 = vmatpush.bf16.msra.mxu0 %v1119
    %1420 = vmatpush.bf16.msra.mxu0 %v1111
    %1421 = vmatpush.bf16.msra.mxu0 %v1103
    %1422 = vmatpush.bf16.msra.mxu0 %v1095
    %1423 = vmatmul.bf16.gmra.mxu0 %v1301
    %v1424 = vpop.f32.mrf.mxu0
    %v1425 = vadd.f32 %v1192, %v1424
    %v1426 = vpop.f32.mrf.mxu0
    %v1427 = vadd.f32 %v1197, %v1426
    %1428 = vmatmul.bf16.gmra.mxu0 %v1302
    %v1429 = vpop.f32.mrf.mxu0
    %v1430 = vadd.f32 %v1202, %v1429
    %v1431 = vpop.f32.mrf.mxu0
    %v1432 = vadd.f32 %v1207, %v1431
    %1433 = vmatmul.bf16.gmra.mxu0 %v1303
    %v1434 = vpop.f32.mrf.mxu0
    %v1435 = vadd.f32 %v1212, %v1434
    %v1436 = vpop.f32.mrf.mxu0
    %v1437 = vadd.f32 %v1217, %v1436
    %1438 = vmatmul.bf16.gmra.mxu0 %v1304
    %v1439 = vpop.f32.mrf.mxu0
    %v1440 = vadd.f32 %v1222, %v1439
    %v1441 = vpop.f32.mrf.mxu0
    %v1442 = vadd.f32 %v1227, %v1441
    %1443 = vmatmul.bf16.gmra.mxu0 %v1305
    %v1444 = vpop.f32.mrf.mxu0
    %v1445 = vadd.f32 %v1232, %v1444
    %v1446 = vpop.f32.mrf.mxu0
    %v1447 = vadd.f32 %v1237, %v1446
    %1448 = vmatmul.bf16.gmra.mxu0 %v1306
    %v1449 = vpop.f32.mrf.mxu0
    %v1450 = vadd.f32 %v1242, %v1449
    %v1451 = vpop.f32.mrf.mxu0
    %v1452 = vadd.f32 %v1247, %v1451
    %1453 = vmatmul.bf16.gmra.mxu0 %v1307
    %v1454 = vpop.f32.mrf.mxu0
    %v1455 = vadd.f32 %v1252, %v1454
    %v1456 = vpop.f32.mrf.mxu0
    %v1457 = vadd.f32 %v1257, %v1456
    %1458 = vmatmul.bf16.gmra.mxu0 %v1308
    %v1459 = vpop.f32.mrf.mxu0
    %v1460 = vadd.f32 %v1262, %v1459
    %v1461 = vpop.f32.mrf.mxu0
    %v1462 = vadd.f32 %v1267, %v1461
    %1463 = vdwg.mxu0
    %1464 = vmatpush.bf16.msra.mxu0 %v1152
    %1465 = vmatpush.bf16.msra.mxu0 %v1144
    %1466 = vmatpush.bf16.msra.mxu0 %v1136
    %1467 = vmatpush.bf16.msra.mxu0 %v1128
    %1468 = vmatpush.bf16.msra.mxu0 %v1120
    %1469 = vmatpush.bf16.msra.mxu0 %v1112
    %1470 = vmatpush.bf16.msra.mxu0 %v1104
    %1471 = vmatpush.bf16.msra.mxu0 %v1096
    %1472 = vmatmul.bf16.gmra.mxu0 %v1301
    %v1473 = vpop.f32.mrf.mxu0
    %v1474 = vadd.f32 %v1192, %v1473
    %v1475 = vpop.f32.mrf.mxu0
    %v1476 = vadd.f32 %v1197, %v1475
    %1477 = vmatmul.bf16.gmra.mxu0 %v1302
    %v1478 = vpop.f32.mrf.mxu0
    %v1479 = vadd.f32 %v1202, %v1478
    %v1480 = vpop.f32.mrf.mxu0
    %v1481 = vadd.f32 %v1207, %v1480
    %1482 = vmatmul.bf16.gmra.mxu0 %v1303
    %v1483 = vpop.f32.mrf.mxu0
    %v1484 = vadd.f32 %v1212, %v1483
    %v1485 = vpop.f32.mrf.mxu0
    %v1486 = vadd.f32 %v1217, %v1485
    %1487 = vmatmul.bf16.gmra.mxu0 %v1304
    %v1488 = vpop.f32.mrf.mxu0
    %v1489 = vadd.f32 %v1222, %v1488
    %v1490 = vpop.f32.mrf.mxu0
    %v1491 = vadd.f32 %v1227, %v1490
    %1492 = vmatmul.bf16.gmra.mxu0 %v1305
    %v1493 = vpop.f32.mrf.mxu0
    %v1494 = vadd.f32 %v1232, %v1493
    %v1495 = vpop.f32.mrf.mxu0
    %v1496 = vadd.f32 %v1237, %v1495
    %1497 = vmatmul.bf16.gmra.mxu0 %v1306
    %v1498 = vpop.f32.mrf.mxu0
    %v1499 = vadd.f32 %v1242, %v1498
    %v1500 = vpop.f32.mrf.mxu0
    %v1501 = vadd.f32 %v1247, %v1500
    %1502 = vmatmul.bf16.gmra.mxu0 %v1307
    %v1503 = vpop.f32.mrf.mxu0
    %v1504 = vadd.f32 %v1252, %v1503
    %v1505 = vpop.f32.mrf.mxu0
    %v1506 = vadd.f32 %v1257, %v1505
    %1507 = vmatmul.bf16.gmra.mxu0 %v1308
    %v1508 = vpop.f32.mrf.mxu0
    %v1509 = vadd.f32 %v1262, %v1508
    %v1510 = vpop.f32.mrf.mxu0
    %v1511 = vadd.f32 %v1267, %v1510
    %1512 = vdwg.mxu0
    %1513 = vmatpush.bf16.msra.mxu0 %v1153
    %1514 = vmatpush.bf16.msra.mxu0 %v1145
    %1515 = vmatpush.bf16.msra.mxu0 %v1137
    %1516 = vmatpush.bf16.msra.mxu0 %v1129
    %1517 = vmatpush.bf16.msra.mxu0 %v1121
    %1518 = vmatpush.bf16.msra.mxu0 %v1113
    %1519 = vmatpush.bf16.msra.mxu0 %v1105
    %1520 = vmatpush.bf16.msra.mxu0 %v1097
    %1521 = vmatmul.bf16.gmra.mxu0 %v1301
    %v1522 = vpop.f32.mrf.mxu0
    %v1523 = vadd.f32 %v1192, %v1522
    %v1524 = vpop.f32.mrf.mxu0
    %v1525 = vadd.f32 %v1197, %v1524
    %1526 = vmatmul.bf16.gmra.mxu0 %v1302
    %v1527 = vpop.f32.mrf.mxu0
    %v1528 = vadd.f32 %v1202, %v1527
    %v1529 = vpop.f32.mrf.mxu0
    %v1530 = vadd.f32 %v1207, %v1529
    %1531 = vmatmul.bf16.gmra.mxu0 %v1303
    %v1532 = vpop.f32.mrf.mxu0
    %v1533 = vadd.f32 %v1212, %v1532
    %v1534 = vpop.f32.mrf.mxu0
    %v1535 = vadd.f32 %v1217, %v1534
    %1536 = vmatmul.bf16.gmra.mxu0 %v1304
    %v1537 = vpop.f32.mrf.mxu0
    %v1538 = vadd.f32 %v1222, %v1537
    %v1539 = vpop.f32.mrf.mxu0
    %v1540 = vadd.f32 %v1227, %v1539
    %1541 = vmatmul.bf16.gmra.mxu0 %v1305
    %v1542 = vpop.f32.mrf.mxu0
    %v1543 = vadd.f32 %v1232, %v1542
    %v1544 = vpop.f32.mrf.mxu0
    %v1545 = vadd.f32 %v1237, %v1544
    %1546 = vmatmul.bf16.gmra.mxu0 %v1306
    %v1547 = vpop.f32.mrf.mxu0
    %v1548 = vadd.f32 %v1242, %v1547
    %v1549 = vpop.f32.mrf.mxu0
    %v1550 = vadd.f32 %v1247, %v1549
    %1551 = vmatmul.bf16.gmra.mxu0 %v1307
    %v1552 = vpop.f32.mrf.mxu0
    %v1553 = vadd.f32 %v1252, %v1552
    %v1554 = vpop.f32.mrf.mxu0
    %v1555 = vadd.f32 %v1257, %v1554
    %1556 = vmatmul.bf16.gmra.mxu0 %v1308
    %v1557 = vpop.f32.mrf.mxu0
    %v1558 = vadd.f32 %v1262, %v1557
    %v1559 = vpop.f32.mrf.mxu0
    %v1560 = vadd.f32 %v1267, %v1559
    %1561 = vdwg.mxu0
    %1562 = vmatpush.bf16.msra.mxu0 %v1154
    %1563 = vmatpush.bf16.msra.mxu0 %v1146
    %1564 = vmatpush.bf16.msra.mxu0 %v1138
    %1565 = vmatpush.bf16.msra.mxu0 %v1130
    %1566 = vmatpush.bf16.msra.mxu0 %v1122
    %1567 = vmatpush.bf16.msra.mxu0 %v1114
    %1568 = vmatpush.bf16.msra.mxu0 %v1106
    %1569 = vmatpush.bf16.msra.mxu0 %v1098
    %1570 = vmatmul.bf16.gmra.mxu0 %v1301
    %v1571 = vpop.f32.mrf.mxu0
    %v1572 = vadd.f32 %v1192, %v1571
    %v1573 = vpop.f32.mrf.mxu0
    %v1574 = vadd.f32 %v1197, %v1573
    %1575 = vmatmul.bf16.gmra.mxu0 %v1302
    %v1576 = vpop.f32.mrf.mxu0
    %v1577 = vadd.f32 %v1202, %v1576
    %v1578 = vpop.f32.mrf.mxu0
    %v1579 = vadd.f32 %v1207, %v1578
    %1580 = vmatmul.bf16.gmra.mxu0 %v1303
    %v1581 = vpop.f32.mrf.mxu0
    %v1582 = vadd.f32 %v1212, %v1581
    %v1583 = vpop.f32.mrf.mxu0
    %v1584 = vadd.f32 %v1217, %v1583
    %1585 = vmatmul.bf16.gmra.mxu0 %v1304
    %v1586 = vpop.f32.mrf.mxu0
    %v1587 = vadd.f32 %v1222, %v1586
    %v1588 = vpop.f32.mrf.mxu0
    %v1589 = vadd.f32 %v1227, %v1588
    %1590 = vmatmul.bf16.gmra.mxu0 %v1305
    %v1591 = vpop.f32.mrf.mxu0
    %v1592 = vadd.f32 %v1232, %v1591
    %v1593 = vpop.f32.mrf.mxu0
    %v1594 = vadd.f32 %v1237, %v1593
    %1595 = vmatmul.bf16.gmra.mxu0 %v1306
    %v1596 = vpop.f32.mrf.mxu0
    %v1597 = vadd.f32 %v1242, %v1596
    %v1598 = vpop.f32.mrf.mxu0
    %v1599 = vadd.f32 %v1247, %v1598
    %1600 = vmatmul.bf16.gmra.mxu0 %v1307
    %v1601 = vpop.f32.mrf.mxu0
    %v1602 = vadd.f32 %v1252, %v1601
    %v1603 = vpop.f32.mrf.mxu0
    %v1604 = vadd.f32 %v1257, %v1603
    %1605 = vmatmul.bf16.gmra.mxu0 %v1308
    %v1606 = vpop.f32.mrf.mxu0
    %v1607 = vadd.f32 %v1262, %v1606
    %v1608 = vpop.f32.mrf.mxu0
    %v1609 = vadd.f32 %v1267, %v1608
    %1610 = vdwg.mxu0
    %1611 = vmatpush.bf16.msra.mxu0 %v1155
    %1612 = vmatpush.bf16.msra.mxu0 %v1147
    %1613 = vmatpush.bf16.msra.mxu0 %v1139
    %1614 = vmatpush.bf16.msra.mxu0 %v1131
    %1615 = vmatpush.bf16.msra.mxu0 %v1123
    %1616 = vmatpush.bf16.msra.mxu0 %v1115
    %1617 = vmatpush.bf16.msra.mxu0 %v1107
    %1618 = vmatpush.bf16.msra.mxu0 %v1099
    %1619 = vmatmul.bf16.gmra.mxu0 %v1301
    %v1620 = vpop.f32.mrf.mxu0
    %v1621 = vadd.f32 %v1192, %v1620
    %v1622 = vpop.f32.mrf.mxu0
    %v1623 = vadd.f32 %v1197, %v1622
    %1624 = vmatmul.bf16.gmra.mxu0 %v1302
    %v1625 = vpop.f32.mrf.mxu0
    %v1626 = vadd.f32 %v1202, %v1625
    %v1627 = vpop.f32.mrf.mxu0
    %v1628 = vadd.f32 %v1207, %v1627
    %1629 = vmatmul.bf16.gmra.mxu0 %v1303
    %v1630 = vpop.f32.mrf.mxu0
    %v1631 = vadd.f32 %v1212, %v1630
    %v1632 = vpop.f32.mrf.mxu0
    %v1633 = vadd.f32 %v1217, %v1632
    %1634 = vmatmul.bf16.gmra.mxu0 %v1304
    %v1635 = vpop.f32.mrf.mxu0
    %v1636 = vadd.f32 %v1222, %v1635
    %v1637 = vpop.f32.mrf.mxu0
    %v1638 = vadd.f32 %v1227, %v1637
    %1639 = vmatmul.bf16.gmra.mxu0 %v1305
    %v1640 = vpop.f32.mrf.mxu0
    %v1641 = vadd.f32 %v1232, %v1640
    %v1642 = vpop.f32.mrf.mxu0
    %v1643 = vadd.f32 %v1237, %v1642
    %1644 = vmatmul.bf16.gmra.mxu0 %v1306
    %v1645 = vpop.f32.mrf.mxu0
    %v1646 = vadd.f32 %v1242, %v1645
    %v1647 = vpop.f32.mrf.mxu0
    %v1648 = vadd.f32 %v1247, %v1647
    %1649 = vmatmul.bf16.gmra.mxu0 %v1307
    %v1650 = vpop.f32.mrf.mxu0
    %v1651 = vadd.f32 %v1252, %v1650
    %v1652 = vpop.f32.mrf.mxu0
    %v1653 = vadd.f32 %v1257, %v1652
    %1654 = vmatmul.bf16.gmra.mxu0 %v1308
    %v1655 = vpop.f32.mrf.mxu0
    %v1656 = vadd.f32 %v1262, %v1655
    %v1657 = vpop.f32.mrf.mxu0
    %v1658 = vadd.f32 %v1267, %v1657
    %1659 = vdwg.mxu0
    %1660 = vmatpush.bf16.msra.mxu0 %v1156
    %1661 = vmatpush.bf16.msra.mxu0 %v1148
    %1662 = vmatpush.bf16.msra.mxu0 %v1140
    %1663 = vmatpush.bf16.msra.mxu0 %v1132
    %1664 = vmatpush.bf16.msra.mxu0 %v1124
    %1665 = vmatpush.bf16.msra.mxu0 %v1116
    %1666 = vmatpush.bf16.msra.mxu0 %v1108
    %1667 = vmatpush.bf16.msra.mxu0 %v1100
    %1668 = vmatmul.bf16.gmra.mxu0 %v1301
    %v1669 = vpop.f32.mrf.mxu0
    %v1670 = vadd.f32 %v1192, %v1669
    %v1671 = vpop.f32.mrf.mxu0
    %v1672 = vadd.f32 %v1197, %v1671
    %1673 = vmatmul.bf16.gmra.mxu0 %v1302
    %v1674 = vpop.f32.mrf.mxu0
    %v1675 = vadd.f32 %v1202, %v1674
    %v1676 = vpop.f32.mrf.mxu0
    %v1677 = vadd.f32 %v1207, %v1676
    %1678 = vmatmul.bf16.gmra.mxu0 %v1303
    %v1679 = vpop.f32.mrf.mxu0
    %v1680 = vadd.f32 %v1212, %v1679
    %v1681 = vpop.f32.mrf.mxu0
    %v1682 = vadd.f32 %v1217, %v1681
    %1683 = vmatmul.bf16.gmra.mxu0 %v1304
    %v1684 = vpop.f32.mrf.mxu0
    %v1685 = vadd.f32 %v1222, %v1684
    %v1686 = vpop.f32.mrf.mxu0
    %v1687 = vadd.f32 %v1227, %v1686
    %1688 = vmatmul.bf16.gmra.mxu0 %v1305
    %v1689 = vpop.f32.mrf.mxu0
    %v1690 = vadd.f32 %v1232, %v1689
    %v1691 = vpop.f32.mrf.mxu0
    %v1692 = vadd.f32 %v1237, %v1691
    %1693 = vmatmul.bf16.gmra.mxu0 %v1306
    %v1694 = vpop.f32.mrf.mxu0
    %v1695 = vadd.f32 %v1242, %v1694
    %v1696 = vpop.f32.mrf.mxu0
    %v1697 = vadd.f32 %v1247, %v1696
    %1698 = vmatmul.bf16.gmra.mxu0 %v1307
    %v1699 = vpop.f32.mrf.mxu0
    %v1700 = vadd.f32 %v1252, %v1699
    %v1701 = vpop.f32.mrf.mxu0
    %v1702 = vadd.f32 %v1257, %v1701
    %1703 = vmatmul.bf16.gmra.mxu0 %v1308
    %v1704 = vpop.f32.mrf.mxu0
    %v1705 = vadd.f32 %v1262, %v1704
    %v1706 = vpop.f32.mrf.mxu0
    %v1707 = vadd.f32 %v1267, %v1706
    %1708 = vdwg.mxu0
    %v1709 = vmul.f32 %v1327, 0.01
    %v1710 = vmul.f32 %v1376, 0.01
    %v1711 = vmul.f32 %v1425, 0.01
    %v1712 = vmul.f32 %v1474, 0.01
    %v1713 = vmul.f32 %v1523, 0.01
    %v1714 = vmul.f32 %v1572, 0.01
    %v1715 = vmul.f32 %v1621, 0.01
    %v1716 = vmul.f32 %v1670, 0.01
    %v1717 = vmul.f32 %v1329, 0.01
    %v1718 = vmul.f32 %v1378, 0.01
    %v1719 = vmul.f32 %v1427, 0.01
    %v1720 = vmul.f32 %v1476, 0.01
    %v1721 = vmul.f32 %v1525, 0.01
    %v1722 = vmul.f32 %v1574, 0.01
    %v1723 = vmul.f32 %v1623, 0.01
    %v1724 = vmul.f32 %v1672, 0.01
    %v1725 = vmul.f32 %v1332, 0.01
    %v1726 = vmul.f32 %v1381, 0.01
    %v1727 = vmul.f32 %v1430, 0.01
    %v1728 = vmul.f32 %v1479, 0.01
    %v1729 = vmul.f32 %v1528, 0.01
    %v1730 = vmul.f32 %v1577, 0.01
    %v1731 = vmul.f32 %v1626, 0.01
    %v1732 = vmul.f32 %v1675, 0.01
    %v1733 = vmul.f32 %v1334, 0.01
    %v1734 = vmul.f32 %v1383, 0.01
    %v1735 = vmul.f32 %v1432, 0.01
    %v1736 = vmul.f32 %v1481, 0.01
    %v1737 = vmul.f32 %v1530, 0.01
    %v1738 = vmul.f32 %v1579, 0.01
    %v1739 = vmul.f32 %v1628, 0.01
    %v1740 = vmul.f32 %v1677, 0.01
    %v1741 = vmul.f32 %v1337, 0.01
    %v1742 = vmul.f32 %v1386, 0.01
    %v1743 = vmul.f32 %v1435, 0.01
    %v1744 = vmul.f32 %v1484, 0.01
    %v1745 = vmul.f32 %v1533, 0.01
    %v1746 = vmul.f32 %v1582, 0.01
    %v1747 = vmul.f32 %v1631, 0.01
    %v1748 = vmul.f32 %v1680, 0.01
    %v1749 = vmul.f32 %v1339, 0.01
    %v1750 = vmul.f32 %v1388, 0.01
    %v1751 = vmul.f32 %v1437, 0.01
    %v1752 = vmul.f32 %v1486, 0.01
    %v1753 = vmul.f32 %v1535, 0.01
    %v1754 = vmul.f32 %v1584, 0.01
    %v1755 = vmul.f32 %v1633, 0.01
    %v1756 = vmul.f32 %v1682, 0.01
    %v1757 = vmul.f32 %v1342, 0.01
    %v1758 = vmul.f32 %v1391, 0.01
    %v1759 = vmul.f32 %v1440, 0.01
    %v1760 = vmul.f32 %v1489, 0.01
    %v1761 = vmul.f32 %v1538, 0.01
    %v1762 = vmul.f32 %v1587, 0.01
    %v1763 = vmul.f32 %v1636, 0.01
    %v1764 = vmul.f32 %v1685, 0.01
    %v1765 = vmul.f32 %v1344, 0.01
    %v1766 = vmul.f32 %v1393, 0.01
    %v1767 = vmul.f32 %v1442, 0.01
    %v1768 = vmul.f32 %v1491, 0.01
    %v1769 = vmul.f32 %v1540, 0.01
    %v1770 = vmul.f32 %v1589, 0.01
    %v1771 = vmul.f32 %v1638, 0.01
    %v1772 = vmul.f32 %v1687, 0.01
    %v1773 = vmul.f32 %v1347, 0.01
    %v1774 = vmul.f32 %v1396, 0.01
    %v1775 = vmul.f32 %v1445, 0.01
    %v1776 = vmul.f32 %v1494, 0.01
    %v1777 = vmul.f32 %v1543, 0.01
    %v1778 = vmul.f32 %v1592, 0.01
    %v1779 = vmul.f32 %v1641, 0.01
    %v1780 = vmul.f32 %v1690, 0.01
    %v1781 = vmul.f32 %v1349, 0.01
    %v1782 = vmul.f32 %v1398, 0.01
    %v1783 = vmul.f32 %v1447, 0.01
    %v1784 = vmul.f32 %v1496, 0.01
    %v1785 = vmul.f32 %v1545, 0.01
    %v1786 = vmul.f32 %v1594, 0.01
    %v1787 = vmul.f32 %v1643, 0.01
    %v1788 = vmul.f32 %v1692, 0.01
    %v1789 = vmul.f32 %v1352, 0.01
    %v1790 = vmul.f32 %v1401, 0.01
    %v1791 = vmul.f32 %v1450, 0.01
    %v1792 = vmul.f32 %v1499, 0.01
    %v1793 = vmul.f32 %v1548, 0.01
    %v1794 = vmul.f32 %v1597, 0.01
    %v1795 = vmul.f32 %v1646, 0.01
    %v1796 = vmul.f32 %v1695, 0.01
    %v1797 = vmul.f32 %v1354, 0.01
    %v1798 = vmul.f32 %v1403, 0.01
    %v1799 = vmul.f32 %v1452, 0.01
    %v1800 = vmul.f32 %v1501, 0.01
    %v1801 = vmul.f32 %v1550, 0.01
    %v1802 = vmul.f32 %v1599, 0.01
    %v1803 = vmul.f32 %v1648, 0.01
    %v1804 = vmul.f32 %v1697, 0.01
    %v1805 = vmul.f32 %v1357, 0.01
    %v1806 = vmul.f32 %v1406, 0.01
    %v1807 = vmul.f32 %v1455, 0.01
    %v1808 = vmul.f32 %v1504, 0.01
    %v1809 = vmul.f32 %v1553, 0.01
    %v1810 = vmul.f32 %v1602, 0.01
    %v1811 = vmul.f32 %v1651, 0.01
    %v1812 = vmul.f32 %v1700, 0.01
    %v1813 = vmul.f32 %v1359, 0.01
    %v1814 = vmul.f32 %v1408, 0.01
    %v1815 = vmul.f32 %v1457, 0.01
    %v1816 = vmul.f32 %v1506, 0.01
    %v1817 = vmul.f32 %v1555, 0.01
    %v1818 = vmul.f32 %v1604, 0.01
    %v1819 = vmul.f32 %v1653, 0.01
    %v1820 = vmul.f32 %v1702, 0.01
    %v1821 = vmul.f32 %v1362, 0.01
    %v1822 = vmul.f32 %v1411, 0.01
    %v1823 = vmul.f32 %v1460, 0.01
    %v1824 = vmul.f32 %v1509, 0.01
    %v1825 = vmul.f32 %v1558, 0.01
    %v1826 = vmul.f32 %v1607, 0.01
    %v1827 = vmul.f32 %v1656, 0.01
    %v1828 = vmul.f32 %v1705, 0.01
    %v1829 = vmul.f32 %v1364, 0.01
    %v1830 = vmul.f32 %v1413, 0.01
    %v1831 = vmul.f32 %v1462, 0.01
    %v1832 = vmul.f32 %v1511, 0.01
    %v1833 = vmul.f32 %v1560, 0.01
    %v1834 = vmul.f32 %v1609, 0.01
    %v1835 = vmul.f32 %v1658, 0.01
    %v1836 = vmul.f32 %v1707, 0.01
    %v1837 = vmax.f32 %v1327, %v1709
    %v1838 = vmax.f32 %v1376, %v1710
    %v1839 = vmax.f32 %v1425, %v1711
    %v1840 = vmax.f32 %v1474, %v1712
    %v1841 = vmax.f32 %v1523, %v1713
    %v1842 = vmax.f32 %v1572, %v1714
    %v1843 = vmax.f32 %v1621, %v1715
    %v1844 = vmax.f32 %v1670, %v1716
    %v1845 = vmax.f32 %v1329, %v1717
    %v1846 = vmax.f32 %v1378, %v1718
    %v1847 = vmax.f32 %v1427, %v1719
    %v1848 = vmax.f32 %v1476, %v1720
    %v1849 = vmax.f32 %v1525, %v1721
    %v1850 = vmax.f32 %v1574, %v1722
    %v1851 = vmax.f32 %v1623, %v1723
    %v1852 = vmax.f32 %v1672, %v1724
    %v1853 = vmax.f32 %v1332, %v1725
    %v1854 = vmax.f32 %v1381, %v1726
    %v1855 = vmax.f32 %v1430, %v1727
    %v1856 = vmax.f32 %v1479, %v1728
    %v1857 = vmax.f32 %v1528, %v1729
    %v1858 = vmax.f32 %v1577, %v1730
    %v1859 = vmax.f32 %v1626, %v1731
    %v1860 = vmax.f32 %v1675, %v1732
    %v1861 = vmax.f32 %v1334, %v1733
    %v1862 = vmax.f32 %v1383, %v1734
    %v1863 = vmax.f32 %v1432, %v1735
    %v1864 = vmax.f32 %v1481, %v1736
    %v1865 = vmax.f32 %v1530, %v1737
    %v1866 = vmax.f32 %v1579, %v1738
    %v1867 = vmax.f32 %v1628, %v1739
    %v1868 = vmax.f32 %v1677, %v1740
    %v1869 = vmax.f32 %v1337, %v1741
    %v1870 = vmax.f32 %v1386, %v1742
    %v1871 = vmax.f32 %v1435, %v1743
    %v1872 = vmax.f32 %v1484, %v1744
    %v1873 = vmax.f32 %v1533, %v1745
    %v1874 = vmax.f32 %v1582, %v1746
    %v1875 = vmax.f32 %v1631, %v1747
    %v1876 = vmax.f32 %v1680, %v1748
    %v1877 = vmax.f32 %v1339, %v1749
    %v1878 = vmax.f32 %v1388, %v1750
    %v1879 = vmax.f32 %v1437, %v1751
    %v1880 = vmax.f32 %v1486, %v1752
    %v1881 = vmax.f32 %v1535, %v1753
    %v1882 = vmax.f32 %v1584, %v1754
    %v1883 = vmax.f32 %v1633, %v1755
    %v1884 = vmax.f32 %v1682, %v1756
    %v1885 = vmax.f32 %v1342, %v1757
    %v1886 = vmax.f32 %v1391, %v1758
    %v1887 = vmax.f32 %v1440, %v1759
    %v1888 = vmax.f32 %v1489, %v1760
    %v1889 = vmax.f32 %v1538, %v1761
    %v1890 = vmax.f32 %v1587, %v1762
    %v1891 = vmax.f32 %v1636, %v1763
    %v1892 = vmax.f32 %v1685, %v1764
    %v1893 = vmax.f32 %v1344, %v1765
    %v1894 = vmax.f32 %v1393, %v1766
    %v1895 = vmax.f32 %v1442, %v1767
    %v1896 = vmax.f32 %v1491, %v1768
    %v1897 = vmax.f32 %v1540, %v1769
    %v1898 = vmax.f32 %v1589, %v1770
    %v1899 = vmax.f32 %v1638, %v1771
    %v1900 = vmax.f32 %v1687, %v1772
    %v1901 = vmax.f32 %v1347, %v1773
    %v1902 = vmax.f32 %v1396, %v1774
    %v1903 = vmax.f32 %v1445, %v1775
    %v1904 = vmax.f32 %v1494, %v1776
    %v1905 = vmax.f32 %v1543, %v1777
    %v1906 = vmax.f32 %v1592, %v1778
    %v1907 = vmax.f32 %v1641, %v1779
    %v1908 = vmax.f32 %v1690, %v1780
    %v1909 = vmax.f32 %v1349, %v1781
    %v1910 = vmax.f32 %v1398, %v1782
    %v1911 = vmax.f32 %v1447, %v1783
    %v1912 = vmax.f32 %v1496, %v1784
    %v1913 = vmax.f32 %v1545, %v1785
    %v1914 = vmax.f32 %v1594, %v1786
    %v1915 = vmax.f32 %v1643, %v1787
    %v1916 = vmax.f32 %v1692, %v1788
    %v1917 = vmax.f32 %v1352, %v1789
    %v1918 = vmax.f32 %v1401, %v1790
    %v1919 = vmax.f32 %v1450, %v1791
    %v1920 = vmax.f32 %v1499, %v1792
    %v1921 = vmax.f32 %v1548, %v1793
    %v1922 = vmax.f32 %v1597, %v1794
    %v1923 = vmax.f32 %v1646, %v1795
    %v1924 = vmax.f32 %v1695, %v1796
    %v1925 = vmax.f32 %v1354, %v1797
    %v1926 = vmax.f32 %v1403, %v1798
    %v1927 = vmax.f32 %v1452, %v1799
    %v1928 = vmax.f32 %v1501, %v1800
    %v1929 = vmax.f32 %v1550, %v1801
    %v1930 = vmax.f32 %v1599, %v1802
    %v1931 = vmax.f32 %v1648, %v1803
    %v1932 = vmax.f32 %v1697, %v1804
    %v1933 = vmax.f32 %v1357, %v1805
    %v1934 = vmax.f32 %v1406, %v1806
    %v1935 = vmax.f32 %v1455, %v1807
    %v1936 = vmax.f32 %v1504, %v1808
    %v1937 = vmax.f32 %v1553, %v1809
    %v1938 = vmax.f32 %v1602, %v1810
    %v1939 = vmax.f32 %v1651, %v1811
    %v1940 = vmax.f32 %v1700, %v1812
    %v1941 = vmax.f32 %v1359, %v1813
    %v1942 = vmax.f32 %v1408, %v1814
    %v1943 = vmax.f32 %v1457, %v1815
    %v1944 = vmax.f32 %v1506, %v1816
    %v1945 = vmax.f32 %v1555, %v1817
    %v1946 = vmax.f32 %v1604, %v1818
    %v1947 = vmax.f32 %v1653, %v1819
    %v1948 = vmax.f32 %v1702, %v1820
    %v1949 = vmax.f32 %v1362, %v1821
    %v1950 = vmax.f32 %v1411, %v1822
    %v1951 = vmax.f32 %v1460, %v1823
    %v1952 = vmax.f32 %v1509, %v1824
    %v1953 = vmax.f32 %v1558, %v1825
    %v1954 = vmax.f32 %v1607, %v1826
    %v1955 = vmax.f32 %v1656, %v1827
    %v1956 = vmax.f32 %v1705, %v1828
    %v1957 = vmax.f32 %v1364, %v1829
    %v1958 = vmax.f32 %v1413, %v1830
    %v1959 = vmax.f32 %v1462, %v1831
    %v1960 = vmax.f32 %v1511, %v1832
    %v1961 = vmax.f32 %v1560, %v1833
    %v1962 = vmax.f32 %v1609, %v1834
    %v1963 = vmax.f32 %v1658, %v1835
    %v1964 = vmax.f32 %v1707, %v1836
    %v1965 = vpack.c.bf16 %v1838, %v1837
    %v1966 = vpack.c.bf16 %v1840, %v1839
    %v1967 = vpack.c.bf16 %v1842, %v1841
    %v1968 = vpack.c.bf16 %v1844, %v1843
    %v1969 = vpack.c.bf16 %v1846, %v1845
    %v1970 = vpack.c.bf16 %v1848, %v1847
    %v1971 = vpack.c.bf16 %v1850, %v1849
    %v1972 = vpack.c.bf16 %v1852, %v1851
    %v1973 = vpack.c.bf16 %v1854, %v1853
    %v1974 = vpack.c.bf16 %v1856, %v1855
    %v1975 = vpack.c.bf16 %v1858, %v1857
    %v1976 = vpack.c.bf16 %v1860, %v1859
    %v1977 = vpack.c.bf16 %v1862, %v1861
    %v1978 = vpack.c.bf16 %v1864, %v1863
    %v1979 = vpack.c.bf16 %v1866, %v1865
    %v1980 = vpack.c.bf16 %v1868, %v1867
    %v1981 = vpack.c.bf16 %v1870, %v1869
    %v1982 = vpack.c.bf16 %v1872, %v1871
    %v1983 = vpack.c.bf16 %v1874, %v1873
    %v1984 = vpack.c.bf16 %v1876, %v1875
    %v1985 = vpack.c.bf16 %v1878, %v1877
    %v1986 = vpack.c.bf16 %v1880, %v1879
    %v1987 = vpack.c.bf16 %v1882, %v1881
    %v1988 = vpack.c.bf16 %v1884, %v1883
    %v1989 = vpack.c.bf16 %v1886, %v1885
    %v1990 = vpack.c.bf16 %v1888, %v1887
    %v1991 = vpack.c.bf16 %v1890, %v1889
    %v1992 = vpack.c.bf16 %v1892, %v1891
    %v1993 = vpack.c.bf16 %v1894, %v1893
    %v1994 = vpack.c.bf16 %v1896, %v1895
    %v1995 = vpack.c.bf16 %v1898, %v1897
    %v1996 = vpack.c.bf16 %v1900, %v1899
    %v1997 = vpack.c.bf16 %v1902, %v1901
    %v1998 = vpack.c.bf16 %v1904, %v1903
    %v1999 = vpack.c.bf16 %v1906, %v1905
    %v2000 = vpack.c.bf16 %v1908, %v1907
    %v2001 = vpack.c.bf16 %v1910, %v1909
    %v2002 = vpack.c.bf16 %v1912, %v1911
    %v2003 = vpack.c.bf16 %v1914, %v1913
    %v2004 = vpack.c.bf16 %v1916, %v1915
    %v2005 = vpack.c.bf16 %v1918, %v1917
    %v2006 = vpack.c.bf16 %v1920, %v1919
    %v2007 = vpack.c.bf16 %v1922, %v1921
    %v2008 = vpack.c.bf16 %v1924, %v1923
    %v2009 = vpack.c.bf16 %v1926, %v1925
    %v2010 = vpack.c.bf16 %v1928, %v1927
    %v2011 = vpack.c.bf16 %v1930, %v1929
    %v2012 = vpack.c.bf16 %v1932, %v1931
    %v2013 = vpack.c.bf16 %v1934, %v1933
    %v2014 = vpack.c.bf16 %v1936, %v1935
    %v2015 = vpack.c.bf16 %v1938, %v1937
    %v2016 = vpack.c.bf16 %v1940, %v1939
    %v2017 = vpack.c.bf16 %v1942, %v1941
    %v2018 = vpack.c.bf16 %v1944, %v1943
    %v2019 = vpack.c.bf16 %v1946, %v1945
    %v2020 = vpack.c.bf16 %v1948, %v1947
    %v2021 = vpack.c.bf16 %v1950, %v1949
    %v2022 = vpack.c.bf16 %v1952, %v1951
    %v2023 = vpack.c.bf16 %v1954, %v1953
    %v2024 = vpack.c.bf16 %v1956, %v1955
    %v2025 = vpack.c.bf16 %v1958, %v1957
    %v2026 = vpack.c.bf16 %v1960, %v1959
    %v2027 = vpack.c.bf16 %v1962, %v1961
    %v2028 = vpack.c.bf16 %v1964, %v1963
    %v2029 = vld [vmem:[%s5] sm:$0x1]
    %s2030 = sld [smem:[#allocation2]]
    %v2031 = vstv %s2030
    %v2048 = vunpack.c.l.b16 %v1965
    %v2049 = vunpack.c.l.b16 %v1969
    %v2050 = vunpack.c.l.b16 %v1973
    %v2051 = vunpack.c.l.b16 %v1977
    %v2052 = vunpack.c.l.b16 %v1981
    %v2053 = vunpack.c.l.b16 %v1985
    %v2054 = vunpack.c.l.b16 %v1989
    %v2055 = vunpack.c.l.b16 %v1993
    %v2056 = vunpack.c.l.b16 %v1997
    %v2057 = vunpack.c.l.b16 %v2001
    %v2058 = vunpack.c.l.b16 %v2005
    %v2059 = vunpack.c.l.b16 %v2009
    %v2060 = vunpack.c.l.b16 %v2013
    %v2061 = vunpack.c.l.b16 %v2017
    %v2062 = vunpack.c.l.b16 %v2021
    %v2063 = vunpack.c.l.b16 %v2025
    %v2064 = vpack.c.b16 %v2049, %v2048
    %v2065 = vpack.c.b16 %v2051, %v2050
    %v2066 = vpack.c.b16 %v2053, %v2052
    %v2067 = vpack.c.b16 %v2055, %v2054
    %v2068 = vpack.c.b16 %v2057, %v2056
    %v2069 = vpack.c.b16 %v2059, %v2058
    %v2070 = vpack.c.b16 %v2061, %v2060
    %v2071 = vpack.c.b16 %v2063, %v2062
    %2080 = vmatpush.bf16.msra.mxu0 %v2071
    %2081 = vmatpush.bf16.msra.mxu0 %v2070
    %2082 = vmatpush.bf16.msra.mxu0 %v2069
    %2083 = vmatpush.bf16.msra.mxu0 %v2068
    %2084 = vmatpush.bf16.msra.mxu0 %v2067
    %2085 = vmatpush.bf16.msra.mxu0 %v2066
    %2086 = vmatpush.bf16.msra.mxu0 %v2065
    %2087 = vmatpush.bf16.msra.mxu0 %v2064
    %2088 = vmatmul.bf16.gmra.mxu0 %v2029
    %v2089 = vpop.f32.mrf.mxu0
    %v2090 = vadd.f32 %v2031, %v2089
    %v2091 = vpop.f32.mrf.mxu0
    %2092 = vdwg.mxu0
    %2093 = vst [vmem:[#allocation6] sm:$0x1] %v2090
    %v2094 = vunpack.c.h.b16 %v1965
    %v2095 = vunpack.c.h.b16 %v1969
    %v2096 = vunpack.c.h.b16 %v1973
    %v2097 = vunpack.c.h.b16 %v1977
    %v2098 = vunpack.c.h.b16 %v1981
    %v2099 = vunpack.c.h.b16 %v1985
    %v2100 = vunpack.c.h.b16 %v1989
    %v2101 = vunpack.c.h.b16 %v1993
    %v2102 = vunpack.c.h.b16 %v1997
    %v2103 = vunpack.c.h.b16 %v2001
    %v2104 = vunpack.c.h.b16 %v2005
    %v2105 = vunpack.c.h.b16 %v2009
    %v2106 = vunpack.c.h.b16 %v2013
    %v2107 = vunpack.c.h.b16 %v2017
    %v2108 = vunpack.c.h.b16 %v2021
    %v2109 = vunpack.c.h.b16 %v2025
    %v2110 = vpack.c.b16 %v2095, %v2094
    %v2111 = vpack.c.b16 %v2097, %v2096
    %v2112 = vpack.c.b16 %v2099, %v2098
    %v2113 = vpack.c.b16 %v2101, %v2100
    %v2114 = vpack.c.b16 %v2103, %v2102
    %v2115 = vpack.c.b16 %v2105, %v2104
    %v2116 = vpack.c.b16 %v2107, %v2106
    %v2117 = vpack.c.b16 %v2109, %v2108
    %2126 = vmatpush.bf16.msra.mxu0 %v2117
    %2127 = vmatpush.bf16.msra.mxu0 %v2116
    %2128 = vmatpush.bf16.msra.mxu0 %v2115
    %2129 = vmatpush.bf16.msra.mxu0 %v2114
    %2130 = vmatpush.bf16.msra.mxu0 %v2113
    %2131 = vmatpush.bf16.msra.mxu0 %v2112
    %2132 = vmatpush.bf16.msra.mxu0 %v2111
    %2133 = vmatpush.bf16.msra.mxu0 %v2110
    %2134 = vmatmul.bf16.gmra.mxu0 %v2029
    %v2135 = vpop.f32.mrf.mxu0
    %v2136 = vadd.f32 %v2031, %v2135
    %v2137 = vpop.f32.mrf.mxu0
    %2138 = vdwg.mxu0
    %2139 = vst [vmem:[#allocation6 + $0x1] sm:$0x1] %v2136
    %v2156 = vunpack.c.l.b16 %v1966
    %v2157 = vunpack.c.l.b16 %v1970
    %v2158 = vunpack.c.l.b16 %v1974
    %v2159 = vunpack.c.l.b16 %v1978
    %v2160 = vunpack.c.l.b16 %v1982
    %v2161 = vunpack.c.l.b16 %v1986
    %v2162 = vunpack.c.l.b16 %v1990
    %v2163 = vunpack.c.l.b16 %v1994
    %v2164 = vunpack.c.l.b16 %v1998
    %v2165 = vunpack.c.l.b16 %v2002
    %v2166 = vunpack.c.l.b16 %v2006
    %v2167 = vunpack.c.l.b16 %v2010
    %v2168 = vunpack.c.l.b16 %v2014
    %v2169 = vunpack.c.l.b16 %v2018
    %v2170 = vunpack.c.l.b16 %v2022
    %v2171 = vunpack.c.l.b16 %v2026
    %v2172 = vpack.c.b16 %v2157, %v2156
    %v2173 = vpack.c.b16 %v2159, %v2158
    %v2174 = vpack.c.b16 %v2161, %v2160
    %v2175 = vpack.c.b16 %v2163, %v2162
    %v2176 = vpack.c.b16 %v2165, %v2164
    %v2177 = vpack.c.b16 %v2167, %v2166
    %v2178 = vpack.c.b16 %v2169, %v2168
    %v2179 = vpack.c.b16 %v2171, %v2170
    %2188 = vmatpush.bf16.msra.mxu0 %v2179
    %2189 = vmatpush.bf16.msra.mxu0 %v2178
    %2190 = vmatpush.bf16.msra.mxu0 %v2177
    %2191 = vmatpush.bf16.msra.mxu0 %v2176
    %2192 = vmatpush.bf16.msra.mxu0 %v2175
    %2193 = vmatpush.bf16.msra.mxu0 %v2174
    %2194 = vmatpush.bf16.msra.mxu0 %v2173
    %2195 = vmatpush.bf16.msra.mxu0 %v2172
    %2196 = vmatmul.bf16.gmra.mxu0 %v2029
    %v2197 = vpop.f32.mrf.mxu0
    %v2198 = vadd.f32 %v2031, %v2197
    %v2199 = vpop.f32.mrf.mxu0
    %2200 = vdwg.mxu0
    %2201 = vst [vmem:[#allocation6 + $0x2] sm:$0x1] %v2198
    %v2202 = vunpack.c.h.b16 %v1966
    %v2203 = vunpack.c.h.b16 %v1970
    %v2204 = vunpack.c.h.b16 %v1974
    %v2205 = vunpack.c.h.b16 %v1978
    %v2206 = vunpack.c.h.b16 %v1982
    %v2207 = vunpack.c.h.b16 %v1986
    %v2208 = vunpack.c.h.b16 %v1990
    %v2209 = vunpack.c.h.b16 %v1994
    %v2210 = vunpack.c.h.b16 %v1998
    %v2211 = vunpack.c.h.b16 %v2002
    %v2212 = vunpack.c.h.b16 %v2006
    %v2213 = vunpack.c.h.b16 %v2010
    %v2214 = vunpack.c.h.b16 %v2014
    %v2215 = vunpack.c.h.b16 %v2018
    %v2216 = vunpack.c.h.b16 %v2022
    %v2217 = vunpack.c.h.b16 %v2026
    %v2218 = vpack.c.b16 %v2203, %v2202
    %v2219 = vpack.c.b16 %v2205, %v2204
    %v2220 = vpack.c.b16 %v2207, %v2206
    %v2221 = vpack.c.b16 %v2209, %v2208
    %v2222 = vpack.c.b16 %v2211, %v2210
    %v2223 = vpack.c.b16 %v2213, %v2212
    %v2224 = vpack.c.b16 %v2215, %v2214
    %v2225 = vpack.c.b16 %v2217, %v2216
    %2234 = vmatpush.bf16.msra.mxu0 %v2225
    %2235 = vmatpush.bf16.msra.mxu0 %v2224
    %2236 = vmatpush.bf16.msra.mxu0 %v2223
    %2237 = vmatpush.bf16.msra.mxu0 %v2222
    %2238 = vmatpush.bf16.msra.mxu0 %v2221
    %2239 = vmatpush.bf16.msra.mxu0 %v2220
    %2240 = vmatpush.bf16.msra.mxu0 %v2219
    %2241 = vmatpush.bf16.msra.mxu0 %v2218
    %2242 = vmatmul.bf16.gmra.mxu0 %v2029
    %v2243 = vpop.f32.mrf.mxu0
    %v2244 = vadd.f32 %v2031, %v2243
    %v2245 = vpop.f32.mrf.mxu0
    %2246 = vdwg.mxu0
    %2247 = vst [vmem:[#allocation6 + $0x3] sm:$0x1] %v2244
    %v2264 = vunpack.c.l.b16 %v1967
    %v2265 = vunpack.c.l.b16 %v1971
    %v2266 = vunpack.c.l.b16 %v1975
    %v2267 = vunpack.c.l.b16 %v1979
    %v2268 = vunpack.c.l.b16 %v1983
    %v2269 = vunpack.c.l.b16 %v1987
    %v2270 = vunpack.c.l.b16 %v1991
    %v2271 = vunpack.c.l.b16 %v1995
    %v2272 = vunpack.c.l.b16 %v1999
    %v2273 = vunpack.c.l.b16 %v2003
    %v2274 = vunpack.c.l.b16 %v2007
    %v2275 = vunpack.c.l.b16 %v2011
    %v2276 = vunpack.c.l.b16 %v2015
    %v2277 = vunpack.c.l.b16 %v2019
    %v2278 = vunpack.c.l.b16 %v2023
    %v2279 = vunpack.c.l.b16 %v2027
    %v2280 = vpack.c.b16 %v2265, %v2264
    %v2281 = vpack.c.b16 %v2267, %v2266
    %v2282 = vpack.c.b16 %v2269, %v2268
    %v2283 = vpack.c.b16 %v2271, %v2270
    %v2284 = vpack.c.b16 %v2273, %v2272
    %v2285 = vpack.c.b16 %v2275, %v2274
    %v2286 = vpack.c.b16 %v2277, %v2276
    %v2287 = vpack.c.b16 %v2279, %v2278
    %2296 = vmatpush.bf16.msra.mxu0 %v2287
    %2297 = vmatpush.bf16.msra.mxu0 %v2286
    %2298 = vmatpush.bf16.msra.mxu0 %v2285
    %2299 = vmatpush.bf16.msra.mxu0 %v2284
    %2300 = vmatpush.bf16.msra.mxu0 %v2283
    %2301 = vmatpush.bf16.msra.mxu0 %v2282
    %2302 = vmatpush.bf16.msra.mxu0 %v2281
    %2303 = vmatpush.bf16.msra.mxu0 %v2280
    %2304 = vmatmul.bf16.gmra.mxu0 %v2029
    %v2305 = vpop.f32.mrf.mxu0
    %v2306 = vadd.f32 %v2031, %v2305
    %v2307 = vpop.f32.mrf.mxu0
    %2308 = vdwg.mxu0
    %2309 = vst [vmem:[#allocation6 + $0x4] sm:$0x1] %v2306
    %v2310 = vunpack.c.h.b16 %v1967
    %v2311 = vunpack.c.h.b16 %v1971
    %v2312 = vunpack.c.h.b16 %v1975
    %v2313 = vunpack.c.h.b16 %v1979
    %v2314 = vunpack.c.h.b16 %v1983
    %v2315 = vunpack.c.h.b16 %v1987
    %v2316 = vunpack.c.h.b16 %v1991
    %v2317 = vunpack.c.h.b16 %v1995
    %v2318 = vunpack.c.h.b16 %v1999
    %v2319 = vunpack.c.h.b16 %v2003
    %v2320 = vunpack.c.h.b16 %v2007
    %v2321 = vunpack.c.h.b16 %v2011
    %v2322 = vunpack.c.h.b16 %v2015
    %v2323 = vunpack.c.h.b16 %v2019
    %v2324 = vunpack.c.h.b16 %v2023
    %v2325 = vunpack.c.h.b16 %v2027
    %v2326 = vpack.c.b16 %v2311, %v2310
    %v2327 = vpack.c.b16 %v2313, %v2312
    %v2328 = vpack.c.b16 %v2315, %v2314
    %v2329 = vpack.c.b16 %v2317, %v2316
    %v2330 = vpack.c.b16 %v2319, %v2318
    %v2331 = vpack.c.b16 %v2321, %v2320
    %v2332 = vpack.c.b16 %v2323, %v2322
    %v2333 = vpack.c.b16 %v2325, %v2324
    %2342 = vmatpush.bf16.msra.mxu0 %v2333
    %2343 = vmatpush.bf16.msra.mxu0 %v2332
    %2344 = vmatpush.bf16.msra.mxu0 %v2331
    %2345 = vmatpush.bf16.msra.mxu0 %v2330
    %2346 = vmatpush.bf16.msra.mxu0 %v2329
    %2347 = vmatpush.bf16.msra.mxu0 %v2328
    %2348 = vmatpush.bf16.msra.mxu0 %v2327
    %2349 = vmatpush.bf16.msra.mxu0 %v2326
    %2350 = vmatmul.bf16.gmra.mxu0 %v2029
    %v2351 = vpop.f32.mrf.mxu0
    %v2352 = vadd.f32 %v2031, %v2351
    %v2353 = vpop.f32.mrf.mxu0
    %2354 = vdwg.mxu0
    %2355 = vst [vmem:[#allocation6 + $0x5] sm:$0x1] %v2352
    %v2372 = vunpack.c.l.b16 %v1968
    %v2373 = vunpack.c.l.b16 %v1972
    %v2374 = vunpack.c.l.b16 %v1976
    %v2375 = vunpack.c.l.b16 %v1980
    %v2376 = vunpack.c.l.b16 %v1984
    %v2377 = vunpack.c.l.b16 %v1988
    %v2378 = vunpack.c.l.b16 %v1992
    %v2379 = vunpack.c.l.b16 %v1996
    %v2380 = vunpack.c.l.b16 %v2000
    %v2381 = vunpack.c.l.b16 %v2004
    %v2382 = vunpack.c.l.b16 %v2008
    %v2383 = vunpack.c.l.b16 %v2012
    %v2384 = vunpack.c.l.b16 %v2016
    %v2385 = vunpack.c.l.b16 %v2020
    %v2386 = vunpack.c.l.b16 %v2024
    %v2387 = vunpack.c.l.b16 %v2028
    %v2388 = vpack.c.b16 %v2373, %v2372
    %v2389 = vpack.c.b16 %v2375, %v2374
    %v2390 = vpack.c.b16 %v2377, %v2376
    %v2391 = vpack.c.b16 %v2379, %v2378
    %v2392 = vpack.c.b16 %v2381, %v2380
    %v2393 = vpack.c.b16 %v2383, %v2382
    %v2394 = vpack.c.b16 %v2385, %v2384
    %v2395 = vpack.c.b16 %v2387, %v2386
    %2404 = vmatpush.bf16.msra.mxu0 %v2395
    %2405 = vmatpush.bf16.msra.mxu0 %v2394
    %2406 = vmatpush.bf16.msra.mxu0 %v2393
    %2407 = vmatpush.bf16.msra.mxu0 %v2392
    %2408 = vmatpush.bf16.msra.mxu0 %v2391
    %2409 = vmatpush.bf16.msra.mxu0 %v2390
    %2410 = vmatpush.bf16.msra.mxu0 %v2389
    %2411 = vmatpush.bf16.msra.mxu0 %v2388
    %2412 = vmatmul.bf16.gmra.mxu0 %v2029
    %v2413 = vpop.f32.mrf.mxu0
    %v2414 = vadd.f32 %v2031, %v2413
    %v2415 = vpop.f32.mrf.mxu0
    %2416 = vdwg.mxu0
    %2417 = vst [vmem:[#allocation6 + $0x6] sm:$0x1] %v2414
    %v2418 = vunpack.c.h.b16 %v1968
    %v2419 = vunpack.c.h.b16 %v1972
    %v2420 = vunpack.c.h.b16 %v1976
    %v2421 = vunpack.c.h.b16 %v1980
    %v2422 = vunpack.c.h.b16 %v1984
    %v2423 = vunpack.c.h.b16 %v1988
    %v2424 = vunpack.c.h.b16 %v1992
    %v2425 = vunpack.c.h.b16 %v1996
    %v2426 = vunpack.c.h.b16 %v2000
    %v2427 = vunpack.c.h.b16 %v2004
    %v2428 = vunpack.c.h.b16 %v2008
    %v2429 = vunpack.c.h.b16 %v2012
    %v2430 = vunpack.c.h.b16 %v2016
    %v2431 = vunpack.c.h.b16 %v2020
    %v2432 = vunpack.c.h.b16 %v2024
    %v2433 = vunpack.c.h.b16 %v2028
    %v2434 = vpack.c.b16 %v2419, %v2418
    %v2435 = vpack.c.b16 %v2421, %v2420
    %v2436 = vpack.c.b16 %v2423, %v2422
    %v2437 = vpack.c.b16 %v2425, %v2424
    %v2438 = vpack.c.b16 %v2427, %v2426
    %v2439 = vpack.c.b16 %v2429, %v2428
    %v2440 = vpack.c.b16 %v2431, %v2430
    %v2441 = vpack.c.b16 %v2433, %v2432
    %2450 = vmatpush.bf16.msra.mxu0 %v2441
    %2451 = vmatpush.bf16.msra.mxu0 %v2440
    %2452 = vmatpush.bf16.msra.mxu0 %v2439
    %2453 = vmatpush.bf16.msra.mxu0 %v2438
    %2454 = vmatpush.bf16.msra.mxu0 %v2437
    %2455 = vmatpush.bf16.msra.mxu0 %v2436
    %2456 = vmatpush.bf16.msra.mxu0 %v2435
    %2457 = vmatpush.bf16.msra.mxu0 %v2434
    %2458 = vmatmul.bf16.gmra.mxu0 %v2029
    %v2459 = vpop.f32.mrf.mxu0
    %v2460 = vadd.f32 %v2031, %v2459
    %v2461 = vpop.f32.mrf.mxu0
    %2462 = vdwg.mxu0
    %2463 = vst [vmem:[#allocation6 + $0x7] sm:$0x1] %v2460
    // Predicated region
    $region34: #{tpu_custom_call.1} parent=1 // pred_check
      _
    $region35: #{tpu_custom_call.1} parent=1 // pred_check_branch
      %2465 = sbr.rel (0) target = $region37
    $region36: #{tpu_custom_call.1} parent=1 // pred_region
      %2467 = vsyncadd [#allocation5], 0
      %s2469 = sshll.u32 [#allocation6], 4
      %s2470 = int_to_ptr.vmem [resolvable:$true] %s2469
      %s2471 = sshll.u32 %s7, 4
      %s2472 = int_to_ptr.hbm [resolvable:$true] %s2471
      %2474 = dma.vmem_to_hbm [thread:$0]  %s2470, 128, %s2472, [#allocation5]
    $region37: #{tpu_custom_call.1} parent=1 // pred_fallthru
      _
    // Predicated region
    $region38: #{tpu_custom_call.1} parent=1 // pred_check
      _
    $region39: #{tpu_custom_call.1} parent=1 // pred_check_branch
      %2476 = sbr.rel (0) target = $region41
    $region40: #{tpu_custom_call.1} parent=1 // pred_region
      %2478 = dma.done [#allocation5], 128
    $region41: #{tpu_custom_call.1} parent=1 // pred_fallthru
      _
    %2479 = vsyncpa [#allocation4], 1
    %2480 = vsyncpa [#allocation5], 1

// kernel: tpu_custom_call.1
$region0: #{tpu_custom_call.1}
  #allocation0 [shape = 'u32[]', space=smem, size = 0x4, offset = 0x4, fixed_abs, tag = 'smem constant byte address 0x4 - core index']
  #allocation1 [shape = 'u32[72,128]{1,0:T(1,128)}', space=vmem, size = 0x9000, scoped, tag = 'internal scratch']
  #allocation2 [shape = 'f32[1,1]{1,0:T(1,128)S(6)}', space=smem, size = 0x200, scoped, tag = 'scoped memory for tpu_custom_call.1']
  %s0 = inlined_call_operand.hbm [shape: f32[1,1,112,1024], index: 0, kind: input, shape index: {}]
  %s1 = inlined_call_operand.vmem [shape: f32[128,112], index: 1, kind: input, shape index: {}]
  %s2 = inlined_call_operand.vmem [shape: f32[128,1], index: 2, kind: input, shape index: {}]
  %s3 = inlined_call_operand.vmem [shape: bf16[128,128], index: 3, kind: input, shape index: {}]
  %s4 = inlined_call_operand.vmem [shape: f32[128,1], index: 4, kind: input, shape index: {}]
  %s5 = inlined_call_operand.vmem [shape: bf16[1,128], index: 5, kind: input, shape index: {}]
  %s6 = inlined_call_operand.<no memory space> [shape: f32[1,1], index: 6, kind: input, shape index: {}]
  %s7 = inlined_call_operand.hbm [shape: f32[8,128], index: 7, kind: output, shape index: {}]
  %s8 = sld [smem:[#allocation0]]
  $region42: #{tpu_custom_call.1} parent=0
    _
  %s10 = ssub.s32 1, %s8
  %s11 = scalar_select 0, %s10, %s8
  %12 = sst [smem:[#allocation2]] %s6
  $region1: #{tpu_custom_call.1} parent=0
    #allocation3 [shape = 'u8[458752]{0}', space=vmem, size = 0x70000, scoped, tag = 'input window, operand 0, single buffered']
    #allocation4 [shape = 's32[1]{0}', space=sflag, size = 0x4, scoped, tag = 'scoped memory for tpu_custom_call.1']
    #allocation5 [shape = 's32[1]{0}', space=sflag, size = 0x4, scoped, tag = 'scoped memory for tpu_custom_call.1']
    #allocation6 [shape = 'u8[4096]{0}', space=vmem, size = 0x1000, scoped, tag = 'output window, operand 0, single buffered']
    %13 = vsyncpa [#allocation4], 0
    %14 = vsyncpa [#allocation5], 0
    // Predicated region
    $region2: #{tpu_custom_call.1} parent=1 // pred_check
      _
    $region3: #{tpu_custom_call.1} parent=1 // pred_check_branch
      %16 = sbr.rel (0) target = $region5
    $region4: #{tpu_custom_call.1} parent=1 // pred_region
      %18 = vsyncadd [#allocation4], 0
      %s19 = sshll.u32 %s0, 4
      %s20 = int_to_ptr.hbm [resolvable:$true] %s19
      %s21 = sshll.u32 [#allocation3], 4
      %s22 = int_to_ptr.vmem [resolvable:$true] %s21
      %27 = dma.hbm_to_vmem [thread:$0]  %s20, 14336, %s22, [#allocation4], 1024, 1024, 64
    $region5: #{tpu_custom_call.1} parent=1 // pred_fallthru
      _
    // Predicated region
    $region6: #{tpu_custom_call.1} parent=1 // pred_check
      _
    $region7: #{tpu_custom_call.1} parent=1 // pred_check_branch
      %29 = sbr.rel (0) target = $region9
    $region8: #{tpu_custom_call.1} parent=1 // pred_region
      _
    $region9: #{tpu_custom_call.1} parent=1 // pred_fallthru
      _
    // Predicated region
    $region10: #{tpu_custom_call.1} parent=1 // pred_check
      _
    $region11: #{tpu_custom_call.1} parent=1 // pred_check_branch
      %31 = sbr.rel (0) target = $region13
    $region12: #{tpu_custom_call.1} parent=1 // pred_region
      _
    $region13: #{tpu_custom_call.1} parent=1 // pred_fallthru
      _
    // Predicated region
    $region14: #{tpu_custom_call.1} parent=1 // pred_check
      _
    $region15: #{tpu_custom_call.1} parent=1 // pred_check_branch
      %33 = sbr.rel (0) target = $region17
    $region16: #{tpu_custom_call.1} parent=1 // pred_region
      _
    $region17: #{tpu_custom_call.1} parent=1 // pred_fallthru
      _
    // Predicated region
    $region18: #{tpu_custom_call.1} parent=1 // pred_check
      _
    $region19: #{tpu_custom_call.1} parent=1 // pred_check_branch
      %35 = sbr.rel (0) target = $region21
    $region20: #{tpu_custom_call.1} parent=1 // pred_region
      _
    $region21: #{tpu_custom_call.1} parent=1 // pred_fallthru
      _
    // Predicated region
    $region22: #{tpu_custom_call.1} parent=1 // pred_check
      _
    $region23: #{tpu_custom_call.1} parent=1 // pred_check_branch
      %37 = sbr.rel (0) target = $region25
    $region24: #{tpu_custom_call.1} parent=1 // pred_region
      _
    $region25: #{tpu_custom_call.1} parent=1 // pred_fallthru
      _
    // Predicated region
    $region26: #{tpu_custom_call.1} parent=1 // pred_check
      _
    $region27: #{tpu_custom_call.1} parent=1 // pred_check_branch
      %39 = sbr.rel (0) target = $region29
    $region28: #{tpu_custom_call.1} parent=1 // pred_region
      _
    $region29: #{tpu_custom_call.1} parent=1 // pred_fallthru
      _
    // Predicated region
    $region30: #{tpu_custom_call.1} parent=1 // pred_check
      _
    $region31: #{tpu_custom_call.1} parent=1 // pred_check_branch
      %41 = sbr.rel (0) target = $region33
    $region32: #{tpu_custom_call.1} parent=1 // pred_region
      %43 = dma.done [#allocation4], 14336
    $region33: #{tpu_custom_call.1} parent=1 // pred_fallthru
      _
    %v44 = vld [vmem:[#allocation3] sm:$0xff]
    %v45 = vld [vmem:[#allocation3 + $0x8] sm:$0xff]
    %v46 = vld [vmem:[#allocation3 + $0x10] sm:$0xff]
    %v47 = vld [vmem:[#allocation3 + $0x18] sm:$0xff]
    %v48 = vld [vmem:[#allocation3 + $0x20] sm:$0xff]
    %v49 = vld [vmem:[#allocation3 + $0x28] sm:$0xff]
    %v50 = vld [vmem:[#allocation3 + $0x30] sm:$0xff]
    %v51 = vld [vmem:[#allocation3 + $0x38] sm:$0xff]
    %v52 = vld [vmem:[#allocation3 + $0x40] sm:$0xff]
    %v53 = vld [vmem:[#allocation3 + $0x48] sm:$0xff]
    %v54 = vld [vmem:[#allocation3 + $0x50] sm:$0xff]
    %v55 = vld [vmem:[#allocation3 + $0x58] sm:$0xff]
    %v56 = vld [vmem:[#allocation3 + $0x60] sm:$0xff]
    %v57 = vld [vmem:[#allocation3 + $0x68] sm:$0xff]
    %v58 = vld [vmem:[#allocation3 + $0x70] sm:$0xff]
    %v59 = vld [vmem:[#allocation3 + $0x78] sm:$0xff]
    %v60 = vld [vmem:[#allocation3 + $0x80] sm:$0xff]
    %v61 = vld [vmem:[#allocation3 + $0x88] sm:$0xff]
    %v62 = vld [vmem:[#allocation3 + $0x90] sm:$0xff]
    %v63 = vld [vmem:[#allocation3 + $0x98] sm:$0xff]
    %v64 = vld [vmem:[#allocation3 + $0xa0] sm:$0xff]
    %v65 = vld [vmem:[#allocation3 + $0xa8] sm:$0xff]
    %v66 = vld [vmem:[#allocation3 + $0xb0] sm:$0xff]
    %v67 = vld [vmem:[#allocation3 + $0xb8] sm:$0xff]
    %v68 = vld [vmem:[#allocation3 + $0xc0] sm:$0xff]
    %v69 = vld [vmem:[#allocation3 + $0xc8] sm:$0xff]
    %v70 = vld [vmem:[#allocation3 + $0xd0] sm:$0xff]
    %v71 = vld [vmem:[#allocation3 + $0xd8] sm:$0xff]
    %v72 = vld [vmem:[#allocation3 + $0xe0] sm:$0xff]
    %v73 = vld [vmem:[#allocation3 + $0xe8] sm:$0xff]
    %v74 = vld [vmem:[#allocation3 + $0xf0] sm:$0xff]
    %v75 = vld [vmem:[#allocation3 + $0xf8] sm:$0xff]
    %v76 = vld [vmem:[#allocation3 + $0x100] sm:$0xff]
    %v77 = vld [vmem:[#allocation3 + $0x108] sm:$0xff]
    %v78 = vld [vmem:[#allocation3 + $0x110] sm:$0xff]
    %v79 = vld [vmem:[#allocation3 + $0x118] sm:$0xff]
    %v80 = vld [vmem:[#allocation3 + $0x120] sm:$0xff]
    %v81 = vld [vmem:[#allocation3 + $0x128] sm:$0xff]
    %v82 = vld [vmem:[#allocation3 + $0x130] sm:$0xff]
    %v83 = vld [vmem:[#allocation3 + $0x138] sm:$0xff]
    %v84 = vld [vmem:[#allocation3 + $0x140] sm:$0xff]
    %v85 = vld [vmem:[#allocation3 + $0x148] sm:$0xff]
    %v86 = vld [vmem:[#allocation3 + $0x150] sm:$0xff]
    %v87 = vld [vmem:[#allocation3 + $0x158] sm:$0xff]
    %v88 = vld [vmem:[#allocation3 + $0x160] sm:$0xff]
    %v89 = vld [vmem:[#allocation3 + $0x168] sm:$0xff]
    %v90 = vld [vmem:[#allocation3 + $0x170] sm:$0xff]
    %v91 = vld [vmem:[#allocation3 + $0x178] sm:$0xff]
    %v92 = vld [vmem:[#allocation3 + $0x180] sm:$0xff]
    %v93 = vld [vmem:[#allocation3 + $0x188] sm:$0xff]
    %v94 = vld [vmem:[#allocation3 + $0x190] sm:$0xff]
    %v95 = vld [vmem:[#allocation3 + $0x198] sm:$0xff]
    %v96 = vld [vmem:[#allocation3 + $0x1a0] sm:$0xff]
    %v97 = vld [vmem:[#allocation3 + $0x1a8] sm:$0xff]
    %v98 = vld [vmem:[#allocation3 + $0x1b0] sm:$0xff]
    %v99 = vld [vmem:[#allocation3 + $0x1b8] sm:$0xff]
    %v100 = vld [vmem:[#allocation3 + $0x1c0] sm:$0xff]
    %v101 = vld [vmem:[#allocation3 + $0x1c8] sm:$0xff]
    %v102 = vld [vmem:[#allocation3 + $0x1d0] sm:$0xff]
    %v103 = vld [vmem:[#allocation3 + $0x1d8] sm:$0xff]
    %v104 = vld [vmem:[#allocation3 + $0x1e0] sm:$0xff]
    %v105 = vld [vmem:[#allocation3 + $0x1e8] sm:$0xff]
    %v106 = vld [vmem:[#allocation3 + $0x1f0] sm:$0xff]
    %v107 = vld [vmem:[#allocation3 + $0x1f8] sm:$0xff]
    %v108 = vld [vmem:[#allocation3 + $0x200] sm:$0xff]
    %v109 = vld [vmem:[#allocation3 + $0x208] sm:$0xff]
    %v110 = vld [vmem:[#allocation3 + $0x210] sm:$0xff]
    %v111 = vld [vmem:[#allocation3 + $0x218] sm:$0xff]
    %v112 = vld [vmem:[#allocation3 + $0x220] sm:$0xff]
    %v113 = vld [vmem:[#allocation3 + $0x228] sm:$0xff]
    %v114 = vld [vmem:[#allocation3 + $0x230] sm:$0xff]
    %v115 = vld [vmem:[#allocation3 + $0x238] sm:$0xff]
    %v116 = vld [vmem:[#allocation3 + $0x240] sm:$0xff]
    %v117 = vld [vmem:[#allocation3 + $0x248] sm:$0xff]
    %v118 = vld [vmem:[#allocation3 + $0x250] sm:$0xff]
    %v119 = vld [vmem:[#allocation3 + $0x258] sm:$0xff]
    %v120 = vld [vmem:[#allocation3 + $0x260] sm:$0xff]
    %v121 = vld [vmem:[#allocation3 + $0x268] sm:$0xff]
    %v122 = vld [vmem:[#allocation3 + $0x270] sm:$0xff]
    %v123 = vld [vmem:[#allocation3 + $0x278] sm:$0xff]
    %v124 = vld [vmem:[#allocation3 + $0x280] sm:$0xff]
    %v125 = vld [vmem:[#allocation3 + $0x288] sm:$0xff]
    %v126 = vld [vmem:[#allocation3 + $0x290] sm:$0xff]
    %v127 = vld [vmem:[#allocation3 + $0x298] sm:$0xff]
    %v128 = vld [vmem:[#allocation3 + $0x2a0] sm:$0xff]
    %v129 = vld [vmem:[#allocation3 + $0x2a8] sm:$0xff]
    %v130 = vld [vmem:[#allocation3 + $0x2b0] sm:$0xff]
    %v131 = vld [vmem:[#allocation3 + $0x2b8] sm:$0xff]
    %v132 = vld [vmem:[#allocation3 + $0x2c0] sm:$0xff]
    %v133 = vld [vmem:[#allocation3 + $0x2c8] sm:$0xff]
    %v134 = vld [vmem:[#allocation3 + $0x2d0] sm:$0xff]
    %v135 = vld [vmem:[#allocation3 + $0x2d8] sm:$0xff]
    %v136 = vld [vmem:[#allocation3 + $0x2e0] sm:$0xff]
    %v137 = vld [vmem:[#allocation3 + $0x2e8] sm:$0xff]
    %v138 = vld [vmem:[#allocation3 + $0x2f0] sm:$0xff]
    %v139 = vld [vmem:[#allocation3 + $0x2f8] sm:$0xff]
    %v140 = vld [vmem:[#allocation3 + $0x300] sm:$0xff]
    %v141 = vld [vmem:[#allocation3 + $0x308] sm:$0xff]
    %v142 = vld [vmem:[#allocation3 + $0x310] sm:$0xff]
    %v143 = vld [vmem:[#allocation3 + $0x318] sm:$0xff]
    %v144 = vld [vmem:[#allocation3 + $0x320] sm:$0xff]
    %v145 = vld [vmem:[#allocation3 + $0x328] sm:$0xff]
    %v146 = vld [vmem:[#allocation3 + $0x330] sm:$0xff]
    %v147 = vld [vmem:[#allocation3 + $0x338] sm:$0xff]
    %v148 = vld [vmem:[#allocation3 + $0x340] sm:$0xff]
    %v149 = vld [vmem:[#allocation3 + $0x348] sm:$0xff]
    %v150 = vld [vmem:[#allocation3 + $0x350] sm:$0xff]
    %v151 = vld [vmem:[#allocation3 + $0x358] sm:$0xff]
    %v152 = vld [vmem:[#allocation3 + $0x360] sm:$0xff]
    %v153 = vld [vmem:[#allocation3 + $0x368] sm:$0xff]
    %v154 = vld [vmem:[#allocation3 + $0x370] sm:$0xff]
    %v155 = vld [vmem:[#allocation3 + $0x378] sm:$0xff]
    %v156 = vld [vmem:[%s1] sm:$0xff]
    %v157 = vld [vmem:[%s1 + $0x8] sm:$0xff]
    %v158 = vld [vmem:[%s1 + $0x10] sm:$0xff]
    %v159 = vld [vmem:[%s1 + $0x18] sm:$0xff]
    %v160 = vld [vmem:[%s1 + $0x20] sm:$0xff]
    %v161 = vld [vmem:[%s1 + $0x28] sm:$0xff]
    %v162 = vld [vmem:[%s1 + $0x30] sm:$0xff]
    %v163 = vld [vmem:[%s1 + $0x38] sm:$0xff]
    %v164 = vld [vmem:[%s1 + $0x40] sm:$0xff]
    %v165 = vld [vmem:[%s1 + $0x48] sm:$0xff]
    %v166 = vld [vmem:[%s1 + $0x50] sm:$0xff]
    %v167 = vld [vmem:[%s1 + $0x58] sm:$0xff]
    %v168 = vld [vmem:[%s1 + $0x60] sm:$0xff]
    %v169 = vld [vmem:[%s1 + $0x68] sm:$0xff]
    %v170 = vld [vmem:[%s1 + $0x70] sm:$0xff]
    %v171 = vld [vmem:[%s1 + $0x78] sm:$0xff]
    %v172 = vld [vmem:[%s2] sm:$0xff]
    %v173 = vld [vmem:[%s2 + $0x8] sm:$0xff]
    %v174 = vld [vmem:[%s2 + $0x10] sm:$0xff]
    %v175 = vld [vmem:[%s2 + $0x18] sm:$0xff]
    %v176 = vld [vmem:[%s2 + $0x20] sm:$0xff]
    %v177 = vld [vmem:[%s2 + $0x28] sm:$0xff]
    %v178 = vld [vmem:[%s2 + $0x30] sm:$0xff]
    %v179 = vld [vmem:[%s2 + $0x38] sm:$0xff]
    %v180 = vld [vmem:[%s2 + $0x40] sm:$0xff]
    %v181 = vld [vmem:[%s2 + $0x48] sm:$0xff]
    %v182 = vld [vmem:[%s2 + $0x50] sm:$0xff]
    %v183 = vld [vmem:[%s2 + $0x58] sm:$0xff]
    %v184 = vld [vmem:[%s2 + $0x60] sm:$0xff]
    %v185 = vld [vmem:[%s2 + $0x68] sm:$0xff]
    %v186 = vld [vmem:[%s2 + $0x70] sm:$0xff]
    %v187 = vld [vmem:[%s2 + $0x78] sm:$0xff]
    %189 = vset.pattern.permute.xlu0 0
    %190 = vperm.xlu0 %189, %v172
    %v191 = vpop.permute.xlu0 %190
    %194 = vset.pattern.permute.xlu0 0
    %195 = vperm.xlu0 %194, %v173
    %v196 = vpop.permute.xlu0 %195
    %199 = vset.pattern.permute.xlu0 0
    %200 = vperm.xlu0 %199, %v174
    %v201 = vpop.permute.xlu0 %200
    %204 = vset.pattern.permute.xlu0 0
    %205 = vperm.xlu0 %204, %v175
    %v206 = vpop.permute.xlu0 %205
    %209 = vset.pattern.permute.xlu0 0
    %210 = vperm.xlu0 %209, %v176
    %v211 = vpop.permute.xlu0 %210
    %214 = vset.pattern.permute.xlu0 0
    %215 = vperm.xlu0 %214, %v177
    %v216 = vpop.permute.xlu0 %215
    %219 = vset.pattern.permute.xlu0 0
    %220 = vperm.xlu0 %219, %v178
    %v221 = vpop.permute.xlu0 %220
    %224 = vset.pattern.permute.xlu0 0
    %225 = vperm.xlu0 %224, %v179
    %v226 = vpop.permute.xlu0 %225
    %229 = vset.pattern.permute.xlu0 0
    %230 = vperm.xlu0 %229, %v180
    %v231 = vpop.permute.xlu0 %230
    %234 = vset.pattern.permute.xlu0 0
    %235 = vperm.xlu0 %234, %v181
    %v236 = vpop.permute.xlu0 %235
    %239 = vset.pattern.permute.xlu0 0
    %240 = vperm.xlu0 %239, %v182
    %v241 = vpop.permute.xlu0 %240
    %244 = vset.pattern.permute.xlu0 0
    %245 = vperm.xlu0 %244, %v183
    %v246 = vpop.permute.xlu0 %245
    %249 = vset.pattern.permute.xlu0 0
    %250 = vperm.xlu0 %249, %v184
    %v251 = vpop.permute.xlu0 %250
    %254 = vset.pattern.permute.xlu0 0
    %255 = vperm.xlu0 %254, %v185
    %v256 = vpop.permute.xlu0 %255
    %259 = vset.pattern.permute.xlu0 0
    %260 = vperm.xlu0 %259, %v186
    %v261 = vpop.permute.xlu0 %260
    %264 = vset.pattern.permute.xlu0 0
    %265 = vperm.xlu0 %264, %v187
    %v266 = vpop.permute.xlu0 %265
    %vm268 = vcmask 916480
    %v270 = vsel %vm268, %v156, 0
    %v273 = vsel %vm268, %v157, 0
    %v276 = vsel %vm268, %v158, 0
    %v279 = vsel %vm268, %v159, 0
    %v282 = vsel %vm268, %v160, 0
    %v285 = vsel %vm268, %v161, 0
    %v288 = vsel %vm268, %v162, 0
    %v291 = vsel %vm268, %v163, 0
    %v294 = vsel %vm268, %v164, 0
    %v297 = vsel %vm268, %v165, 0
    %v300 = vsel %vm268, %v166, 0
    %v303 = vsel %vm268, %v167, 0
    %v306 = vsel %vm268, %v168, 0
    %v309 = vsel %vm268, %v169, 0
    %v312 = vsel %vm268, %v170, 0
    %v315 = vsel %vm268, %v171, 0
    %317 = vmatpush.msra.mxu0 0.0
    %318 = vmatpush.msra.mxu0 0.0
    %319 = vmatpush.msra.mxu0 %v148
    %320 = vmatpush.msra.mxu0 %v140
    %321 = vmatpush.msra.mxu0 %v132
    %322 = vmatpush.msra.mxu0 %v124
    %323 = vmatpush.msra.mxu0 %v116
    %324 = vmatpush.msra.mxu0 %v108
    %325 = vmatpush.msra.mxu0 %v100
    %326 = vmatpush.msra.mxu0 %v92
    %327 = vmatpush.msra.mxu0 %v84
    %328 = vmatpush.msra.mxu0 %v76
    %329 = vmatpush.msra.mxu0 %v68
    %330 = vmatpush.msra.mxu0 %v60
    %331 = vmatpush.msra.mxu0 %v52
    %332 = vmatpush.msra.mxu0 %v44
    %333 = vmatmul.f32.gmra.mxu0 %v270
    %v334 = vpop.f32.mrf.mxu0
    %v335 = vadd.f32 %v191, %v334
    %336 = vmatmul.f32.gmra.mxu0 %v273
    %v337 = vpop.f32.mrf.mxu0
    %v338 = vadd.f32 %v196, %v337
    %339 = vmatmul.f32.gmra.mxu0 %v276
    %v340 = vpop.f32.mrf.mxu0
    %v341 = vadd.f32 %v201, %v340
    %342 = vmatmul.f32.gmra.mxu0 %v279
    %v343 = vpop.f32.mrf.mxu0
    %v344 = vadd.f32 %v206, %v343
    %345 = vmatmul.f32.gmra.mxu0 %v282
    %v346 = vpop.f32.mrf.mxu0
    %v347 = vadd.f32 %v211, %v346
    %348 = vmatmul.f32.gmra.mxu0 %v285
    %v349 = vpop.f32.mrf.mxu0
    %v350 = vadd.f32 %v216, %v349
    %351 = vmatmul.f32.gmra.mxu0 %v288
    %v352 = vpop.f32.mrf.mxu0
    %v353 = vadd.f32 %v221, %v352
    %354 = vmatmul.f32.gmra.mxu0 %v291
    %v355 = vpop.f32.mrf.mxu0
    %v356 = vadd.f32 %v226, %v355
    %357 = vmatmul.f32.gmra.mxu0 %v294
    %v358 = vpop.f32.mrf.mxu0
    %v359 = vadd.f32 %v231, %v358
    %360 = vmatmul.f32.gmra.mxu0 %v297
    %v361 = vpop.f32.mrf.mxu0
    %v362 = vadd.f32 %v236, %v361
    %363 = vmatmul.f32.gmra.mxu0 %v300
    %v364 = vpop.f32.mrf.mxu0
    %v365 = vadd.f32 %v241, %v364
    %366 = vmatmul.f32.gmra.mxu0 %v303
    %v367 = vpop.f32.mrf.mxu0
    %v368 = vadd.f32 %v246, %v367
    %369 = vmatmul.f32.gmra.mxu0 %v306
    %v370 = vpop.f32.mrf.mxu0
    %v371 = vadd.f32 %v251, %v370
    %372 = vmatmul.f32.gmra.mxu0 %v309
    %v373 = vpop.f32.mrf.mxu0
    %v374 = vadd.f32 %v256, %v373
    %375 = vmatmul.f32.gmra.mxu0 %v312
    %v376 = vpop.f32.mrf.mxu0
    %v377 = vadd.f32 %v261, %v376
    %378 = vmatmul.f32.gmra.mxu0 %v315
    %v379 = vpop.f32.mrf.mxu0
    %v380 = vadd.f32 %v266, %v379
    %381 = vdwg.mxu0
    %382 = vmatpush.msra.mxu0 0.0
    %383 = vmatpush.msra.mxu0 0.0
    %384 = vmatpush.msra.mxu0 %v149
    %385 = vmatpush.msra.mxu0 %v141
    %386 = vmatpush.msra.mxu0 %v133
    %387 = vmatpush.msra.mxu0 %v125
    %388 = vmatpush.msra.mxu0 %v117
    %389 = vmatpush.msra.mxu0 %v109
    %390 = vmatpush.msra.mxu0 %v101
    %391 = vmatpush.msra.mxu0 %v93
    %392 = vmatpush.msra.mxu0 %v85
    %393 = vmatpush.msra.mxu0 %v77
    %394 = vmatpush.msra.mxu0 %v69
    %395 = vmatpush.msra.mxu0 %v61
    %396 = vmatpush.msra.mxu0 %v53
    %397 = vmatpush.msra.mxu0 %v45
    %398 = vmatmul.f32.gmra.mxu0 %v270
    %v399 = vpop.f32.mrf.mxu0
    %v400 = vadd.f32 %v191, %v399
    %401 = vmatmul.f32.gmra.mxu0 %v273
    %v402 = vpop.f32.mrf.mxu0
    %v403 = vadd.f32 %v196, %v402
    %404 = vmatmul.f32.gmra.mxu0 %v276
    %v405 = vpop.f32.mrf.mxu0
    %v406 = vadd.f32 %v201, %v405
    %407 = vmatmul.f32.gmra.mxu0 %v279
    %v408 = vpop.f32.mrf.mxu0
    %v409 = vadd.f32 %v206, %v408
    %410 = vmatmul.f32.gmra.mxu0 %v282
    %v411 = vpop.f32.mrf.mxu0
    %v412 = vadd.f32 %v211, %v411
    %413 = vmatmul.f32.gmra.mxu0 %v285
    %v414 = vpop.f32.mrf.mxu0
    %v415 = vadd.f32 %v216, %v414
    %416 = vmatmul.f32.gmra.mxu0 %v288
    %v417 = vpop.f32.mrf.mxu0
    %v418 = vadd.f32 %v221, %v417
    %419 = vmatmul.f32.gmra.mxu0 %v291
    %v420 = vpop.f32.mrf.mxu0
    %v421 = vadd.f32 %v226, %v420
    %422 = vmatmul.f32.gmra.mxu0 %v294
    %v423 = vpop.f32.mrf.mxu0
    %v424 = vadd.f32 %v231, %v423
    %425 = vmatmul.f32.gmra.mxu0 %v297
    %v426 = vpop.f32.mrf.mxu0
    %v427 = vadd.f32 %v236, %v426
    %428 = vmatmul.f32.gmra.mxu0 %v300
    %v429 = vpop.f32.mrf.mxu0
    %v430 = vadd.f32 %v241, %v429
    %431 = vmatmul.f32.gmra.mxu0 %v303
    %v432 = vpop.f32.mrf.mxu0
    %v433 = vadd.f32 %v246, %v432
    %434 = vmatmul.f32.gmra.mxu0 %v306
    %v435 = vpop.f32.mrf.mxu0
    %v436 = vadd.f32 %v251, %v435
    %437 = vmatmul.f32.gmra.mxu0 %v309
    %v438 = vpop.f32.mrf.mxu0
    %v439 = vadd.f32 %v256, %v438
    %440 = vmatmul.f32.gmra.mxu0 %v312
    %v441 = vpop.f32.mrf.mxu0
    %v442 = vadd.f32 %v261, %v441
    %443 = vmatmul.f32.gmra.mxu0 %v315
    %v444 = vpop.f32.mrf.mxu0
    %v445 = vadd.f32 %v266, %v444
    %446 = vdwg.mxu0
    %447 = vmatpush.msra.mxu0 0.0
    %448 = vmatpush.msra.mxu0 0.0
    %449 = vmatpush.msra.mxu0 %v150
    %450 = vmatpush.msra.mxu0 %v142
    %451 = vmatpush.msra.mxu0 %v134
    %452 = vmatpush.msra.mxu0 %v126
    %453 = vmatpush.msra.mxu0 %v118
    %454 = vmatpush.msra.mxu0 %v110
    %455 = vmatpush.msra.mxu0 %v102
    %456 = vmatpush.msra.mxu0 %v94
    %457 = vmatpush.msra.mxu0 %v86
    %458 = vmatpush.msra.mxu0 %v78
    %459 = vmatpush.msra.mxu0 %v70
    %460 = vmatpush.msra.mxu0 %v62
    %461 = vmatpush.msra.mxu0 %v54
    %462 = vmatpush.msra.mxu0 %v46
    %463 = vmatmul.f32.gmra.mxu0 %v270
    %v464 = vpop.f32.mrf.mxu0
    %v465 = vadd.f32 %v191, %v464
    %466 = vmatmul.f32.gmra.mxu0 %v273
    %v467 = vpop.f32.mrf.mxu0
    %v468 = vadd.f32 %v196, %v467
    %469 = vmatmul.f32.gmra.mxu0 %v276
    %v470 = vpop.f32.mrf.mxu0
    %v471 = vadd.f32 %v201, %v470
    %472 = vmatmul.f32.gmra.mxu0 %v279
    %v473 = vpop.f32.mrf.mxu0
    %v474 = vadd.f32 %v206, %v473
    %475 = vmatmul.f32.gmra.mxu0 %v282
    %v476 = vpop.f32.mrf.mxu0
    %v477 = vadd.f32 %v211, %v476
    %478 = vmatmul.f32.gmra.mxu0 %v285
    %v479 = vpop.f32.mrf.mxu0
    %v480 = vadd.f32 %v216, %v479
    %481 = vmatmul.f32.gmra.mxu0 %v288
    %v482 = vpop.f32.mrf.mxu0
    %v483 = vadd.f32 %v221, %v482
    %484 = vmatmul.f32.gmra.mxu0 %v291
    %v485 = vpop.f32.mrf.mxu0
    %v486 = vadd.f32 %v226, %v485
    %487 = vmatmul.f32.gmra.mxu0 %v294
    %v488 = vpop.f32.mrf.mxu0
    %v489 = vadd.f32 %v231, %v488
    %490 = vmatmul.f32.gmra.mxu0 %v297
    %v491 = vpop.f32.mrf.mxu0
    %v492 = vadd.f32 %v236, %v491
    %493 = vmatmul.f32.gmra.mxu0 %v300
    %v494 = vpop.f32.mrf.mxu0
    %v495 = vadd.f32 %v241, %v494
    %496 = vmatmul.f32.gmra.mxu0 %v303
    %v497 = vpop.f32.mrf.mxu0
    %v498 = vadd.f32 %v246, %v497
    %499 = vmatmul.f32.gmra.mxu0 %v306
    %v500 = vpop.f32.mrf.mxu0
    %v501 = vadd.f32 %v251, %v500
    %502 = vmatmul.f32.gmra.mxu0 %v309
    %v503 = vpop.f32.mrf.mxu0
    %v504 = vadd.f32 %v256, %v503
    %505 = vmatmul.f32.gmra.mxu0 %v312
    %v506 = vpop.f32.mrf.mxu0
    %v507 = vadd.f32 %v261, %v506
    %508 = vmatmul.f32.gmra.mxu0 %v315
    %v509 = vpop.f32.mrf.mxu0
    %v510 = vadd.f32 %v266, %v509
    %511 = vdwg.mxu0
    %512 = vmatpush.msra.mxu0 0.0
    %513 = vmatpush.msra.mxu0 0.0
    %514 = vmatpush.msra.mxu0 %v151
    %515 = vmatpush.msra.mxu0 %v143
    %516 = vmatpush.msra.mxu0 %v135
    %517 = vmatpush.msra.mxu0 %v127
    %518 = vmatpush.msra.mxu0 %v119
    %519 = vmatpush.msra.mxu0 %v111
    %520 = vmatpush.msra.mxu0 %v103
    %521 = vmatpush.msra.mxu0 %v95
    %522 = vmatpush.msra.mxu0 %v87
    %523 = vmatpush.msra.mxu0 %v79
    %524 = vmatpush.msra.mxu0 %v71
    %525 = vmatpush.msra.mxu0 %v63
    %526 = vmatpush.msra.mxu0 %v55
    %527 = vmatpush.msra.mxu0 %v47
    %528 = vmatmul.f32.gmra.mxu0 %v270
    %v529 = vpop.f32.mrf.mxu0
    %v530 = vadd.f32 %v191, %v529
    %531 = vmatmul.f32.gmra.mxu0 %v273
    %v532 = vpop.f32.mrf.mxu0
    %v533 = vadd.f32 %v196, %v532
    %534 = vmatmul.f32.gmra.mxu0 %v276
    %v535 = vpop.f32.mrf.mxu0
    %v536 = vadd.f32 %v201, %v535
    %537 = vmatmul.f32.gmra.mxu0 %v279
    %v538 = vpop.f32.mrf.mxu0
    %v539 = vadd.f32 %v206, %v538
    %540 = vmatmul.f32.gmra.mxu0 %v282
    %v541 = vpop.f32.mrf.mxu0
    %v542 = vadd.f32 %v211, %v541
    %543 = vmatmul.f32.gmra.mxu0 %v285
    %v544 = vpop.f32.mrf.mxu0
    %v545 = vadd.f32 %v216, %v544
    %546 = vmatmul.f32.gmra.mxu0 %v288
    %v547 = vpop.f32.mrf.mxu0
    %v548 = vadd.f32 %v221, %v547
    %549 = vmatmul.f32.gmra.mxu0 %v291
    %v550 = vpop.f32.mrf.mxu0
    %v551 = vadd.f32 %v226, %v550
    %552 = vmatmul.f32.gmra.mxu0 %v294
    %v553 = vpop.f32.mrf.mxu0
    %v554 = vadd.f32 %v231, %v553
    %555 = vmatmul.f32.gmra.mxu0 %v297
    %v556 = vpop.f32.mrf.mxu0
    %v557 = vadd.f32 %v236, %v556
    %558 = vmatmul.f32.gmra.mxu0 %v300
    %v559 = vpop.f32.mrf.mxu0
    %v560 = vadd.f32 %v241, %v559
    %561 = vmatmul.f32.gmra.mxu0 %v303
    %v562 = vpop.f32.mrf.mxu0
    %v563 = vadd.f32 %v246, %v562
    %564 = vmatmul.f32.gmra.mxu0 %v306
    %v565 = vpop.f32.mrf.mxu0
    %v566 = vadd.f32 %v251, %v565
    %567 = vmatmul.f32.gmra.mxu0 %v309
    %v568 = vpop.f32.mrf.mxu0
    %v569 = vadd.f32 %v256, %v568
    %570 = vmatmul.f32.gmra.mxu0 %v312
    %v571 = vpop.f32.mrf.mxu0
    %v572 = vadd.f32 %v261, %v571
    %573 = vmatmul.f32.gmra.mxu0 %v315
    %v574 = vpop.f32.mrf.mxu0
    %v575 = vadd.f32 %v266, %v574
    %576 = vdwg.mxu0
    %577 = vmatpush.msra.mxu0 0.0
    %578 = vmatpush.msra.mxu0 0.0
    %579 = vmatpush.msra.mxu0 %v152
    %580 = vmatpush.msra.mxu0 %v144
    %581 = vmatpush.msra.mxu0 %v136
    %582 = vmatpush.msra.mxu0 %v128
    %583 = vmatpush.msra.mxu0 %v120
    %584 = vmatpush.msra.mxu0 %v112
    %585 = vmatpush.msra.mxu0 %v104
    %586 = vmatpush.msra.mxu0 %v96
    %587 = vmatpush.msra.mxu0 %v88
    %588 = vmatpush.msra.mxu0 %v80
    %589 = vmatpush.msra.mxu0 %v72
    %590 = vmatpush.msra.mxu0 %v64
    %591 = vmatpush.msra.mxu0 %v56
    %592 = vmatpush.msra.mxu0 %v48
    %593 = vmatmul.f32.gmra.mxu0 %v270
    %v594 = vpop.f32.mrf.mxu0
    %v595 = vadd.f32 %v191, %v594
    %596 = vmatmul.f32.gmra.mxu0 %v273
    %v597 = vpop.f32.mrf.mxu0
    %v598 = vadd.f32 %v196, %v597
    %599 = vmatmul.f32.gmra.mxu0 %v276
    %v600 = vpop.f32.mrf.mxu0
    %v601 = vadd.f32 %v201, %v600
    %602 = vmatmul.f32.gmra.mxu0 %v279
    %v603 = vpop.f32.mrf.mxu0
    %v604 = vadd.f32 %v206, %v603
    %605 = vmatmul.f32.gmra.mxu0 %v282
    %v606 = vpop.f32.mrf.mxu0
    %v607 = vadd.f32 %v211, %v606
    %608 = vmatmul.f32.gmra.mxu0 %v285
    %v609 = vpop.f32.mrf.mxu0
    %v610 = vadd.f32 %v216, %v609
    %611 = vmatmul.f32.gmra.mxu0 %v288
    %v612 = vpop.f32.mrf.mxu0
    %v613 = vadd.f32 %v221, %v612
    %614 = vmatmul.f32.gmra.mxu0 %v291
    %v615 = vpop.f32.mrf.mxu0
    %v616 = vadd.f32 %v226, %v615
    %617 = vmatmul.f32.gmra.mxu0 %v294
    %v618 = vpop.f32.mrf.mxu0
    %v619 = vadd.f32 %v231, %v618
    %620 = vmatmul.f32.gmra.mxu0 %v297
    %v621 = vpop.f32.mrf.mxu0
    %v622 = vadd.f32 %v236, %v621
    %623 = vmatmul.f32.gmra.mxu0 %v300
    %v624 = vpop.f32.mrf.mxu0
    %v625 = vadd.f32 %v241, %v624
    %626 = vmatmul.f32.gmra.mxu0 %v303
    %v627 = vpop.f32.mrf.mxu0
    %v628 = vadd.f32 %v246, %v627
    %629 = vmatmul.f32.gmra.mxu0 %v306
    %v630 = vpop.f32.mrf.mxu0
    %v631 = vadd.f32 %v251, %v630
    %632 = vmatmul.f32.gmra.mxu0 %v309
    %v633 = vpop.f32.mrf.mxu0
    %v634 = vadd.f32 %v256, %v633
    %635 = vmatmul.f32.gmra.mxu0 %v312
    %v636 = vpop.f32.mrf.mxu0
    %v637 = vadd.f32 %v261, %v636
    %638 = vmatmul.f32.gmra.mxu0 %v315
    %v639 = vpop.f32.mrf.mxu0
    %v640 = vadd.f32 %v266, %v639
    %641 = vdwg.mxu0
    %642 = vmatpush.msra.mxu0 0.0
    %643 = vmatpush.msra.mxu0 0.0
    %644 = vmatpush.msra.mxu0 %v153
    %645 = vmatpush.msra.mxu0 %v145
    %646 = vmatpush.msra.mxu0 %v137
    %647 = vmatpush.msra.mxu0 %v129
    %648 = vmatpush.msra.mxu0 %v121
    %649 = vmatpush.msra.mxu0 %v113
    %650 = vmatpush.msra.mxu0 %v105
    %651 = vmatpush.msra.mxu0 %v97
    %652 = vmatpush.msra.mxu0 %v89
    %653 = vmatpush.msra.mxu0 %v81
    %654 = vmatpush.msra.mxu0 %v73
    %655 = vmatpush.msra.mxu0 %v65
    %656 = vmatpush.msra.mxu0 %v57
    %657 = vmatpush.msra.mxu0 %v49
    %658 = vmatmul.f32.gmra.mxu0 %v270
    %v659 = vpop.f32.mrf.mxu0
    %v660 = vadd.f32 %v191, %v659
    %661 = vmatmul.f32.gmra.mxu0 %v273
    %v662 = vpop.f32.mrf.mxu0
    %v663 = vadd.f32 %v196, %v662
    %664 = vmatmul.f32.gmra.mxu0 %v276
    %v665 = vpop.f32.mrf.mxu0
    %v666 = vadd.f32 %v201, %v665
    %667 = vmatmul.f32.gmra.mxu0 %v279
    %v668 = vpop.f32.mrf.mxu0
    %v669 = vadd.f32 %v206, %v668
    %670 = vmatmul.f32.gmra.mxu0 %v282
    %v671 = vpop.f32.mrf.mxu0
    %v672 = vadd.f32 %v211, %v671
    %673 = vmatmul.f32.gmra.mxu0 %v285
    %v674 = vpop.f32.mrf.mxu0
    %v675 = vadd.f32 %v216, %v674
    %676 = vmatmul.f32.gmra.mxu0 %v288
    %v677 = vpop.f32.mrf.mxu0
    %v678 = vadd.f32 %v221, %v677
    %679 = vmatmul.f32.gmra.mxu0 %v291
    %v680 = vpop.f32.mrf.mxu0
    %v681 = vadd.f32 %v226, %v680
    %682 = vmatmul.f32.gmra.mxu0 %v294
    %v683 = vpop.f32.mrf.mxu0
    %v684 = vadd.f32 %v231, %v683
    %685 = vmatmul.f32.gmra.mxu0 %v297
    %v686 = vpop.f32.mrf.mxu0
    %v687 = vadd.f32 %v236, %v686
    %688 = vmatmul.f32.gmra.mxu0 %v300
    %v689 = vpop.f32.mrf.mxu0
    %v690 = vadd.f32 %v241, %v689
    %691 = vmatmul.f32.gmra.mxu0 %v303
    %v692 = vpop.f32.mrf.mxu0
    %v693 = vadd.f32 %v246, %v692
    %694 = vmatmul.f32.gmra.mxu0 %v306
    %v695 = vpop.f32.mrf.mxu0
    %v696 = vadd.f32 %v251, %v695
    %697 = vmatmul.f32.gmra.mxu0 %v309
    %v698 = vpop.f32.mrf.mxu0
    %v699 = vadd.f32 %v256, %v698
    %700 = vmatmul.f32.gmra.mxu0 %v312
    %v701 = vpop.f32.mrf.mxu0
    %v702 = vadd.f32 %v261, %v701
    %703 = vmatmul.f32.gmra.mxu0 %v315
    %v704 = vpop.f32.mrf.mxu0
    %v705 = vadd.f32 %v266, %v704
    %706 = vdwg.mxu0
    %707 = vmatpush.msra.mxu0 0.0
    %708 = vmatpush.msra.mxu0 0.0
    %709 = vmatpush.msra.mxu0 %v154
    %710 = vmatpush.msra.mxu0 %v146
    %711 = vmatpush.msra.mxu0 %v138
    %712 = vmatpush.msra.mxu0 %v130
    %713 = vmatpush.msra.mxu0 %v122
    %714 = vmatpush.msra.mxu0 %v114
    %715 = vmatpush.msra.mxu0 %v106
    %716 = vmatpush.msra.mxu0 %v98
    %717 = vmatpush.msra.mxu0 %v90
    %718 = vmatpush.msra.mxu0 %v82
    %719 = vmatpush.msra.mxu0 %v74
    %720 = vmatpush.msra.mxu0 %v66
    %721 = vmatpush.msra.mxu0 %v58
    %722 = vmatpush.msra.mxu0 %v50
    %723 = vmatmul.f32.gmra.mxu0 %v270
    %v724 = vpop.f32.mrf.mxu0
    %v725 = vadd.f32 %v191, %v724
    %726 = vmatmul.f32.gmra.mxu0 %v273
    %v727 = vpop.f32.mrf.mxu0
    %v728 = vadd.f32 %v196, %v727
    %729 = vmatmul.f32.gmra.mxu0 %v276
    %v730 = vpop.f32.mrf.mxu0
    %v731 = vadd.f32 %v201, %v730
    %732 = vmatmul.f32.gmra.mxu0 %v279
    %v733 = vpop.f32.mrf.mxu0
    %v734 = vadd.f32 %v206, %v733
    %735 = vmatmul.f32.gmra.mxu0 %v282
    %v736 = vpop.f32.mrf.mxu0
    %v737 = vadd.f32 %v211, %v736
    %738 = vmatmul.f32.gmra.mxu0 %v285
    %v739 = vpop.f32.mrf.mxu0
    %v740 = vadd.f32 %v216, %v739
    %741 = vmatmul.f32.gmra.mxu0 %v288
    %v742 = vpop.f32.mrf.mxu0
    %v743 = vadd.f32 %v221, %v742
    %744 = vmatmul.f32.gmra.mxu0 %v291
    %v745 = vpop.f32.mrf.mxu0
    %v746 = vadd.f32 %v226, %v745
    %747 = vmatmul.f32.gmra.mxu0 %v294
    %v748 = vpop.f32.mrf.mxu0
    %v749 = vadd.f32 %v231, %v748
    %750 = vmatmul.f32.gmra.mxu0 %v297
    %v751 = vpop.f32.mrf.mxu0
    %v752 = vadd.f32 %v236, %v751
    %753 = vmatmul.f32.gmra.mxu0 %v300
    %v754 = vpop.f32.mrf.mxu0
    %v755 = vadd.f32 %v241, %v754
    %756 = vmatmul.f32.gmra.mxu0 %v303
    %v757 = vpop.f32.mrf.mxu0
    %v758 = vadd.f32 %v246, %v757
    %759 = vmatmul.f32.gmra.mxu0 %v306
    %v760 = vpop.f32.mrf.mxu0
    %v761 = vadd.f32 %v251, %v760
    %762 = vmatmul.f32.gmra.mxu0 %v309
    %v763 = vpop.f32.mrf.mxu0
    %v764 = vadd.f32 %v256, %v763
    %765 = vmatmul.f32.gmra.mxu0 %v312
    %v766 = vpop.f32.mrf.mxu0
    %v767 = vadd.f32 %v261, %v766
    %768 = vmatmul.f32.gmra.mxu0 %v315
    %v769 = vpop.f32.mrf.mxu0
    %v770 = vadd.f32 %v266, %v769
    %771 = vdwg.mxu0
    %772 = vmatpush.msra.mxu0 0.0
    %773 = vmatpush.msra.mxu0 0.0
    %774 = vmatpush.msra.mxu0 %v155
    %775 = vmatpush.msra.mxu0 %v147
    %776 = vmatpush.msra.mxu0 %v139
    %777 = vmatpush.msra.mxu0 %v131
    %778 = vmatpush.msra.mxu0 %v123
    %779 = vmatpush.msra.mxu0 %v115
    %780 = vmatpush.msra.mxu0 %v107
    %781 = vmatpush.msra.mxu0 %v99
    %782 = vmatpush.msra.mxu0 %v91
    %783 = vmatpush.msra.mxu0 %v83
    %784 = vmatpush.msra.mxu0 %v75
    %785 = vmatpush.msra.mxu0 %v67
    %786 = vmatpush.msra.mxu0 %v59
    %787 = vmatpush.msra.mxu0 %v51
    %788 = vmatmul.f32.gmra.mxu0 %v270
    %v789 = vpop.f32.mrf.mxu0
    %v790 = vadd.f32 %v191, %v789
    %791 = vmatmul.f32.gmra.mxu0 %v273
    %v792 = vpop.f32.mrf.mxu0
    %v793 = vadd.f32 %v196, %v792
    %794 = vmatmul.f32.gmra.mxu0 %v276
    %v795 = vpop.f32.mrf.mxu0
    %v796 = vadd.f32 %v201, %v795
    %797 = vmatmul.f32.gmra.mxu0 %v279
    %v798 = vpop.f32.mrf.mxu0
    %v799 = vadd.f32 %v206, %v798
    %800 = vmatmul.f32.gmra.mxu0 %v282
    %v801 = vpop.f32.mrf.mxu0
    %v802 = vadd.f32 %v211, %v801
    %803 = vmatmul.f32.gmra.mxu0 %v285
    %v804 = vpop.f32.mrf.mxu0
    %v805 = vadd.f32 %v216, %v804
    %806 = vmatmul.f32.gmra.mxu0 %v288
    %v807 = vpop.f32.mrf.mxu0
    %v808 = vadd.f32 %v221, %v807
    %809 = vmatmul.f32.gmra.mxu0 %v291
    %v810 = vpop.f32.mrf.mxu0
    %v811 = vadd.f32 %v226, %v810
    %812 = vmatmul.f32.gmra.mxu0 %v294
    %v813 = vpop.f32.mrf.mxu0
    %v814 = vadd.f32 %v231, %v813
    %815 = vmatmul.f32.gmra.mxu0 %v297
    %v816 = vpop.f32.mrf.mxu0
    %v817 = vadd.f32 %v236, %v816
    %818 = vmatmul.f32.gmra.mxu0 %v300
    %v819 = vpop.f32.mrf.mxu0
    %v820 = vadd.f32 %v241, %v819
    %821 = vmatmul.f32.gmra.mxu0 %v303
    %v822 = vpop.f32.mrf.mxu0
    %v823 = vadd.f32 %v246, %v822
    %824 = vmatmul.f32.gmra.mxu0 %v306
    %v825 = vpop.f32.mrf.mxu0
    %v826 = vadd.f32 %v251, %v825
    %827 = vmatmul.f32.gmra.mxu0 %v309
    %v828 = vpop.f32.mrf.mxu0
    %v829 = vadd.f32 %v256, %v828
    %830 = vmatmul.f32.gmra.mxu0 %v312
    %v831 = vpop.f32.mrf.mxu0
    %v832 = vadd.f32 %v261, %v831
    %833 = vmatmul.f32.gmra.mxu0 %v315
    %v834 = vpop.f32.mrf.mxu0
    %v835 = vadd.f32 %v266, %v834
    %836 = vdwg.mxu0
    %v837 = vmul.f32 %v335, 0.01
    %v838 = vmul.f32 %v400, 0.01
    %v839 = vmul.f32 %v465, 0.01
    %v840 = vmul.f32 %v530, 0.01
    %v841 = vmul.f32 %v595, 0.01
    %v842 = vmul.f32 %v660, 0.01
    %v843 = vmul.f32 %v725, 0.01
    %v844 = vmul.f32 %v790, 0.01
    %v845 = vmul.f32 %v338, 0.01
    %v846 = vmul.f32 %v403, 0.01
    %v847 = vmul.f32 %v468, 0.01
    %v848 = vmul.f32 %v533, 0.01
    %v849 = vmul.f32 %v598, 0.01
    %v850 = vmul.f32 %v663, 0.01
    %v851 = vmul.f32 %v728, 0.01
    %v852 = vmul.f32 %v793, 0.01
    %v853 = vmul.f32 %v341, 0.01
    %v854 = vmul.f32 %v406, 0.01
    %v855 = vmul.f32 %v471, 0.01
    %v856 = vmul.f32 %v536, 0.01
    %v857 = vmul.f32 %v601, 0.01
    %v858 = vmul.f32 %v666, 0.01
    %v859 = vmul.f32 %v731, 0.01
    %v860 = vmul.f32 %v796, 0.01
    %v861 = vmul.f32 %v344, 0.01
    %v862 = vmul.f32 %v409, 0.01
    %v863 = vmul.f32 %v474, 0.01
    %v864 = vmul.f32 %v539, 0.01
    %v865 = vmul.f32 %v604, 0.01
    %v866 = vmul.f32 %v669, 0.01
    %v867 = vmul.f32 %v734, 0.01
    %v868 = vmul.f32 %v799, 0.01
    %v869 = vmul.f32 %v347, 0.01
    %v870 = vmul.f32 %v412, 0.01
    %v871 = vmul.f32 %v477, 0.01
    %v872 = vmul.f32 %v542, 0.01
    %v873 = vmul.f32 %v607, 0.01
    %v874 = vmul.f32 %v672, 0.01
    %v875 = vmul.f32 %v737, 0.01
    %v876 = vmul.f32 %v802, 0.01
    %v877 = vmul.f32 %v350, 0.01
    %v878 = vmul.f32 %v415, 0.01
    %v879 = vmul.f32 %v480, 0.01
    %v880 = vmul.f32 %v545, 0.01
    %v881 = vmul.f32 %v610, 0.01
    %v882 = vmul.f32 %v675, 0.01
    %v883 = vmul.f32 %v740, 0.01
    %v884 = vmul.f32 %v805, 0.01
    %v885 = vmul.f32 %v353, 0.01
    %v886 = vmul.f32 %v418, 0.01
    %v887 = vmul.f32 %v483, 0.01
    %v888 = vmul.f32 %v548, 0.01
    %v889 = vmul.f32 %v613, 0.01
    %v890 = vmul.f32 %v678, 0.01
    %v891 = vmul.f32 %v743, 0.01
    %v892 = vmul.f32 %v808, 0.01
    %v893 = vmul.f32 %v356, 0.01
    %v894 = vmul.f32 %v421, 0.01
    %v895 = vmul.f32 %v486, 0.01
    %v896 = vmul.f32 %v551, 0.01
    %v897 = vmul.f32 %v616, 0.01
    %v898 = vmul.f32 %v681, 0.01
    %v899 = vmul.f32 %v746, 0.01
    %v900 = vmul.f32 %v811, 0.01
    %v901 = vmul.f32 %v359, 0.01
    %v902 = vmul.f32 %v424, 0.01
    %v903 = vmul.f32 %v489, 0.01
    %v904 = vmul.f32 %v554, 0.01
    %v905 = vmul.f32 %v619, 0.01
    %v906 = vmul.f32 %v684, 0.01
    %v907 = vmul.f32 %v749, 0.01
    %v908 = vmul.f32 %v814, 0.01
    %v909 = vmul.f32 %v362, 0.01
    %v910 = vmul.f32 %v427, 0.01
    %v911 = vmul.f32 %v492, 0.01
    %v912 = vmul.f32 %v557, 0.01
    %v913 = vmul.f32 %v622, 0.01
    %v914 = vmul.f32 %v687, 0.01
    %v915 = vmul.f32 %v752, 0.01
    %v916 = vmul.f32 %v817, 0.01
    %v917 = vmul.f32 %v365, 0.01
    %v918 = vmul.f32 %v430, 0.01
    %v919 = vmul.f32 %v495, 0.01
    %v920 = vmul.f32 %v560, 0.01
    %v921 = vmul.f32 %v625, 0.01
    %v922 = vmul.f32 %v690, 0.01
    %v923 = vmul.f32 %v755, 0.01
    %v924 = vmul.f32 %v820, 0.01
    %v925 = vmul.f32 %v368, 0.01
    %v926 = vmul.f32 %v433, 0.01
    %v927 = vmul.f32 %v498, 0.01
    %v928 = vmul.f32 %v563, 0.01
    %v929 = vmul.f32 %v628, 0.01
    %v930 = vmul.f32 %v693, 0.01
    %v931 = vmul.f32 %v758, 0.01
    %v932 = vmul.f32 %v823, 0.01
    %v933 = vmul.f32 %v371, 0.01
    %v934 = vmul.f32 %v436, 0.01
    %v935 = vmul.f32 %v501, 0.01
    %v936 = vmul.f32 %v566, 0.01
    %v937 = vmul.f32 %v631, 0.01
    %v938 = vmul.f32 %v696, 0.01
    %v939 = vmul.f32 %v761, 0.01
    %v940 = vmul.f32 %v826, 0.01
    %v941 = vmul.f32 %v374, 0.01
    %v942 = vmul.f32 %v439, 0.01
    %v943 = vmul.f32 %v504, 0.01
    %v944 = vmul.f32 %v569, 0.01
    %v945 = vmul.f32 %v634, 0.01
    %v946 = vmul.f32 %v699, 0.01
    %v947 = vmul.f32 %v764, 0.01
    %v948 = vmul.f32 %v829, 0.01
    %v949 = vmul.f32 %v377, 0.01
    %v950 = vmul.f32 %v442, 0.01
    %v951 = vmul.f32 %v507, 0.01
    %v952 = vmul.f32 %v572, 0.01
    %v953 = vmul.f32 %v637, 0.01
    %v954 = vmul.f32 %v702, 0.01
    %v955 = vmul.f32 %v767, 0.01
    %v956 = vmul.f32 %v832, 0.01
    %v957 = vmul.f32 %v380, 0.01
    %v958 = vmul.f32 %v445, 0.01
    %v959 = vmul.f32 %v510, 0.01
    %v960 = vmul.f32 %v575, 0.01
    %v961 = vmul.f32 %v640, 0.01
    %v962 = vmul.f32 %v705, 0.01
    %v963 = vmul.f32 %v770, 0.01
    %v964 = vmul.f32 %v835, 0.01
    %v965 = vmax.f32 %v335, %v837
    %v966 = vmax.f32 %v400, %v838
    %v967 = vmax.f32 %v465, %v839
    %v968 = vmax.f32 %v530, %v840
    %v969 = vmax.f32 %v595, %v841
    %v970 = vmax.f32 %v660, %v842
    %v971 = vmax.f32 %v725, %v843
    %v972 = vmax.f32 %v790, %v844
    %v973 = vmax.f32 %v338, %v845
    %v974 = vmax.f32 %v403, %v846
    %v975 = vmax.f32 %v468, %v847
    %v976 = vmax.f32 %v533, %v848
    %v977 = vmax.f32 %v598, %v849
    %v978 = vmax.f32 %v663, %v850
    %v979 = vmax.f32 %v728, %v851
    %v980 = vmax.f32 %v793, %v852
    %v981 = vmax.f32 %v341, %v853
    %v982 = vmax.f32 %v406, %v854
    %v983 = vmax.f32 %v471, %v855
    %v984 = vmax.f32 %v536, %v856
    %v985 = vmax.f32 %v601, %v857
    %v986 = vmax.f32 %v666, %v858
    %v987 = vmax.f32 %v731, %v859
    %v988 = vmax.f32 %v796, %v860
    %v989 = vmax.f32 %v344, %v861
    %v990 = vmax.f32 %v409, %v862
    %v991 = vmax.f32 %v474, %v863
    %v992 = vmax.f32 %v539, %v864
    %v993 = vmax.f32 %v604, %v865
    %v994 = vmax.f32 %v669, %v866
    %v995 = vmax.f32 %v734, %v867
    %v996 = vmax.f32 %v799, %v868
    %v997 = vmax.f32 %v347, %v869
    %v998 = vmax.f32 %v412, %v870
    %v999 = vmax.f32 %v477, %v871
    %v1000 = vmax.f32 %v542, %v872
    %v1001 = vmax.f32 %v607, %v873
    %v1002 = vmax.f32 %v672, %v874
    %v1003 = vmax.f32 %v737, %v875
    %v1004 = vmax.f32 %v802, %v876
    %v1005 = vmax.f32 %v350, %v877
    %v1006 = vmax.f32 %v415, %v878
    %v1007 = vmax.f32 %v480, %v879
    %v1008 = vmax.f32 %v545, %v880
    %v1009 = vmax.f32 %v610, %v881
    %v1010 = vmax.f32 %v675, %v882
    %v1011 = vmax.f32 %v740, %v883
    %v1012 = vmax.f32 %v805, %v884
    %v1013 = vmax.f32 %v353, %v885
    %v1014 = vmax.f32 %v418, %v886
    %v1015 = vmax.f32 %v483, %v887
    %v1016 = vmax.f32 %v548, %v888
    %v1017 = vmax.f32 %v613, %v889
    %v1018 = vmax.f32 %v678, %v890
    %v1019 = vmax.f32 %v743, %v891
    %v1020 = vmax.f32 %v808, %v892
    %v1021 = vmax.f32 %v356, %v893
    %v1022 = vmax.f32 %v421, %v894
    %v1023 = vmax.f32 %v486, %v895
    %v1024 = vmax.f32 %v551, %v896
    %v1025 = vmax.f32 %v616, %v897
    %v1026 = vmax.f32 %v681, %v898
    %v1027 = vmax.f32 %v746, %v899
    %v1028 = vmax.f32 %v811, %v900
    %v1029 = vmax.f32 %v359, %v901
    %v1030 = vmax.f32 %v424, %v902
    %v1031 = vmax.f32 %v489, %v903
    %v1032 = vmax.f32 %v554, %v904
    %v1033 = vmax.f32 %v619, %v905
    %v1034 = vmax.f32 %v684, %v906
    %v1035 = vmax.f32 %v749, %v907
    %v1036 = vmax.f32 %v814, %v908
    %v1037 = vmax.f32 %v362, %v909
    %v1038 = vmax.f32 %v427, %v910
    %v1039 = vmax.f32 %v492, %v911
    %v1040 = vmax.f32 %v557, %v912
    %v1041 = vmax.f32 %v622, %v913
    %v1042 = vmax.f32 %v687, %v914
    %v1043 = vmax.f32 %v752, %v915
    %v1044 = vmax.f32 %v817, %v916
    %v1045 = vmax.f32 %v365, %v917
    %v1046 = vmax.f32 %v430, %v918
    %v1047 = vmax.f32 %v495, %v919
    %v1048 = vmax.f32 %v560, %v920
    %v1049 = vmax.f32 %v625, %v921
    %v1050 = vmax.f32 %v690, %v922
    %v1051 = vmax.f32 %v755, %v923
    %v1052 = vmax.f32 %v820, %v924
    %v1053 = vmax.f32 %v368, %v925
    %v1054 = vmax.f32 %v433, %v926
    %v1055 = vmax.f32 %v498, %v927
    %v1056 = vmax.f32 %v563, %v928
    %v1057 = vmax.f32 %v628, %v929
    %v1058 = vmax.f32 %v693, %v930
    %v1059 = vmax.f32 %v758, %v931
    %v1060 = vmax.f32 %v823, %v932
    %v1061 = vmax.f32 %v371, %v933
    %v1062 = vmax.f32 %v436, %v934
    %v1063 = vmax.f32 %v501, %v935
    %v1064 = vmax.f32 %v566, %v936
    %v1065 = vmax.f32 %v631, %v937
    %v1066 = vmax.f32 %v696, %v938
    %v1067 = vmax.f32 %v761, %v939
    %v1068 = vmax.f32 %v826, %v940
    %v1069 = vmax.f32 %v374, %v941
    %v1070 = vmax.f32 %v439, %v942
    %v1071 = vmax.f32 %v504, %v943
    %v1072 = vmax.f32 %v569, %v944
    %v1073 = vmax.f32 %v634, %v945
    %v1074 = vmax.f32 %v699, %v946
    %v1075 = vmax.f32 %v764, %v947
    %v1076 = vmax.f32 %v829, %v948
    %v1077 = vmax.f32 %v377, %v949
    %v1078 = vmax.f32 %v442, %v950
    %v1079 = vmax.f32 %v507, %v951
    %v1080 = vmax.f32 %v572, %v952
    %v1081 = vmax.f32 %v637, %v953
    %v1082 = vmax.f32 %v702, %v954
    %v1083 = vmax.f32 %v767, %v955
    %v1084 = vmax.f32 %v832, %v956
    %v1085 = vmax.f32 %v380, %v957
    %v1086 = vmax.f32 %v445, %v958
    %v1087 = vmax.f32 %v510, %v959
    %v1088 = vmax.f32 %v575, %v960
    %v1089 = vmax.f32 %v640, %v961
    %v1090 = vmax.f32 %v705, %v962
    %v1091 = vmax.f32 %v770, %v963
    %v1092 = vmax.f32 %v835, %v964
    %v1093 = vpack.c.bf16 %v973, %v965
    %v1094 = vpack.c.bf16 %v974, %v966
    %v1095 = vpack.c.bf16 %v975, %v967
    %v1096 = vpack.c.bf16 %v976, %v968
    %v1097 = vpack.c.bf16 %v977, %v969
    %v1098 = vpack.c.bf16 %v978, %v970
    %v1099 = vpack.c.bf16 %v979, %v971
    %v1100 = vpack.c.bf16 %v980, %v972
    %v1101 = vpack.c.bf16 %v989, %v981
    %v1102 = vpack.c.bf16 %v990, %v982
    %v1103 = vpack.c.bf16 %v991, %v983
    %v1104 = vpack.c.bf16 %v992, %v984
    %v1105 = vpack.c.bf16 %v993, %v985
    %v1106 = vpack.c.bf16 %v994, %v986
    %v1107 = vpack.c.bf16 %v995, %v987
    %v1108 = vpack.c.bf16 %v996, %v988
    %v1109 = vpack.c.bf16 %v1005, %v997
    %v1110 = vpack.c.bf16 %v1006, %v998
    %v1111 = vpack.c.bf16 %v1007, %v999
    %v1112 = vpack.c.bf16 %v1008, %v1000
    %v1113 = vpack.c.bf16 %v1009, %v1001
    %v1114 = vpack.c.bf16 %v1010, %v1002
    %v1115 = vpack.c.bf16 %v1011, %v1003
    %v1116 = vpack.c.bf16 %v1012, %v1004
    %v1117 = vpack.c.bf16 %v1021, %v1013
    %v1118 = vpack.c.bf16 %v1022, %v1014
    %v1119 = vpack.c.bf16 %v1023, %v1015
    %v1120 = vpack.c.bf16 %v1024, %v1016
    %v1121 = vpack.c.bf16 %v1025, %v1017
    %v1122 = vpack.c.bf16 %v1026, %v1018
    %v1123 = vpack.c.bf16 %v1027, %v1019
    %v1124 = vpack.c.bf16 %v1028, %v1020
    %v1125 = vpack.c.bf16 %v1037, %v1029
    %v1126 = vpack.c.bf16 %v1038, %v1030
    %v1127 = vpack.c.bf16 %v1039, %v1031
    %v1128 = vpack.c.bf16 %v1040, %v1032
    %v1129 = vpack.c.bf16 %v1041, %v1033
    %v1130 = vpack.c.bf16 %v1042, %v1034
    %v1131 = vpack.c.bf16 %v1043, %v1035
    %v1132 = vpack.c.bf16 %v1044, %v1036
    %v1133 = vpack.c.bf16 %v1053, %v1045
    %v1134 = vpack.c.bf16 %v1054, %v1046
    %v1135 = vpack.c.bf16 %v1055, %v1047
    %v1136 = vpack.c.bf16 %v1056, %v1048
    %v1137 = vpack.c.bf16 %v1057, %v1049
    %v1138 = vpack.c.bf16 %v1058, %v1050
    %v1139 = vpack.c.bf16 %v1059, %v1051
    %v1140 = vpack.c.bf16 %v1060, %v1052
    %v1141 = vpack.c.bf16 %v1069, %v1061
    %v1142 = vpack.c.bf16 %v1070, %v1062
    %v1143 = vpack.c.bf16 %v1071, %v1063
    %v1144 = vpack.c.bf16 %v1072, %v1064
    %v1145 = vpack.c.bf16 %v1073, %v1065
    %v1146 = vpack.c.bf16 %v1074, %v1066
    %v1147 = vpack.c.bf16 %v1075, %v1067
    %v1148 = vpack.c.bf16 %v1076, %v1068
    %v1149 = vpack.c.bf16 %v1085, %v1077
    %v1150 = vpack.c.bf16 %v1086, %v1078
    %v1151 = vpack.c.bf16 %v1087, %v1079
    %v1152 = vpack.c.bf16 %v1088, %v1080
    %v1153 = vpack.c.bf16 %v1089, %v1081
    %v1154 = vpack.c.bf16 %v1090, %v1082
    %v1155 = vpack.c.bf16 %v1091, %v1083
    %v1156 = vpack.c.bf16 %v1092, %v1084
    %v1157 = vld [vmem:[%s3] sm:$0xf]
    %v1158 = vld [vmem:[%s3 + $0x4] sm:$0xf]
    %v1159 = vld [vmem:[%s3 + $0x8] sm:$0xf]
    %v1160 = vld [vmem:[%s3 + $0xc] sm:$0xf]
    %v1161 = vld [vmem:[%s3 + $0x10] sm:$0xf]
    %v1162 = vld [vmem:[%s3 + $0x14] sm:$0xf]
    %v1163 = vld [vmem:[%s3 + $0x18] sm:$0xf]
    %v1164 = vld [vmem:[%s3 + $0x1c] sm:$0xf]
    %v1165 = vld [vmem:[%s3 + $0x20] sm:$0xf]
    %v1166 = vld [vmem:[%s3 + $0x24] sm:$0xf]
    %v1167 = vld [vmem:[%s3 + $0x28] sm:$0xf]
    %v1168 = vld [vmem:[%s3 + $0x2c] sm:$0xf]
    %v1169 = vld [vmem:[%s3 + $0x30] sm:$0xf]
    %v1170 = vld [vmem:[%s3 + $0x34] sm:$0xf]
    %v1171 = vld [vmem:[%s3 + $0x38] sm:$0xf]
    %v1172 = vld [vmem:[%s3 + $0x3c] sm:$0xf]
    %v1173 = vld [vmem:[%s4] sm:$0xff]
    %v1174 = vld [vmem:[%s4 + $0x8] sm:$0xff]
    %v1175 = vld [vmem:[%s4 + $0x10] sm:$0xff]
    %v1176 = vld [vmem:[%s4 + $0x18] sm:$0xff]
    %v1177 = vld [vmem:[%s4 + $0x20] sm:$0xff]
    %v1178 = vld [vmem:[%s4 + $0x28] sm:$0xff]
    %v1179 = vld [vmem:[%s4 + $0x30] sm:$0xff]
    %v1180 = vld [vmem:[%s4 + $0x38] sm:$0xff]
    %v1181 = vld [vmem:[%s4 + $0x40] sm:$0xff]
    %v1182 = vld [vmem:[%s4 + $0x48] sm:$0xff]
    %v1183 = vld [vmem:[%s4 + $0x50] sm:$0xff]
    %v1184 = vld [vmem:[%s4 + $0x58] sm:$0xff]
    %v1185 = vld [vmem:[%s4 + $0x60] sm:$0xff]
    %v1186 = vld [vmem:[%s4 + $0x68] sm:$0xff]
    %v1187 = vld [vmem:[%s4 + $0x70] sm:$0xff]
    %v1188 = vld [vmem:[%s4 + $0x78] sm:$0xff]
    %1190 = vset.pattern.permute.xlu0 0
    %1191 = vperm.xlu0 %1190, %v1173
    %v1192 = vpop.permute.xlu0 %1191
    %1195 = vset.pattern.permute.xlu0 0
    %1196 = vperm.xlu0 %1195, %v1174
    %v1197 = vpop.permute.xlu0 %1196
    %1200 = vset.pattern.permute.xlu0 0
    %1201 = vperm.xlu0 %1200, %v1175
    %v1202 = vpop.permute.xlu0 %1201
    %1205 = vset.pattern.permute.xlu0 0
    %1206 = vperm.xlu0 %1205, %v1176
    %v1207 = vpop.permute.xlu0 %1206
    %1210 = vset.pattern.permute.xlu0 0
    %1211 = vperm.xlu0 %1210, %v1177
    %v1212 = vpop.permute.xlu0 %1211
    %1215 = vset.pattern.permute.xlu0 0
    %1216 = vperm.xlu0 %1215, %v1178
    %v1217 = vpop.permute.xlu0 %1216
    %1220 = vset.pattern.permute.xlu0 0
    %1221 = vperm.xlu0 %1220, %v1179
    %v1222 = vpop.permute.xlu0 %1221
    %1225 = vset.pattern.permute.xlu0 0
    %1226 = vperm.xlu0 %1225, %v1180
    %v1227 = vpop.permute.xlu0 %1226
    %1230 = vset.pattern.permute.xlu0 0
    %1231 = vperm.xlu0 %1230, %v1181
    %v1232 = vpop.permute.xlu0 %1231
    %1235 = vset.pattern.permute.xlu0 0
    %1236 = vperm.xlu0 %1235, %v1182
    %v1237 = vpop.permute.xlu0 %1236
    %1240 = vset.pattern.permute.xlu0 0
    %1241 = vperm.xlu0 %1240, %v1183
    %v1242 = vpop.permute.xlu0 %1241
    %1245 = vset.pattern.permute.xlu0 0
    %1246 = vperm.xlu0 %1245, %v1184
    %v1247 = vpop.permute.xlu0 %1246
    %1250 = vset.pattern.permute.xlu0 0
    %1251 = vperm.xlu0 %1250, %v1185
    %v1252 = vpop.permute.xlu0 %1251
    %1255 = vset.pattern.permute.xlu0 0
    %1256 = vperm.xlu0 %1255, %v1186
    %v1257 = vpop.permute.xlu0 %1256
    %1260 = vset.pattern.permute.xlu0 0
    %1261 = vperm.xlu0 %1260, %v1187
    %v1262 = vpop.permute.xlu0 %1261
    %1265 = vset.pattern.permute.xlu0 0
    %1266 = vperm.xlu0 %1265, %v1188
    %v1267 = vpop.permute.xlu0 %1266
    %v1285 = vunpack.c.l.b16 %v1157
    %v1286 = vunpack.c.l.b16 %v1158
    %v1287 = vunpack.c.l.b16 %v1159
    %v1288 = vunpack.c.l.b16 %v1160
    %v1289 = vunpack.c.l.b16 %v1161
    %v1290 = vunpack.c.l.b16 %v1162
    %v1291 = vunpack.c.l.b16 %v1163
    %v1292 = vunpack.c.l.b16 %v1164
    %v1293 = vunpack.c.l.b16 %v1165
    %v1294 = vunpack.c.l.b16 %v1166
    %v1295 = vunpack.c.l.b16 %v1167
    %v1296 = vunpack.c.l.b16 %v1168
    %v1297 = vunpack.c.l.b16 %v1169
    %v1298 = vunpack.c.l.b16 %v1170
    %v1299 = vunpack.c.l.b16 %v1171
    %v1300 = vunpack.c.l.b16 %v1172
    %v1301 = vpack.c.b16 %v1286, %v1285
    %v1302 = vpack.c.b16 %v1288, %v1287
    %v1303 = vpack.c.b16 %v1290, %v1289
    %v1304 = vpack.c.b16 %v1292, %v1291
    %v1305 = vpack.c.b16 %v1294, %v1293
    %v1306 = vpack.c.b16 %v1296, %v1295
    %v1307 = vpack.c.b16 %v1298, %v1297
    %v1308 = vpack.c.b16 %v1300, %v1299
    %1317 = vmatpush.bf16.msra.mxu0 %v1149
    %1318 = vmatpush.bf16.msra.mxu0 %v1141
    %1319 = vmatpush.bf16.msra.mxu0 %v1133
    %1320 = vmatpush.bf16.msra.mxu0 %v1125
    %1321 = vmatpush.bf16.msra.mxu0 %v1117
    %1322 = vmatpush.bf16.msra.mxu0 %v1109
    %1323 = vmatpush.bf16.msra.mxu0 %v1101
    %1324 = vmatpush.bf16.msra.mxu0 %v1093
    %1325 = vmatmul.bf16.gmra.mxu0 %v1301
    %v1326 = vpop.f32.mrf.mxu0
    %v1327 = vadd.f32 %v1192, %v1326
    %v1328 = vpop.f32.mrf.mxu0
    %v1329 = vadd.f32 %v1197, %v1328
    %1330 = vmatmul.bf16.gmra.mxu0 %v1302
    %v1331 = vpop.f32.mrf.mxu0
    %v1332 = vadd.f32 %v1202, %v1331
    %v1333 = vpop.f32.mrf.mxu0
    %v1334 = vadd.f32 %v1207, %v1333
    %1335 = vmatmul.bf16.gmra.mxu0 %v1303
    %v1336 = vpop.f32.mrf.mxu0
    %v1337 = vadd.f32 %v1212, %v1336
    %v1338 = vpop.f32.mrf.mxu0
    %v1339 = vadd.f32 %v1217, %v1338
    %1340 = vmatmul.bf16.gmra.mxu0 %v1304
    %v1341 = vpop.f32.mrf.mxu0
    %v1342 = vadd.f32 %v1222, %v1341
    %v1343 = vpop.f32.mrf.mxu0
    %v1344 = vadd.f32 %v1227, %v1343
    %1345 = vmatmul.bf16.gmra.mxu0 %v1305
    %v1346 = vpop.f32.mrf.mxu0
    %v1347 = vadd.f32 %v1232, %v1346
    %v1348 = vpop.f32.mrf.mxu0
    %v1349 = vadd.f32 %v1237, %v1348
    %1350 = vmatmul.bf16.gmra.mxu0 %v1306
    %v1351 = vpop.f32.mrf.mxu0
    %v1352 = vadd.f32 %v1242, %v1351
    %v1353 = vpop.f32.mrf.mxu0
    %v1354 = vadd.f32 %v1247, %v1353
    %1355 = vmatmul.bf16.gmra.mxu0 %v1307
    %v1356 = vpop.f32.mrf.mxu0
    %v1357 = vadd.f32 %v1252, %v1356
    %v1358 = vpop.f32.mrf.mxu0
    %v1359 = vadd.f32 %v1257, %v1358
    %1360 = vmatmul.bf16.gmra.mxu0 %v1308
    %v1361 = vpop.f32.mrf.mxu0
    %v1362 = vadd.f32 %v1262, %v1361
    %v1363 = vpop.f32.mrf.mxu0
    %v1364 = vadd.f32 %v1267, %v1363
    %1365 = vdwg.mxu0
    %1366 = vmatpush.bf16.msra.mxu0 %v1150
    %1367 = vmatpush.bf16.msra.mxu0 %v1142
    %1368 = vmatpush.bf16.msra.mxu0 %v1134
    %1369 = vmatpush.bf16.msra.mxu0 %v1126
    %1370 = vmatpush.bf16.msra.mxu0 %v1118
    %1371 = vmatpush.bf16.msra.mxu0 %v1110
    %1372 = vmatpush.bf16.msra.mxu0 %v1102
    %1373 = vmatpush.bf16.msra.mxu0 %v1094
    %1374 = vmatmul.bf16.gmra.mxu0 %v1301
    %v1375 = vpop.f32.mrf.mxu0
    %v1376 = vadd.f32 %v1192, %v1375
    %v1377 = vpop.f32.mrf.mxu0
    %v1378 = vadd.f32 %v1197, %v1377
    %1379 = vmatmul.bf16.gmra.mxu0 %v1302
    %v1380 = vpop.f32.mrf.mxu0
    %v1381 = vadd.f32 %v1202, %v1380
    %v1382 = vpop.f32.mrf.mxu0
    %v1383 = vadd.f32 %v1207, %v1382
    %1384 = vmatmul.bf16.gmra.mxu0 %v1303
    %v1385 = vpop.f32.mrf.mxu0
    %v1386 = vadd.f32 %v1212, %v1385
    %v1387 = vpop.f32.mrf.mxu0
    %v1388 = vadd.f32 %v1217, %v1387
    %1389 = vmatmul.bf16.gmra.mxu0 %v1304
    %v1390 = vpop.f32.mrf.mxu0
    %v1391 = vadd.f32 %v1222, %v1390
    %v1392 = vpop.f32.mrf.mxu0
    %v1393 = vadd.f32 %v1227, %v1392
    %1394 = vmatmul.bf16.gmra.mxu0 %v1305
    %v1395 = vpop.f32.mrf.mxu0
    %v1396 = vadd.f32 %v1232, %v1395
    %v1397 = vpop.f32.mrf.mxu0
    %v1398 = vadd.f32 %v1237, %v1397
    %1399 = vmatmul.bf16.gmra.mxu0 %v1306
    %v1400 = vpop.f32.mrf.mxu0
    %v1401 = vadd.f32 %v1242, %v1400
    %v1402 = vpop.f32.mrf.mxu0
    %v1403 = vadd.f32 %v1247, %v1402
    %1404 = vmatmul.bf16.gmra.mxu0 %v1307
    %v1405 = vpop.f32.mrf.mxu0
    %v1406 = vadd.f32 %v1252, %v1405
    %v1407 = vpop.f32.mrf.mxu0
    %v1408 = vadd.f32 %v1257, %v1407
    %1409 = vmatmul.bf16.gmra.mxu0 %v1308
    %v1410 = vpop.f32.mrf.mxu0
    %v1411 = vadd.f32 %v1262, %v1410
    %v1412 = vpop.f32.mrf.mxu0
    %v1413 = vadd.f32 %v1267, %v1412
    %1414 = vdwg.mxu0
    %1415 = vmatpush.bf16.msra.mxu0 %v1151
    %1416 = vmatpush.bf16.msra.mxu0 %v1143
    %1417 = vmatpush.bf16.msra.mxu0 %v1135
    %1418 = vmatpush.bf16.msra.mxu0 %v1127
    %1419 = vmatpush.bf16.msra.mxu0 %v1119
    %1420 = vmatpush.bf16.msra.mxu0 %v1111
    %1421 = vmatpush.bf16.msra.mxu0 %v1103
    %1422 = vmatpush.bf16.msra.mxu0 %v1095
    %1423 = vmatmul.bf16.gmra.mxu0 %v1301
    %v1424 = vpop.f32.mrf.mxu0
    %v1425 = vadd.f32 %v1192, %v1424
    %v1426 = vpop.f32.mrf.mxu0
    %v1427 = vadd.f32 %v1197, %v1426
    %1428 = vmatmul.bf16.gmra.mxu0 %v1302
    %v1429 = vpop.f32.mrf.mxu0
    %v1430 = vadd.f32 %v1202, %v1429
    %v1431 = vpop.f32.mrf.mxu0
    %v1432 = vadd.f32 %v1207, %v1431
    %1433 = vmatmul.bf16.gmra.mxu0 %v1303
    %v1434 = vpop.f32.mrf.mxu0
    %v1435 = vadd.f32 %v1212, %v1434
    %v1436 = vpop.f32.mrf.mxu0
    %v1437 = vadd.f32 %v1217, %v1436
    %1438 = vmatmul.bf16.gmra.mxu0 %v1304
    %v1439 = vpop.f32.mrf.mxu0
    %v1440 = vadd.f32 %v1222, %v1439
    %v1441 = vpop.f32.mrf.mxu0
    %v1442 = vadd.f32 %v1227, %v1441
    %1443 = vmatmul.bf16.gmra.mxu0 %v1305
    %v1444 = vpop.f32.mrf.mxu0
    %v1445 = vadd.f32 %v1232, %v1444
    %v1446 = vpop.f32.mrf.mxu0
    %v1447 = vadd.f32 %v1237, %v1446
    %1448 = vmatmul.bf16.gmra.mxu0 %v1306
    %v1449 = vpop.f32.mrf.mxu0
    %v1450 = vadd.f32 %v1242, %v1449
    %v1451 = vpop.f32.mrf.mxu0
    %v1452 = vadd.f32 %v1247, %v1451
    %1453 = vmatmul.bf16.gmra.mxu0 %v1307
    %v1454 = vpop.f32.mrf.mxu0
    %v1455 = vadd.f32 %v1252, %v1454
    %v1456 = vpop.f32.mrf.mxu0
    %v1457 = vadd.f32 %v1257, %v1456
    %1458 = vmatmul.bf16.gmra.mxu0 %v1308
    %v1459 = vpop.f32.mrf.mxu0
    %v1460 = vadd.f32 %v1262, %v1459
    %v1461 = vpop.f32.mrf.mxu0
    %v1462 = vadd.f32 %v1267, %v1461
    %1463 = vdwg.mxu0
    %1464 = vmatpush.bf16.msra.mxu0 %v1152
    %1465 = vmatpush.bf16.msra.mxu0 %v1144
    %1466 = vmatpush.bf16.msra.mxu0 %v1136
    %1467 = vmatpush.bf16.msra.mxu0 %v1128
    %1468 = vmatpush.bf16.msra.mxu0 %v1120
    %1469 = vmatpush.bf16.msra.mxu0 %v1112
    %1470 = vmatpush.bf16.msra.mxu0 %v1104
    %1471 = vmatpush.bf16.msra.mxu0 %v1096
    %1472 = vmatmul.bf16.gmra.mxu0 %v1301
    %v1473 = vpop.f32.mrf.mxu0
    %v1474 = vadd.f32 %v1192, %v1473
    %v1475 = vpop.f32.mrf.mxu0
    %v1476 = vadd.f32 %v1197, %v1475
    %1477 = vmatmul.bf16.gmra.mxu0 %v1302
    %v1478 = vpop.f32.mrf.mxu0
    %v1479 = vadd.f32 %v1202, %v1478
    %v1480 = vpop.f32.mrf.mxu0
    %v1481 = vadd.f32 %v1207, %v1480
    %1482 = vmatmul.bf16.gmra.mxu0 %v1303
    %v1483 = vpop.f32.mrf.mxu0
    %v1484 = vadd.f32 %v1212, %v1483
    %v1485 = vpop.f32.mrf.mxu0
    %v1486 = vadd.f32 %v1217, %v1485
    %1487 = vmatmul.bf16.gmra.mxu0 %v1304
    %v1488 = vpop.f32.mrf.mxu0
    %v1489 = vadd.f32 %v1222, %v1488
    %v1490 = vpop.f32.mrf.mxu0
    %v1491 = vadd.f32 %v1227, %v1490
    %1492 = vmatmul.bf16.gmra.mxu0 %v1305
    %v1493 = vpop.f32.mrf.mxu0
    %v1494 = vadd.f32 %v1232, %v1493
    %v1495 = vpop.f32.mrf.mxu0
    %v1496 = vadd.f32 %v1237, %v1495
    %1497 = vmatmul.bf16.gmra.mxu0 %v1306
    %v1498 = vpop.f32.mrf.mxu0
    %v1499 = vadd.f32 %v1242, %v1498
    %v1500 = vpop.f32.mrf.mxu0
    %v1501 = vadd.f32 %v1247, %v1500
    %1502 = vmatmul.bf16.gmra.mxu0 %v1307
    %v1503 = vpop.f32.mrf.mxu0
    %v1504 = vadd.f32 %v1252, %v1503
    %v1505 = vpop.f32.mrf.mxu0
    %v1506 = vadd.f32 %v1257, %v1505
    %1507 = vmatmul.bf16.gmra.mxu0 %v1308
    %v1508 = vpop.f32.mrf.mxu0
    %v1509 = vadd.f32 %v1262, %v1508
    %v1510 = vpop.f32.mrf.mxu0
    %v1511 = vadd.f32 %v1267, %v1510
    %1512 = vdwg.mxu0
    %1513 = vmatpush.bf16.msra.mxu0 %v1153
    %1514 = vmatpush.bf16.msra.mxu0 %v1145
    %1515 = vmatpush.bf16.msra.mxu0 %v1137
    %1516 = vmatpush.bf16.msra.mxu0 %v1129
    %1517 = vmatpush.bf16.msra.mxu0 %v1121
    %1518 = vmatpush.bf16.msra.mxu0 %v1113
    %1519 = vmatpush.bf16.msra.mxu0 %v1105
    %1520 = vmatpush.bf16.msra.mxu0 %v1097
    %1521 = vmatmul.bf16.gmra.mxu0 %v1301
    %v1522 = vpop.f32.mrf.mxu0
    %v1523 = vadd.f32 %v1192, %v1522
    %v1524 = vpop.f32.mrf.mxu0
    %v1525 = vadd.f32 %v1197, %v1524
    %1526 = vmatmul.bf16.gmra.mxu0 %v1302
    %v1527 = vpop.f32.mrf.mxu0
    %v1528 = vadd.f32 %v1202, %v1527
    %v1529 = vpop.f32.mrf.mxu0
    %v1530 = vadd.f32 %v1207, %v1529
    %1531 = vmatmul.bf16.gmra.mxu0 %v1303
    %v1532 = vpop.f32.mrf.mxu0
    %v1533 = vadd.f32 %v1212, %v1532
    %v1534 = vpop.f32.mrf.mxu0
    %v1535 = vadd.f32 %v1217, %v1534
    %1536 = vmatmul.bf16.gmra.mxu0 %v1304
    %v1537 = vpop.f32.mrf.mxu0
    %v1538 = vadd.f32 %v1222, %v1537
    %v1539 = vpop.f32.mrf.mxu0
    %v1540 = vadd.f32 %v1227, %v1539
    %1541 = vmatmul.bf16.gmra.mxu0 %v1305
    %v1542 = vpop.f32.mrf.mxu0
    %v1543 = vadd.f32 %v1232, %v1542
    %v1544 = vpop.f32.mrf.mxu0
    %v1545 = vadd.f32 %v1237, %v1544
    %1546 = vmatmul.bf16.gmra.mxu0 %v1306
    %v1547 = vpop.f32.mrf.mxu0
    %v1548 = vadd.f32 %v1242, %v1547
    %v1549 = vpop.f32.mrf.mxu0
    %v1550 = vadd.f32 %v1247, %v1549
    %1551 = vmatmul.bf16.gmra.mxu0 %v1307
    %v1552 = vpop.f32.mrf.mxu0
    %v1553 = vadd.f32 %v1252, %v1552
    %v1554 = vpop.f32.mrf.mxu0
    %v1555 = vadd.f32 %v1257, %v1554
    %1556 = vmatmul.bf16.gmra.mxu0 %v1308
    %v1557 = vpop.f32.mrf.mxu0
    %v1558 = vadd.f32 %v1262, %v1557
    %v1559 = vpop.f32.mrf.mxu0
    %v1560 = vadd.f32 %v1267, %v1559
    %1561 = vdwg.mxu0
    %1562 = vmatpush.bf16.msra.mxu0 %v1154
    %1563 = vmatpush.bf16.msra.mxu0 %v1146
    %1564 = vmatpush.bf16.msra.mxu0 %v1138
    %1565 = vmatpush.bf16.msra.mxu0 %v1130
    %1566 = vmatpush.bf16.msra.mxu0 %v1122
    %1567 = vmatpush.bf16.msra.mxu0 %v1114
    %1568 = vmatpush.bf16.msra.mxu0 %v1106
    %1569 = vmatpush.bf16.msra.mxu0 %v1098
    %1570 = vmatmul.bf16.gmra.mxu0 %v1301
    %v1571 = vpop.f32.mrf.mxu0
    %v1572 = vadd.f32 %v1192, %v1571
    %v1573 = vpop.f32.mrf.mxu0
    %v1574 = vadd.f32 %v1197, %v1573
    %1575 = vmatmul.bf16.gmra.mxu0 %v1302
    %v1576 = vpop.f32.mrf.mxu0
    %v1577 = vadd.f32 %v1202, %v1576
    %v1578 = vpop.f32.mrf.mxu0
    %v1579 = vadd.f32 %v1207, %v1578
    %1580 = vmatmul.bf16.gmra.mxu0 %v1303
    %v1581 = vpop.f32.mrf.mxu0
    %v1582 = vadd.f32 %v1212, %v1581
    %v1583 = vpop.f32.mrf.mxu0
    %v1584 = vadd.f32 %v1217, %v1583
    %1585 = vmatmul.bf16.gmra.mxu0 %v1304
    %v1586 = vpop.f32.mrf.mxu0
    %v1587 = vadd.f32 %v1222, %v1586
    %v1588 = vpop.f32.mrf.mxu0
    %v1589 = vadd.f32 %v1227, %v1588
    %1590 = vmatmul.bf16.gmra.mxu0 %v1305
    %v1591 = vpop.f32.mrf.mxu0
    %v1592 = vadd.f32 %v1232, %v1591
    %v1593 = vpop.f32.mrf.mxu0
    %v1594 = vadd.f32 %v1237, %v1593
    %1595 = vmatmul.bf16.gmra.mxu0 %v1306
    %v1596 = vpop.f32.mrf.mxu0
    %v1597 = vadd.f32 %v1242, %v1596
    %v1598 = vpop.f32.mrf.mxu0
    %v1599 = vadd.f32 %v1247, %v1598
    %1600 = vmatmul.bf16.gmra.mxu0 %v1307
    %v1601 = vpop.f32.mrf.mxu0
    %v1602 = vadd.f32 %v1252, %v1601
    %v1603 = vpop.f32.mrf.mxu0
    %v1604 = vadd.f32 %v1257, %v1603
    %1605 = vmatmul.bf16.gmra.mxu0 %v1308
    %v1606 = vpop.f32.mrf.mxu0
    %v1607 = vadd.f32 %v1262, %v1606
    %v1608 = vpop.f32.mrf.mxu0
    %v1609 = vadd.f32 %v1267, %v1608
    %1610 = vdwg.mxu0
    %1611 = vmatpush.bf16.msra.mxu0 %v1155
    %1612 = vmatpush.bf16.msra.mxu0 %v1147
    %1613 = vmatpush.bf16.msra.mxu0 %v1139
    %1614 = vmatpush.bf16.msra.mxu0 %v1131
    %1615 = vmatpush.bf16.msra.mxu0 %v1123
    %1616 = vmatpush.bf16.msra.mxu0 %v1115
    %1617 = vmatpush.bf16.msra.mxu0 %v1107
    %1618 = vmatpush.bf16.msra.mxu0 %v1099
    %1619 = vmatmul.bf16.gmra.mxu0 %v1301
    %v1620 = vpop.f32.mrf.mxu0
    %v1621 = vadd.f32 %v1192, %v1620
    %v1622 = vpop.f32.mrf.mxu0
    %v1623 = vadd.f32 %v1197, %v1622
    %1624 = vmatmul.bf16.gmra.mxu0 %v1302
    %v1625 = vpop.f32.mrf.mxu0
    %v1626 = vadd.f32 %v1202, %v1625
    %v1627 = vpop.f32.mrf.mxu0
    %v1628 = vadd.f32 %v1207, %v1627
    %1629 = vmatmul.bf16.gmra.mxu0 %v1303
    %v1630 = vpop.f32.mrf.mxu0
    %v1631 = vadd.f32 %v1212, %v1630
    %v1632 = vpop.f32.mrf.mxu0
    %v1633 = vadd.f32 %v1217, %v1632
    %1634 = vmatmul.bf16.gmra.mxu0 %v1304
    %v1635 = vpop.f32.mrf.mxu0
    %v1636 = vadd.f32 %v1222, %v1635
    %v1637 = vpop.f32.mrf.mxu0
    %v1638 = vadd.f32 %v1227, %v1637
    %1639 = vmatmul.bf16.gmra.mxu0 %v1305
    %v1640 = vpop.f32.mrf.mxu0
    %v1641 = vadd.f32 %v1232, %v1640
    %v1642 = vpop.f32.mrf.mxu0
    %v1643 = vadd.f32 %v1237, %v1642
    %1644 = vmatmul.bf16.gmra.mxu0 %v1306
    %v1645 = vpop.f32.mrf.mxu0
    %v1646 = vadd.f32 %v1242, %v1645
    %v1647 = vpop.f32.mrf.mxu0
    %v1648 = vadd.f32 %v1247, %v1647
    %1649 = vmatmul.bf16.gmra.mxu0 %v1307
    %v1650 = vpop.f32.mrf.mxu0
    %v1651 = vadd.f32 %v1252, %v1650
    %v1652 = vpop.f32.mrf.mxu0
    %v1653 = vadd.f32 %v1257, %v1652
    %1654 = vmatmul.bf16.gmra.mxu0 %v1308
    %v1655 = vpop.f32.mrf.mxu0
    %v1656 = vadd.f32 %v1262, %v1655
    %v1657 = vpop.f32.mrf.mxu0
    %v1658 = vadd.f32 %v1267, %v1657
    %1659 = vdwg.mxu0
    %1660 = vmatpush.bf16.msra.mxu0 %v1156
    %1661 = vmatpush.bf16.msra.mxu0 %v1148
    %1662 = vmatpush.bf16.msra.mxu0 %v1140
    %1663 = vmatpush.bf16.msra.mxu0 %v1132
    %1664 = vmatpush.bf16.msra.mxu0 %v1124
    %1665 = vmatpush.bf16.msra.mxu0 %v1116
    %1666 = vmatpush.bf16.msra.mxu0 %v1108
    %1667 = vmatpush.bf16.msra.mxu0 %v1100
    %1668 = vmatmul.bf16.gmra.mxu0 %v1301
    %v1669 = vpop.f32.mrf.mxu0
    %v1670 = vadd.f32 %v1192, %v1669
    %v1671 = vpop.f32.mrf.mxu0
    %v1672 = vadd.f32 %v1197, %v1671
    %1673 = vmatmul.bf16.gmra.mxu0 %v1302
    %v1674 = vpop.f32.mrf.mxu0
    %v1675 = vadd.f32 %v1202, %v1674
    %v1676 = vpop.f32.mrf.mxu0
    %v1677 = vadd.f32 %v1207, %v1676
    %1678 = vmatmul.bf16.gmra.mxu0 %v1303
    %v1679 = vpop.f32.mrf.mxu0
    %v1680 = vadd.f32 %v1212, %v1679
    %v1681 = vpop.f32.mrf.mxu0
    %v1682 = vadd.f32 %v1217, %v1681
    %1683 = vmatmul.bf16.gmra.mxu0 %v1304
    %v1684 = vpop.f32.mrf.mxu0
    %v1685 = vadd.f32 %v1222, %v1684
    %v1686 = vpop.f32.mrf.mxu0
    %v1687 = vadd.f32 %v1227, %v1686
    %1688 = vmatmul.bf16.gmra.mxu0 %v1305
    %v1689 = vpop.f32.mrf.mxu0
    %v1690 = vadd.f32 %v1232, %v1689
    %v1691 = vpop.f32.mrf.mxu0
    %v1692 = vadd.f32 %v1237, %v1691
    %1693 = vmatmul.bf16.gmra.mxu0 %v1306
    %v1694 = vpop.f32.mrf.mxu0
    %v1695 = vadd.f32 %v1242, %v1694
    %v1696 = vpop.f32.mrf.mxu0
    %v1697 = vadd.f32 %v1247, %v1696
    %1698 = vmatmul.bf16.gmra.mxu0 %v1307
    %v1699 = vpop.f32.mrf.mxu0
    %v1700 = vadd.f32 %v1252, %v1699
    %v1701 = vpop.f32.mrf.mxu0
    %v1702 = vadd.f32 %v1257, %v1701
    %1703 = vmatmul.bf16.gmra.mxu0 %v1308
    %v1704 = vpop.f32.mrf.mxu0
    %v1705 = vadd.f32 %v1262, %v1704
    %v1706 = vpop.f32.mrf.mxu0
    %v1707 = vadd.f32 %v1267, %v1706
    %1708 = vdwg.mxu0
    %v1709 = vmul.f32 %v1327, 0.01
    %v1710 = vmul.f32 %v1376, 0.01
    %v1711 = vmul.f32 %v1425, 0.01
    %v1712 = vmul.f32 %v1474, 0.01
    %v1713 = vmul.f32 %v1523, 0.01
    %v1714 = vmul.f32 %v1572, 0.01
    %v1715 = vmul.f32 %v1621, 0.01
    %v1716 = vmul.f32 %v1670, 0.01
    %v1717 = vmul.f32 %v1329, 0.01
    %v1718 = vmul.f32 %v1378, 0.01
    %v1719 = vmul.f32 %v1427, 0.01
    %v1720 = vmul.f32 %v1476, 0.01
    %v1721 = vmul.f32 %v1525, 0.01
    %v1722 = vmul.f32 %v1574, 0.01
    %v1723 = vmul.f32 %v1623, 0.01
    %v1724 = vmul.f32 %v1672, 0.01
    %v1725 = vmul.f32 %v1332, 0.01
    %v1726 = vmul.f32 %v1381, 0.01
    %v1727 = vmul.f32 %v1430, 0.01
    %v1728 = vmul.f32 %v1479, 0.01
    %v1729 = vmul.f32 %v1528, 0.01
    %v1730 = vmul.f32 %v1577, 0.01
    %v1731 = vmul.f32 %v1626, 0.01
    %v1732 = vmul.f32 %v1675, 0.01
    %v1733 = vmul.f32 %v1334, 0.01
    %v1734 = vmul.f32 %v1383, 0.01
    %v1735 = vmul.f32 %v1432, 0.01
    %v1736 = vmul.f32 %v1481, 0.01
    %v1737 = vmul.f32 %v1530, 0.01
    %v1738 = vmul.f32 %v1579, 0.01
    %v1739 = vmul.f32 %v1628, 0.01
    %v1740 = vmul.f32 %v1677, 0.01
    %v1741 = vmul.f32 %v1337, 0.01
    %v1742 = vmul.f32 %v1386, 0.01
    %v1743 = vmul.f32 %v1435, 0.01
    %v1744 = vmul.f32 %v1484, 0.01
    %v1745 = vmul.f32 %v1533, 0.01
    %v1746 = vmul.f32 %v1582, 0.01
    %v1747 = vmul.f32 %v1631, 0.01
    %v1748 = vmul.f32 %v1680, 0.01
    %v1749 = vmul.f32 %v1339, 0.01
    %v1750 = vmul.f32 %v1388, 0.01
    %v1751 = vmul.f32 %v1437, 0.01
    %v1752 = vmul.f32 %v1486, 0.01
    %v1753 = vmul.f32 %v1535, 0.01
    %v1754 = vmul.f32 %v1584, 0.01
    %v1755 = vmul.f32 %v1633, 0.01
    %v1756 = vmul.f32 %v1682, 0.01
    %v1757 = vmul.f32 %v1342, 0.01
    %v1758 = vmul.f32 %v1391, 0.01
    %v1759 = vmul.f32 %v1440, 0.01
    %v1760 = vmul.f32 %v1489, 0.01
    %v1761 = vmul.f32 %v1538, 0.01
    %v1762 = vmul.f32 %v1587, 0.01
    %v1763 = vmul.f32 %v1636, 0.01
    %v1764 = vmul.f32 %v1685, 0.01
    %v1765 = vmul.f32 %v1344, 0.01
    %v1766 = vmul.f32 %v1393, 0.01
    %v1767 = vmul.f32 %v1442, 0.01
    %v1768 = vmul.f32 %v1491, 0.01
    %v1769 = vmul.f32 %v1540, 0.01
    %v1770 = vmul.f32 %v1589, 0.01
    %v1771 = vmul.f32 %v1638, 0.01
    %v1772 = vmul.f32 %v1687, 0.01
    %v1773 = vmul.f32 %v1347, 0.01
    %v1774 = vmul.f32 %v1396, 0.01
    %v1775 = vmul.f32 %v1445, 0.01
    %v1776 = vmul.f32 %v1494, 0.01
    %v1777 = vmul.f32 %v1543, 0.01
    %v1778 = vmul.f32 %v1592, 0.01
    %v1779 = vmul.f32 %v1641, 0.01
    %v1780 = vmul.f32 %v1690, 0.01
    %v1781 = vmul.f32 %v1349, 0.01
    %v1782 = vmul.f32 %v1398, 0.01
    %v1783 = vmul.f32 %v1447, 0.01
    %v1784 = vmul.f32 %v1496, 0.01
    %v1785 = vmul.f32 %v1545, 0.01
    %v1786 = vmul.f32 %v1594, 0.01
    %v1787 = vmul.f32 %v1643, 0.01
    %v1788 = vmul.f32 %v1692, 0.01
    %v1789 = vmul.f32 %v1352, 0.01
    %v1790 = vmul.f32 %v1401, 0.01
    %v1791 = vmul.f32 %v1450, 0.01
    %v1792 = vmul.f32 %v1499, 0.01
    %v1793 = vmul.f32 %v1548, 0.01
    %v1794 = vmul.f32 %v1597, 0.01
    %v1795 = vmul.f32 %v1646, 0.01
    %v1796 = vmul.f32 %v1695, 0.01
    %v1797 = vmul.f32 %v1354, 0.01
    %v1798 = vmul.f32 %v1403, 0.01
    %v1799 = vmul.f32 %v1452, 0.01
    %v1800 = vmul.f32 %v1501, 0.01
    %v1801 = vmul.f32 %v1550, 0.01
    %v1802 = vmul.f32 %v1599, 0.01
    %v1803 = vmul.f32 %v1648, 0.01
    %v1804 = vmul.f32 %v1697, 0.01
    %v1805 = vmul.f32 %v1357, 0.01
    %v1806 = vmul.f32 %v1406, 0.01
    %v1807 = vmul.f32 %v1455, 0.01
    %v1808 = vmul.f32 %v1504, 0.01
    %v1809 = vmul.f32 %v1553, 0.01
    %v1810 = vmul.f32 %v1602, 0.01
    %v1811 = vmul.f32 %v1651, 0.01
    %v1812 = vmul.f32 %v1700, 0.01
    %v1813 = vmul.f32 %v1359, 0.01
    %v1814 = vmul.f32 %v1408, 0.01
    %v1815 = vmul.f32 %v1457, 0.01
    %v1816 = vmul.f32 %v1506, 0.01
    %v1817 = vmul.f32 %v1555, 0.01
    %v1818 = vmul.f32 %v1604, 0.01
    %v1819 = vmul.f32 %v1653, 0.01
    %v1820 = vmul.f32 %v1702, 0.01
    %v1821 = vmul.f32 %v1362, 0.01
    %v1822 = vmul.f32 %v1411, 0.01
    %v1823 = vmul.f32 %v1460, 0.01
    %v1824 = vmul.f32 %v1509, 0.01
    %v1825 = vmul.f32 %v1558, 0.01
    %v1826 = vmul.f32 %v1607, 0.01
    %v1827 = vmul.f32 %v1656, 0.01
    %v1828 = vmul.f32 %v1705, 0.01
    %v1829 = vmul.f32 %v1364, 0.01
    %v1830 = vmul.f32 %v1413, 0.01
    %v1831 = vmul.f32 %v1462, 0.01
    %v1832 = vmul.f32 %v1511, 0.01
    %v1833 = vmul.f32 %v1560, 0.01
    %v1834 = vmul.f32 %v1609, 0.01
    %v1835 = vmul.f32 %v1658, 0.01
    %v1836 = vmul.f32 %v1707, 0.01
    %v1837 = vmax.f32 %v1327, %v1709
    %v1838 = vmax.f32 %v1376, %v1710
    %v1839 = vmax.f32 %v1425, %v1711
    %v1840 = vmax.f32 %v1474, %v1712
    %v1841 = vmax.f32 %v1523, %v1713
    %v1842 = vmax.f32 %v1572, %v1714
    %v1843 = vmax.f32 %v1621, %v1715
    %v1844 = vmax.f32 %v1670, %v1716
    %v1845 = vmax.f32 %v1329, %v1717
    %v1846 = vmax.f32 %v1378, %v1718
    %v1847 = vmax.f32 %v1427, %v1719
    %v1848 = vmax.f32 %v1476, %v1720
    %v1849 = vmax.f32 %v1525, %v1721
    %v1850 = vmax.f32 %v1574, %v1722
    %v1851 = vmax.f32 %v1623, %v1723
    %v1852 = vmax.f32 %v1672, %v1724
    %v1853 = vmax.f32 %v1332, %v1725
    %v1854 = vmax.f32 %v1381, %v1726
    %v1855 = vmax.f32 %v1430, %v1727
    %v1856 = vmax.f32 %v1479, %v1728
    %v1857 = vmax.f32 %v1528, %v1729
    %v1858 = vmax.f32 %v1577, %v1730
    %v1859 = vmax.f32 %v1626, %v1731
    %v1860 = vmax.f32 %v1675, %v1732
    %v1861 = vmax.f32 %v1334, %v1733
    %v1862 = vmax.f32 %v1383, %v1734
    %v1863 = vmax.f32 %v1432, %v1735
    %v1864 = vmax.f32 %v1481, %v1736
    %v1865 = vmax.f32 %v1530, %v1737
    %v1866 = vmax.f32 %v1579, %v1738
    %v1867 = vmax.f32 %v1628, %v1739
    %v1868 = vmax.f32 %v1677, %v1740
    %v1869 = vmax.f32 %v1337, %v1741
    %v1870 = vmax.f32 %v1386, %v1742
    %v1871 = vmax.f32 %v1435, %v1743
    %v1872 = vmax.f32 %v1484, %v1744
    %v1873 = vmax.f32 %v1533, %v1745
    %v1874 = vmax.f32 %v1582, %v1746
    %v1875 = vmax.f32 %v1631, %v1747
    %v1876 = vmax.f32 %v1680, %v1748
    %v1877 = vmax.f32 %v1339, %v1749
    %v1878 = vmax.f32 %v1388, %v1750
    %v1879 = vmax.f32 %v1437, %v1751
    %v1880 = vmax.f32 %v1486, %v1752
    %v1881 = vmax.f32 %v1535, %v1753
    %v1882 = vmax.f32 %v1584, %v1754
    %v1883 = vmax.f32 %v1633, %v1755
    %v1884 = vmax.f32 %v1682, %v1756
    %v1885 = vmax.f32 %v1342, %v1757
    %v1886 = vmax.f32 %v1391, %v1758
    %v1887 = vmax.f32 %v1440, %v1759
    %v1888 = vmax.f32 %v1489, %v1760
    %v1889 = vmax.f32 %v1538, %v1761
    %v1890 = vmax.f32 %v1587, %v1762
    %v1891 = vmax.f32 %v1636, %v1763
    %v1892 = vmax.f32 %v1685, %v1764
    %v1893 = vmax.f32 %v1344, %v1765
    %v1894 = vmax.f32 %v1393, %v1766
    %v1895 = vmax.f32 %v1442, %v1767
    %v1896 = vmax.f32 %v1491, %v1768
    %v1897 = vmax.f32 %v1540, %v1769
    %v1898 = vmax.f32 %v1589, %v1770
    %v1899 = vmax.f32 %v1638, %v1771
    %v1900 = vmax.f32 %v1687, %v1772
    %v1901 = vmax.f32 %v1347, %v1773
    %v1902 = vmax.f32 %v1396, %v1774
    %v1903 = vmax.f32 %v1445, %v1775
    %v1904 = vmax.f32 %v1494, %v1776
    %v1905 = vmax.f32 %v1543, %v1777
    %v1906 = vmax.f32 %v1592, %v1778
    %v1907 = vmax.f32 %v1641, %v1779
    %v1908 = vmax.f32 %v1690, %v1780
    %v1909 = vmax.f32 %v1349, %v1781
    %v1910 = vmax.f32 %v1398, %v1782
    %v1911 = vmax.f32 %v1447, %v1783
    %v1912 = vmax.f32 %v1496, %v1784
    %v1913 = vmax.f32 %v1545, %v1785
    %v1914 = vmax.f32 %v1594, %v1786
    %v1915 = vmax.f32 %v1643, %v1787
    %v1916 = vmax.f32 %v1692, %v1788
    %v1917 = vmax.f32 %v1352, %v1789
    %v1918 = vmax.f32 %v1401, %v1790
    %v1919 = vmax.f32 %v1450, %v1791
    %v1920 = vmax.f32 %v1499, %v1792
    %v1921 = vmax.f32 %v1548, %v1793
    %v1922 = vmax.f32 %v1597, %v1794
    %v1923 = vmax.f32 %v1646, %v1795
    %v1924 = vmax.f32 %v1695, %v1796
    %v1925 = vmax.f32 %v1354, %v1797
    %v1926 = vmax.f32 %v1403, %v1798
    %v1927 = vmax.f32 %v1452, %v1799
    %v1928 = vmax.f32 %v1501, %v1800
    %v1929 = vmax.f32 %v1550, %v1801
    %v1930 = vmax.f32 %v1599, %v1802
    %v1931 = vmax.f32 %v1648, %v1803
    %v1932 = vmax.f32 %v1697, %v1804
    %v1933 = vmax.f32 %v1357, %v1805
    %v1934 = vmax.f32 %v1406, %v1806
    %v1935 = vmax.f32 %v1455, %v1807
    %v1936 = vmax.f32 %v1504, %v1808
    %v1937 = vmax.f32 %v1553, %v1809
    %v1938 = vmax.f32 %v1602, %v1810
    %v1939 = vmax.f32 %v1651, %v1811
    %v1940 = vmax.f32 %v1700, %v1812
    %v1941 = vmax.f32 %v1359, %v1813
    %v1942 = vmax.f32 %v1408, %v1814
    %v1943 = vmax.f32 %v1457, %v1815
    %v1944 = vmax.f32 %v1506, %v1816
    %v1945 = vmax.f32 %v1555, %v1817
    %v1946 = vmax.f32 %v1604, %v1818
    %v1947 = vmax.f32 %v1653, %v1819
    %v1948 = vmax.f32 %v1702, %v1820
    %v1949 = vmax.f32 %v1362, %v1821
    %v1950 = vmax.f32 %v1411, %v1822
    %v1951 = vmax.f32 %v1460, %v1823
    %v1952 = vmax.f32 %v1509, %v1824
    %v1953 = vmax.f32 %v1558, %v1825
    %v1954 = vmax.f32 %v1607, %v1826
    %v1955 = vmax.f32 %v1656, %v1827
    %v1956 = vmax.f32 %v1705, %v1828
    %v1957 = vmax.f32 %v1364, %v1829
    %v1958 = vmax.f32 %v1413, %v1830
    %v1959 = vmax.f32 %v1462, %v1831
    %v1960 = vmax.f32 %v1511, %v1832
    %v1961 = vmax.f32 %v1560, %v1833
    %v1962 = vmax.f32 %v1609, %v1834
    %v1963 = vmax.f32 %v1658, %v1835
    %v1964 = vmax.f32 %v1707, %v1836
    %v1965 = vpack.c.bf16 %v1838, %v1837
    %v1966 = vpack.c.bf16 %v1840, %v1839
    %v1967 = vpack.c.bf16 %v1842, %v1841
    %v1968 = vpack.c.bf16 %v1844, %v1843
    %v1969 = vpack.c.bf16 %v1846, %v1845
    %v1970 = vpack.c.bf16 %v1848, %v1847
    %v1971 = vpack.c.bf16 %v1850, %v1849
    %v1972 = vpack.c.bf16 %v1852, %v1851
    %v1973 = vpack.c.bf16 %v1854, %v1853
    %v1974 = vpack.c.bf16 %v1856, %v1855
    %v1975 = vpack.c.bf16 %v1858, %v1857
    %v1976 = vpack.c.bf16 %v1860, %v1859
    %v1977 = vpack.c.bf16 %v1862, %v1861
    %v1978 = vpack.c.bf16 %v1864, %v1863
    %v1979 = vpack.c.bf16 %v1866, %v1865
    %v1980 = vpack.c.bf16 %v1868, %v1867
    %v1981 = vpack.c.bf16 %v1870, %v1869
    %v1982 = vpack.c.bf16 %v1872, %v1871
    %v1983 = vpack.c.bf16 %v1874, %v1873
    %v1984 = vpack.c.bf16 %v1876, %v1875
    %v1985 = vpack.c.bf16 %v1878, %v1877
    %v1986 = vpack.c.bf16 %v1880, %v1879
    %v1987 = vpack.c.bf16 %v1882, %v1881
    %v1988 = vpack.c.bf16 %v1884, %v1883
    %v1989 = vpack.c.bf16 %v1886, %v1885
    %v1990 = vpack.c.bf16 %v1888, %v1887
    %v1991 = vpack.c.bf16 %v1890, %v1889
    %v1992 = vpack.c.bf16 %v1892, %v1891
    %v1993 = vpack.c.bf16 %v1894, %v1893
    %v1994 = vpack.c.bf16 %v1896, %v1895
    %v1995 = vpack.c.bf16 %v1898, %v1897
    %v1996 = vpack.c.bf16 %v1900, %v1899
    %v1997 = vpack.c.bf16 %v1902, %v1901
    %v1998 = vpack.c.bf16 %v1904, %v1903
    %v1999 = vpack.c.bf16 %v1906, %v1905
    %v2000 = vpack.c.bf16 %v1908, %v1907
    %v2001 = vpack.c.bf16 %v1910, %v1909
    %v2002 = vpack.c.bf16 %v1912, %v1911
    %v2003 = vpack.c.bf16 %v1914, %v1913
    %v2004 = vpack.c.bf16 %v1916, %v1915
    %v2005 = vpack.c.bf16 %v1918, %v1917
    %v2006 = vpack.c.bf16 %v1920, %v1919
    %v2007 = vpack.c.bf16 %v1922, %v1921
    %v2008 = vpack.c.bf16 %v1924, %v1923
    %v2009 = vpack.c.bf16 %v1926, %v1925
    %v2010 = vpack.c.bf16 %v1928, %v1927
    %v2011 = vpack.c.bf16 %v1930, %v1929
    %v2012 = vpack.c.bf16 %v1932, %v1931
    %v2013 = vpack.c.bf16 %v1934, %v1933
    %v2014 = vpack.c.bf16 %v1936, %v1935
    %v2015 = vpack.c.bf16 %v1938, %v1937
    %v2016 = vpack.c.bf16 %v1940, %v1939
    %v2017 = vpack.c.bf16 %v1942, %v1941
    %v2018 = vpack.c.bf16 %v1944, %v1943
    %v2019 = vpack.c.bf16 %v1946, %v1945
    %v2020 = vpack.c.bf16 %v1948, %v1947
    %v2021 = vpack.c.bf16 %v1950, %v1949
    %v2022 = vpack.c.bf16 %v1952, %v1951
    %v2023 = vpack.c.bf16 %v1954, %v1953
    %v2024 = vpack.c.bf16 %v1956, %v1955
    %v2025 = vpack.c.bf16 %v1958, %v1957
    %v2026 = vpack.c.bf16 %v1960, %v1959
    %v2027 = vpack.c.bf16 %v1962, %v1961
    %v2028 = vpack.c.bf16 %v1964, %v1963
    %v2029 = vld [vmem:[%s5] sm:$0x1]
    %s2030 = sld [smem:[#allocation2]]
    %v2031 = vstv %s2030
    %v2048 = vunpack.c.l.b16 %v1965
    %v2049 = vunpack.c.l.b16 %v1969
    %v2050 = vunpack.c.l.b16 %v1973
    %v2051 = vunpack.c.l.b16 %v1977
    %v2052 = vunpack.c.l.b16 %v1981
    %v2053 = vunpack.c.l.b16 %v1985
    %v2054 = vunpack.c.l.b16 %v1989
    %v2055 = vunpack.c.l.b16 %v1993
    %v2056 = vunpack.c.l.b16 %v1997
    %v2057 = vunpack.c.l.b16 %v2001
    %v2058 = vunpack.c.l.b16 %v2005
    %v2059 = vunpack.c.l.b16 %v2009
    %v2060 = vunpack.c.l.b16 %v2013
    %v2061 = vunpack.c.l.b16 %v2017
    %v2062 = vunpack.c.l.b16 %v2021
    %v2063 = vunpack.c.l.b16 %v2025
    %v2064 = vpack.c.b16 %v2049, %v2048
    %v2065 = vpack.c.b16 %v2051, %v2050
    %v2066 = vpack.c.b16 %v2053, %v2052
    %v2067 = vpack.c.b16 %v2055, %v2054
    %v2068 = vpack.c.b16 %v2057, %v2056
    %v2069 = vpack.c.b16 %v2059, %v2058
    %v2070 = vpack.c.b16 %v2061, %v2060
    %v2071 = vpack.c.b16 %v2063, %v2062
    %2080 = vmatpush.bf16.msra.mxu0 %v2071
    %2081 = vmatpush.bf16.msra.mxu0 %v2070
    %2082 = vmatpush.bf16.msra.mxu0 %v2069
    %2083 = vmatpush.bf16.msra.mxu0 %v2068
    %2084 = vmatpush.bf16.msra.mxu0 %v2067
    %2085 = vmatpush.bf16.msra.mxu0 %v2066
    %2086 = vmatpush.bf16.msra.mxu0 %v2065
    %2087 = vmatpush.bf16.msra.mxu0 %v2064
    %2088 = vmatmul.bf16.gmra.mxu0 %v2029
    %v2089 = vpop.f32.mrf.mxu0
    %v2090 = vadd.f32 %v2031, %v2089
    %v2091 = vpop.f32.mrf.mxu0
    %2092 = vdwg.mxu0
    %2093 = vst [vmem:[#allocation6] sm:$0x1] %v2090
    %v2094 = vunpack.c.h.b16 %v1965
    %v2095 = vunpack.c.h.b16 %v1969
    %v2096 = vunpack.c.h.b16 %v1973
    %v2097 = vunpack.c.h.b16 %v1977
    %v2098 = vunpack.c.h.b16 %v1981
    %v2099 = vunpack.c.h.b16 %v1985
    %v2100 = vunpack.c.h.b16 %v1989
    %v2101 = vunpack.c.h.b16 %v1993
    %v2102 = vunpack.c.h.b16 %v1997
    %v2103 = vunpack.c.h.b16 %v2001
    %v2104 = vunpack.c.h.b16 %v2005
    %v2105 = vunpack.c.h.b16 %v2009
    %v2106 = vunpack.c.h.b16 %v2013
    %v2107 = vunpack.c.h.b16 %v2017
    %v2108 = vunpack.c.h.b16 %v2021
    %v2109 = vunpack.c.h.b16 %v2025
    %v2110 = vpack.c.b16 %v2095, %v2094
    %v2111 = vpack.c.b16 %v2097, %v2096
    %v2112 = vpack.c.b16 %v2099, %v2098
    %v2113 = vpack.c.b16 %v2101, %v2100
    %v2114 = vpack.c.b16 %v2103, %v2102
    %v2115 = vpack.c.b16 %v2105, %v2104
    %v2116 = vpack.c.b16 %v2107, %v2106
    %v2117 = vpack.c.b16 %v2109, %v2108
    %2126 = vmatpush.bf16.msra.mxu0 %v2117
    %2127 = vmatpush.bf16.msra.mxu0 %v2116
    %2128 = vmatpush.bf16.msra.mxu0 %v2115
    %2129 = vmatpush.bf16.msra.mxu0 %v2114
    %2130 = vmatpush.bf16.msra.mxu0 %v2113
    %2131 = vmatpush.bf16.msra.mxu0 %v2112
    %2132 = vmatpush.bf16.msra.mxu0 %v2111
    %2133 = vmatpush.bf16.msra.mxu0 %v2110
    %2134 = vmatmul.bf16.gmra.mxu0 %v2029
    %v2135 = vpop.f32.mrf.mxu0
    %v2136 = vadd.f32 %v2031, %v2135
    %v2137 = vpop.f32.mrf.mxu0
    %2138 = vdwg.mxu0
    %2139 = vst [vmem:[#allocation6 + $0x1] sm:$0x1] %v2136
    %v2156 = vunpack.c.l.b16 %v1966
    %v2157 = vunpack.c.l.b16 %v1970
    %v2158 = vunpack.c.l.b16 %v1974
    %v2159 = vunpack.c.l.b16 %v1978
    %v2160 = vunpack.c.l.b16 %v1982
    %v2161 = vunpack.c.l.b16 %v1986
    %v2162 = vunpack.c.l.b16 %v1990
    %v2163 = vunpack.c.l.b16 %v1994
    %v2164 = vunpack.c.l.b16 %v1998
    %v2165 = vunpack.c.l.b16 %v2002
    %v2166 = vunpack.c.l.b16 %v2006
    %v2167 = vunpack.c.l.b16 %v2010
    %v2168 = vunpack.c.l.b16 %v2014
    %v2169 = vunpack.c.l.b16 %v2018
    %v2170 = vunpack.c.l.b16 %v2022
    %v2171 = vunpack.c.l.b16 %v2026
    %v2172 = vpack.c.b16 %v2157, %v2156
    %v2173 = vpack.c.b16 %v2159, %v2158
    %v2174 = vpack.c.b16 %v2161, %v2160
    %v2175 = vpack.c.b16 %v2163, %v2162
    %v2176 = vpack.c.b16 %v2165, %v2164
    %v2177 = vpack.c.b16 %v2167, %v2166
    %v2178 = vpack.c.b16 %v2169, %v2168
    %v2179 = vpack.c.b16 %v2171, %v2170
    %2188 = vmatpush.bf16.msra.mxu0 %v2179
    %2189 = vmatpush.bf16.msra.mxu0 %v2178
    %2190 = vmatpush.bf16.msra.mxu0 %v2177
    %2191 = vmatpush.bf16.msra.mxu0 %v2176
    %2192 = vmatpush.bf16.msra.mxu0 %v2175
    %2193 = vmatpush.bf16.msra.mxu0 %v2174
    %2194 = vmatpush.bf16.msra.mxu0 %v2173
    %2195 = vmatpush.bf16.msra.mxu0 %v2172
    %2196 = vmatmul.bf16.gmra.mxu0 %v2029
    %v2197 = vpop.f32.mrf.mxu0
    %v2198 = vadd.f32 %v2031, %v2197
    %v2199 = vpop.f32.mrf.mxu0
    %2200 = vdwg.mxu0
    %2201 = vst [vmem:[#allocation6 + $0x2] sm:$0x1] %v2198
    %v2202 = vunpack.c.h.b16 %v1966
    %v2203 = vunpack.c.h.b16 %v1970
    %v2204 = vunpack.c.h.b16 %v1974
    %v2205 = vunpack.c.h.b16 %v1978
    %v2206 = vunpack.c.h.b16 %v1982
    %v2207 = vunpack.c.h.b16 %v1986
    %v2208 = vunpack.c.h.b16 %v1990
    %v2209 = vunpack.c.h.b16 %v1994
    %v2210 = vunpack.c.h.b16 %v1998
    %v2211 = vunpack.c.h.b16 %v2002
    %v2212 = vunpack.c.h.b16 %v2006
    %v2213 = vunpack.c.h.b16 %v2010
    %v2214 = vunpack.c.h.b16 %v2014
    %v2215 = vunpack.c.h.b16 %v2018
    %v2216 = vunpack.c.h.b16 %v2022
    %v2217 = vunpack.c.h.b16 %v2026
    %v2218 = vpack.c.b16 %v2203, %v2202
    %v2219 = vpack.c.b16 %v2205, %v2204
    %v2220 = vpack.c.b16 %v2207, %v2206
    %v2221 = vpack.c.b16 %v2209, %v2208
    %v2222 = vpack.c.b16 %v2211, %v2210
    %v2223 = vpack.c.b16 %v2213, %v2212
    %v2224 = vpack.c.b16 %v2215, %v2214
    %v2225 = vpack.c.b16 %v2217, %v2216
    %2234 = vmatpush.bf16.msra.mxu0 %v2225
    %2235 = vmatpush.bf16.msra.mxu0 %v2224
    %2236 = vmatpush.bf16.msra.mxu0 %v2223
    %2237 = vmatpush.bf16.msra.mxu0 %v2222
    %2238 = vmatpush.bf16.msra.mxu0 %v2221
    %2239 = vmatpush.bf16.msra.mxu0 %v2220
    %2240 = vmatpush.bf16.msra.mxu0 %v2219
    %2241 = vmatpush.bf16.msra.mxu0 %v2218
    %2242 = vmatmul.bf16.gmra.mxu0 %v2029
    %v2243 = vpop.f32.mrf.mxu0
    %v2244 = vadd.f32 %v2031, %v2243
    %v2245 = vpop.f32.mrf.mxu0
    %2246 = vdwg.mxu0
    %2247 = vst [vmem:[#allocation6 + $0x3] sm:$0x1] %v2244
    %v2264 = vunpack.c.l.b16 %v1967
    %v2265 = vunpack.c.l.b16 %v1971
    %v2266 = vunpack.c.l.b16 %v1975
    %v2267 = vunpack.c.l.b16 %v1979
    %v2268 = vunpack.c.l.b16 %v1983
    %v2269 = vunpack.c.l.b16 %v1987
    %v2270 = vunpack.c.l.b16 %v1991
    %v2271 = vunpack.c.l.b16 %v1995
    %v2272 = vunpack.c.l.b16 %v1999
    %v2273 = vunpack.c.l.b16 %v2003
    %v2274 = vunpack.c.l.b16 %v2007
    %v2275 = vunpack.c.l.b16 %v2011
    %v2276 = vunpack.c.l.b16 %v2015
    %v2277 = vunpack.c.l.b16 %v2019
    %v2278 = vunpack.c.l.b16 %v2023
    %v2279 = vunpack.c.l.b16 %v2027
    %v2280 = vpack.c.b16 %v2265, %v2264
    %v2281 = vpack.c.b16 %v2267, %v2266
    %v2282 = vpack.c.b16 %v2269, %v2268
    %v2283 = vpack.c.b16 %v2271, %v2270
    %v2284 = vpack.c.b16 %v2273, %v2272
    %v2285 = vpack.c.b16 %v2275, %v2274
    %v2286 = vpack.c.b16 %v2277, %v2276
    %v2287 = vpack.c.b16 %v2279, %v2278
    %2296 = vmatpush.bf16.msra.mxu0 %v2287
    %2297 = vmatpush.bf16.msra.mxu0 %v2286
    %2298 = vmatpush.bf16.msra.mxu0 %v2285
    %2299 = vmatpush.bf16.msra.mxu0 %v2284
    %2300 = vmatpush.bf16.msra.mxu0 %v2283
    %2301 = vmatpush.bf16.msra.mxu0 %v2282
    %2302 = vmatpush.bf16.msra.mxu0 %v2281
    %2303 = vmatpush.bf16.msra.mxu0 %v2280
    %2304 = vmatmul.bf16.gmra.mxu0 %v2029
    %v2305 = vpop.f32.mrf.mxu0
    %v2306 = vadd.f32 %v2031, %v2305
    %v2307 = vpop.f32.mrf.mxu0
    %2308 = vdwg.mxu0
    %2309 = vst [vmem:[#allocation6 + $0x4] sm:$0x1] %v2306
    %v2310 = vunpack.c.h.b16 %v1967
    %v2311 = vunpack.c.h.b16 %v1971
    %v2312 = vunpack.c.h.b16 %v1975
    %v2313 = vunpack.c.h.b16 %v1979
    %v2314 = vunpack.c.h.b16 %v1983
    %v2315 = vunpack.c.h.b16 %v1987
    %v2316 = vunpack.c.h.b16 %v1991
    %v2317 = vunpack.c.h.b16 %v1995
    %v2318 = vunpack.c.h.b16 %v1999
    %v2319 = vunpack.c.h.b16 %v2003
    %v2320 = vunpack.c.h.b16 %v2007
    %v2321 = vunpack.c.h.b16 %v2011
    %v2322 = vunpack.c.h.b16 %v2015
    %v2323 = vunpack.c.h.b16 %v2019
    %v2324 = vunpack.c.h.b16 %v2023
    %v2325 = vunpack.c.h.b16 %v2027
    %v2326 = vpack.c.b16 %v2311, %v2310
    %v2327 = vpack.c.b16 %v2313, %v2312
    %v2328 = vpack.c.b16 %v2315, %v2314
    %v2329 = vpack.c.b16 %v2317, %v2316
    %v2330 = vpack.c.b16 %v2319, %v2318
    %v2331 = vpack.c.b16 %v2321, %v2320
    %v2332 = vpack.c.b16 %v2323, %v2322
    %v2333 = vpack.c.b16 %v2325, %v2324
    %2342 = vmatpush.bf16.msra.mxu0 %v2333
    %2343 = vmatpush.bf16.msra.mxu0 %v2332
    %2344 = vmatpush.bf16.msra.mxu0 %v2331
    %2345 = vmatpush.bf16.msra.mxu0 %v2330
    %2346 = vmatpush.bf16.msra.mxu0 %v2329
    %2347 = vmatpush.bf16.msra.mxu0 %v2328
    %2348 = vmatpush.bf16.msra.mxu0 %v2327
    %2349 = vmatpush.bf16.msra.mxu0 %v2326
    %2350 = vmatmul.bf16.gmra.mxu0 %v2029
    %v2351 = vpop.f32.mrf.mxu0
    %v2352 = vadd.f32 %v2031, %v2351
    %v2353 = vpop.f32.mrf.mxu0
    %2354 = vdwg.mxu0
    %2355 = vst [vmem:[#allocation6 + $0x5] sm:$0x1] %v2352
    %v2372 = vunpack.c.l.b16 %v1968
    %v2373 = vunpack.c.l.b16 %v1972
    %v2374 = vunpack.c.l.b16 %v1976
    %v2375 = vunpack.c.l.b16 %v1980
    %v2376 = vunpack.c.l.b16 %v1984
    %v2377 = vunpack.c.l.b16 %v1988
    %v2378 = vunpack.c.l.b16 %v1992
    %v2379 = vunpack.c.l.b16 %v1996
    %v2380 = vunpack.c.l.b16 %v2000
    %v2381 = vunpack.c.l.b16 %v2004
    %v2382 = vunpack.c.l.b16 %v2008
    %v2383 = vunpack.c.l.b16 %v2012
    %v2384 = vunpack.c.l.b16 %v2016
    %v2385 = vunpack.c.l.b16 %v2020
    %v2386 = vunpack.c.l.b16 %v2024
    %v2387 = vunpack.c.l.b16 %v2028
    %v2388 = vpack.c.b16 %v2373, %v2372
    %v2389 = vpack.c.b16 %v2375, %v2374
    %v2390 = vpack.c.b16 %v2377, %v2376
    %v2391 = vpack.c.b16 %v2379, %v2378
    %v2392 = vpack.c.b16 %v2381, %v2380
    %v2393 = vpack.c.b16 %v2383, %v2382
    %v2394 = vpack.c.b16 %v2385, %v2384
    %v2395 = vpack.c.b16 %v2387, %v2386
    %2404 = vmatpush.bf16.msra.mxu0 %v2395
    %2405 = vmatpush.bf16.msra.mxu0 %v2394
    %2406 = vmatpush.bf16.msra.mxu0 %v2393
    %2407 = vmatpush.bf16.msra.mxu0 %v2392
    %2408 = vmatpush.bf16.msra.mxu0 %v2391
    %2409 = vmatpush.bf16.msra.mxu0 %v2390
    %2410 = vmatpush.bf16.msra.mxu0 %v2389
    %2411 = vmatpush.bf16.msra.mxu0 %v2388
    %2412 = vmatmul.bf16.gmra.mxu0 %v2029
    %v2413 = vpop.f32.mrf.mxu0
    %v2414 = vadd.f32 %v2031, %v2413
    %v2415 = vpop.f32.mrf.mxu0
    %2416 = vdwg.mxu0
    %2417 = vst [vmem:[#allocation6 + $0x6] sm:$0x1] %v2414
    %v2418 = vunpack.c.h.b16 %v1968
    %v2419 = vunpack.c.h.b16 %v1972
    %v2420 = vunpack.c.h.b16 %v1976
    %v2421 = vunpack.c.h.b16 %v1980
    %v2422 = vunpack.c.h.b16 %v1984
    %v2423 = vunpack.c.h.b16 %v1988
    %v2424 = vunpack.c.h.b16 %v1992
    %v2425 = vunpack.c.h.b16 %v1996
    %v2426 = vunpack.c.h.b16 %v2000
    %v2427 = vunpack.c.h.b16 %v2004
    %v2428 = vunpack.c.h.b16 %v2008
    %v2429 = vunpack.c.h.b16 %v2012
    %v2430 = vunpack.c.h.b16 %v2016
    %v2431 = vunpack.c.h.b16 %v2020
    %v2432 = vunpack.c.h.b16 %v2024
    %v2433 = vunpack.c.h.b16 %v2028
    %v2434 = vpack.c.b16 %v2419, %v2418
    %v2435 = vpack.c.b16 %v2421, %v2420
    %v2436 = vpack.c.b16 %v2423, %v2422
    %v2437 = vpack.c.b16 %v2425, %v2424
    %v2438 = vpack.c.b16 %v2427, %v2426
    %v2439 = vpack.c.b16 %v2429, %v2428
    %v2440 = vpack.c.b16 %v2431, %v2430
    %v2441 = vpack.c.b16 %v2433, %v2432
    %2450 = vmatpush.bf16.msra.mxu0 %v2441
    %2451 = vmatpush.bf16.msra.mxu0 %v2440
    %2452 = vmatpush.bf16.msra.mxu0 %v2439
    %2453 = vmatpush.bf16.msra.mxu0 %v2438
    %2454 = vmatpush.bf16.msra.mxu0 %v2437
    %2455 = vmatpush.bf16.msra.mxu0 %v2436
    %2456 = vmatpush.bf16.msra.mxu0 %v2435
    %2457 = vmatpush.bf16.msra.mxu0 %v2434
    %2458 = vmatmul.bf16.gmra.mxu0 %v2029
    %v2459 = vpop.f32.mrf.mxu0
    %v2460 = vadd.f32 %v2031, %v2459
    %v2461 = vpop.f32.mrf.mxu0
    %2462 = vdwg.mxu0
    %2463 = vst [vmem:[#allocation6 + $0x7] sm:$0x1] %v2460
    // Predicated region
    $region34: #{tpu_custom_call.1} parent=1 // pred_check
      _
    $region35: #{tpu_custom_call.1} parent=1 // pred_check_branch
      %2465 = sbr.rel (0) target = $region37
    $region36: #{tpu_custom_call.1} parent=1 // pred_region
      %2467 = vsyncadd [#allocation5], 0
      %s2469 = sshll.u32 [#allocation6], 4
      %s2470 = int_to_ptr.vmem [resolvable:$true] %s2469
      %s2471 = sshll.u32 %s7, 4
      %s2472 = int_to_ptr.hbm [resolvable:$true] %s2471
      %2474 = dma.vmem_to_hbm [thread:$0]  %s2470, 128, %s2472, [#allocation5]
    $region37: #{tpu_custom_call.1} parent=1 // pred_fallthru
      _
    // Predicated region
    $region38: #{tpu_custom_call.1} parent=1 // pred_check
      _
    $region39: #{tpu_custom_call.1} parent=1 // pred_check_branch
      %2476 = sbr.rel (0) target = $region41
    $region40: #{tpu_custom_call.1} parent=1 // pred_region
      %2478 = dma.done [#allocation5], 128
    $region41: #{tpu_custom_call.1} parent=1 // pred_fallthru
      _
    %2479 = vsyncpa [#allocation4], 1
    %2480 = vsyncpa [#allocation5], 1

</llo_original>
